<compile_context>
chip_gen: v5e
topology: v5e:2x2
jax: 0.10.0
libtpu: 0.0.40
codegen_flags: <defaults>
</compile_context>

<pallas_src>
import functools

import jax
import jax.numpy as jnp
import numpy as np
from jax import lax
from jax.experimental import pallas as pl
from jax.experimental.pallas import tpu as pltpu


def _mlg_kernel(f_dims, f_sizes, tile_n, coords_ref, *rest):
    """rest = [g_chunks_0, g_chunks_1, ..., out_ref]; g_chunks_l: (S, C, S*S)."""
    out_ref = rest[-1]
    g_refs = rest[:-1]

    # Clipped normalized coords (padding_mode='border'), shape (1, TN) each.
    xc = jnp.clip(coords_ref[0:1, :], -1.0, 1.0)
    yc = jnp.clip(coords_ref[1:2, :], -1.0, 1.0)
    zc = jnp.clip(coords_ref[2:3, :], -1.0, 1.0)

    row = 0
    for lvl, (C, S) in enumerate(zip(f_dims, f_sizes)):
        g_ref = g_refs[lvl]                      # (S, C, S*S)
        S2 = S * S
        hs = 0.5 * float(S - 1)
        # Unnormalize (align_corners=True): p in [0, S-1], shape (1, TN).
        px = (xc + 1.0) * hs
        py = (yc + 1.0) * hs
        pz = (zc + 1.0) * hs

        # 1-D tent weights on small (S, TN) slabs (factorized build).
        corners = lax.broadcasted_iota(jnp.int32, (S, tile_n), 0).astype(jnp.float32)
        wx = jnp.maximum(0.0, 1.0 - jnp.abs(px - corners))        # (S, TN)
        wy = jnp.maximum(0.0, 1.0 - jnp.abs(py - corners))        # (S, TN)

        acc = jnp.zeros((C, tile_n), jnp.float32)
        # K-chunk over z-slices: each chunk materializes only an (S^2, TN)
        # weight slab before an accumulating MXU pass.
        for d in range(S):
            wz_d = jnp.maximum(0.0, 1.0 - jnp.abs(pz - float(d)))  # (1, TN)
            wzy = wz_d * wy                                        # (S, TN)  rows = h
            # w_chunk[h*S + w, n] = wz[d,n] * wy[h,n] * wx[w,n]
            w_chunk = (wzy[:, None, :] * wx[None, :, :]).reshape(S2, tile_n)
            acc = acc + jnp.dot(g_ref[d], w_chunk,
                                preferred_element_type=jnp.float32)  # (C, TN)

        feats = acc * jax.nn.sigmoid(acc)                          # Swish / SiLU
        # Lane-dense store; row offsets stay 8-aligned for f_dims multiples of 8.
        out_ref[row:row + C, :] = feats.astype(out_ref.dtype)
        row += C


def multi_level_grid_forward(coords, grids_full, f_dims, f_sizes, *,
                             tile_n=512, features_first=False):
    """coords: (N, 3) f32; grids_full[l]: (C_l, S_l, S_l, S_l) f32.

    Returns SiLU(concat_l grid_sample_l(coords)):
      (N, sum(f_dims)) by default, or (sum(f_dims), N) if features_first=True
      (avoids the external transpose for large N).
    """
    n = coords.shape[0]
    total = int(sum(f_dims))

    # Lane width must be a multiple of 128; keep >= 2 grid blocks when the
    # problem allows it so the parallel grid axis shards across v7x's 2 TCs
    # (no cost on single-TC v5e/v6e).
    tile_n = max(128, (int(tile_n) // 128) * 128)
    while tile_n > 128 and -(-n // tile_n) < 2:
        tile_n -= 128
    n_blocks = -(-n // tile_n)
    n_pad = n_blocks * tile_n

    # Points on the lane axis; pad the tail block (padded rows are computed
    # and discarded, so no remainder is dropped).
    coords_t = jnp.pad(coords.astype(jnp.float32), ((0, n_pad - n), (0, 0))).T  # (3, n_pad)

    g_inputs = []
    g_specs = []
    for g, C, S in zip(grids_full, f_dims, f_sizes):
        # (C, D, H, W) -> (D, C, H*W): chunk axis (z-slice) leading, so the
        # kernel indexes chunks with a cheap leading-axis load.
        g_chunks = jnp.transpose(g.astype(jnp.float32), (1, 0, 2, 3)).reshape(S, C, S * S)
        g_inputs.append(g_chunks)
        g_specs.append(pl.BlockSpec((S, C, S * S), lambda i: (0, 0, 0)))

    kernel = functools.partial(_mlg_kernel, tuple(f_dims), tuple(f_sizes), tile_n)
    out_t = pl.pallas_call(
        kernel,
        out_shape=jax.ShapeDtypeStruct((total, n_pad), jnp.float32),
        grid=(n_blocks,),
        in_specs=[pl.BlockSpec((3, tile_n), lambda i: (0, i))] + g_specs,
        out_specs=pl.BlockSpec((total, tile_n), lambda i: (0, i)),
        compiler_params=pltpu.CompilerParams(
            dimension_semantics=("parallel",)),
    )(coords_t, *g_inputs)

    if features_first:
        return out_t[:, :n]          # (total, N), no extra transpose
    return out_t[:, :n].T            # (N, total), matches the PyTorch module


def ref_forward(coords, grids_full, f_dims, f_sizes):
    """Pure-JAX reference: corner-gather trilinear interpolation + SiLU."""
    outs = []
    for g, C, S in zip(grids_full, f_dims, f_sizes):   # g: (C, D, H, W)
        sm1 = S - 1
        px = jnp.clip((coords[:, 0] + 1.0) * 0.5 * sm1, 0.0, sm1)
        py = jnp.clip((coords[:, 1] + 1.0) * 0.5 * sm1, 0.0, sm1)
        pz = jnp.clip((coords[:, 2] + 1.0) * 0.5 * sm1, 0.0, sm1)
        x0 = jnp.floor(px).astype(jnp.int32); x1 = jnp.minimum(x0 + 1, sm1)
        y0 = jnp.floor(py).astype(jnp.int32); y1 = jnp.minimum(y0 + 1, sm1)
        z0 = jnp.floor(pz).astype(jnp.int32); z1 = jnp.minimum(z0 + 1, sm1)
        ax = (px - x0)[:, None]; ay = (py - y0)[:, None]; az = (pz - z0)[:, None]

        def gat(zz, yy, xx):
            return g[:, zz, yy, xx].T   # (N, C)

        f = ((1 - az) * ((1 - ay) * ((1 - ax) * gat(z0, y0, x0) + ax * gat(z0, y0, x1))
                         + ay * ((1 - ax) * gat(z0, y1, x0) + ax * gat(z0, y1, x1)))
             + az * ((1 - ay) * ((1 - ax) * gat(z1, y0, x0) + ax * gat(z1, y0, x1))
                     + ay * ((1 - ax) * gat(z1, y1, x0) + ax * gat(z1, y1, x1))))
        outs.append(f)
    o = jnp.concatenate(outs, axis=1)
    return o * jax.nn.sigmoid(o)


if __name__ == "__main__":
    # MultiLevelGrid(f_dims=[8, 16], f_sizes=[4, 8], n_levels=2, n_dim=2)
    f_dims = [8, 16]
    f_sizes = [4, 8]
    N = 1000   # not a multiple of tile_n -> exercises padding; gives 2 blocks @ 512

    key = jax.random.PRNGKey(0)
    kc, k0, k1 = jax.random.split(key, 3)
    # coords slightly outside [-1, 1] to exercise border padding
    coords = jax.random.uniform(kc, (N, 3), jnp.float32, minval=-1.2, maxval=1.2)
    # deterministic params: scale * randn, torch shape (1,C,S,S,S) -> (C,S,S,S)
    grids_full = [0.01 * jax.random.normal(k, (C, S, S, S), jnp.float32)
                  for k, C, S in zip([k0, k1], f_dims, f_sizes)]

    out = multi_level_grid_forward(coords, grids_full, f_dims, f_sizes, tile_n=512)
    out = jax.block_until_ready(out)

    ref = ref_forward(coords, grids_full, f_dims, f_sizes)
    np.testing.assert_allclose(np.asarray(out), np.asarray(ref), rtol=1e-5, atol=1e-6)
    print("KERNEL_OK")
</pallas_src>

<mosaic_0001>
module attributes {stable_mosaic.version = 11 : i64} {
  func.func @_mlg_kernel(%arg0: i32, %arg1: memref<3x512xf32, #tpu.memory_space<vmem>>, %arg2: memref<4x8x16xf32, #tpu.memory_space<vmem>>, %arg3: memref<8x16x64xf32, #tpu.memory_space<vmem>>, %arg4: memref<24x512xf32, #tpu.memory_space<vmem>>) attributes {dimension_semantics = [#tpu.dimension_semantics<parallel>], iteration_bounds = array<i64: 2>, scalar_prefetch = 0 : i64, scratch_operands = 0 : i64, tpu.core_type = #tpu.core_type<tc>, window_params = [{transform_indices = @transform_0, window_bounds = array<i64: 3, 512>}, {pipeline_mode = #tpu.pipeline_mode<synchronous>, transform_indices = @transform_1, window_bounds = array<i64: 4, 8, 16>}, {pipeline_mode = #tpu.pipeline_mode<synchronous>, transform_indices = @transform_2, window_bounds = array<i64: 8, 16, 64>}, {transform_indices = @transform_3, window_bounds = array<i64: 24, 512>}]} {
    %c0 = arith.constant 0 : index
    %c0_0 = arith.constant 0 : index
    %0 = vector.load %arg1[%c0, %c0_0] : memref<3x512xf32, #tpu.memory_space<vmem>>, vector<1x512xf32>
    %cst = arith.constant -1.000000e+00 : f32
    %cst_1 = arith.constant 1.000000e+00 : f32
    %1 = vector.broadcast %cst : f32 to vector<1x512xf32>
    %2 = arith.maximumf %1, %0 : vector<1x512xf32>
    %3 = vector.broadcast %cst_1 : f32 to vector<1x512xf32>
    %4 = arith.minimumf %3, %2 : vector<1x512xf32>
    %c1 = arith.constant 1 : index
    %c0_2 = arith.constant 0 : index
    %5 = vector.load %arg1[%c1, %c0_2] : memref<3x512xf32, #tpu.memory_space<vmem>>, vector<1x512xf32>
    %cst_3 = arith.constant -1.000000e+00 : f32
    %cst_4 = arith.constant 1.000000e+00 : f32
    %6 = vector.broadcast %cst_3 : f32 to vector<1x512xf32>
    %7 = arith.maximumf %6, %5 : vector<1x512xf32>
    %8 = vector.broadcast %cst_4 : f32 to vector<1x512xf32>
    %9 = arith.minimumf %8, %7 : vector<1x512xf32>
    %c2 = arith.constant 2 : index
    %c0_5 = arith.constant 0 : index
    %10 = vector.load %arg1[%c2, %c0_5] : memref<3x512xf32, #tpu.memory_space<vmem>>, vector<1x512xf32>
    %cst_6 = arith.constant -1.000000e+00 : f32
    %cst_7 = arith.constant 1.000000e+00 : f32
    %11 = vector.broadcast %cst_6 : f32 to vector<1x512xf32>
    %12 = arith.maximumf %11, %10 : vector<1x512xf32>
    %13 = vector.broadcast %cst_7 : f32 to vector<1x512xf32>
    %14 = arith.minimumf %13, %12 : vector<1x512xf32>
    %cst_8 = arith.constant 1.000000e+00 : f32
    %15 = vector.broadcast %cst_8 : f32 to vector<1x512xf32>
    %16 = arith.addf %4, %15 : vector<1x512xf32>
    %cst_9 = arith.constant 1.500000e+00 : f32
    %17 = vector.broadcast %cst_9 : f32 to vector<1x512xf32>
    %18 = arith.mulf %16, %17 : vector<1x512xf32>
    %cst_10 = arith.constant 1.000000e+00 : f32
    %19 = vector.broadcast %cst_10 : f32 to vector<1x512xf32>
    %20 = arith.addf %9, %19 : vector<1x512xf32>
    %cst_11 = arith.constant 1.500000e+00 : f32
    %21 = vector.broadcast %cst_11 : f32 to vector<1x512xf32>
    %22 = arith.mulf %20, %21 : vector<1x512xf32>
    %cst_12 = arith.constant 1.000000e+00 : f32
    %23 = vector.broadcast %cst_12 : f32 to vector<1x512xf32>
    %24 = arith.addf %14, %23 : vector<1x512xf32>
    %cst_13 = arith.constant 1.500000e+00 : f32
    %25 = vector.broadcast %cst_13 : f32 to vector<1x512xf32>
    %26 = arith.mulf %24, %25 : vector<1x512xf32>
    %27 = tpu.iota {dimensions = array<i32: 0>} : vector<4x512xi32>
    %28 = arith.sitofp %27 : vector<4x512xi32> to vector<4x512xf32>
    %29 = vector.broadcast %18 : vector<1x512xf32> to vector<4x512xf32>
    %30 = arith.subf %29, %28 : vector<4x512xf32>
    %31 = math.absf %30 : vector<4x512xf32>
    %cst_14 = arith.constant 1.000000e+00 : f32
    %32 = vector.broadcast %cst_14 : f32 to vector<4x512xf32>
    %33 = arith.subf %32, %31 : vector<4x512xf32>
    %cst_15 = arith.constant 0.000000e+00 : f32
    %34 = vector.broadcast %cst_15 : f32 to vector<4x512xf32>
    %35 = arith.maximumf %34, %33 : vector<4x512xf32>
    %36 = vector.broadcast %22 : vector<1x512xf32> to vector<4x512xf32>
    %37 = arith.subf %36, %28 : vector<4x512xf32>
    %38 = math.absf %37 : vector<4x512xf32>
    %cst_16 = arith.constant 1.000000e+00 : f32
    %39 = vector.broadcast %cst_16 : f32 to vector<4x512xf32>
    %40 = arith.subf %39, %38 : vector<4x512xf32>
    %cst_17 = arith.constant 0.000000e+00 : f32
    %41 = vector.broadcast %cst_17 : f32 to vector<4x512xf32>
    %42 = arith.maximumf %41, %40 : vector<4x512xf32>
    %cst_18 = arith.constant 0.000000e+00 : f32
    %43 = vector.broadcast %cst_18 : f32 to vector<8x512xf32>
    %cst_19 = arith.constant 0.000000e+00 : f32
    %44 = vector.broadcast %cst_19 : f32 to vector<1x512xf32>
    %45 = arith.subf %26, %44 : vector<1x512xf32>
    %46 = math.absf %45 : vector<1x512xf32>
    %cst_20 = arith.constant 1.000000e+00 : f32
    %47 = vector.broadcast %cst_20 : f32 to vector<1x512xf32>
    %48 = arith.subf %47, %46 : vector<1x512xf32>
    %cst_21 = arith.constant 0.000000e+00 : f32
    %49 = vector.broadcast %cst_21 : f32 to vector<1x512xf32>
    %50 = arith.maximumf %49, %48 : vector<1x512xf32>
    %51 = vector.broadcast %50 : vector<1x512xf32> to vector<4x512xf32>
    %52 = arith.mulf %51, %42 : vector<4x512xf32>
    %53 = vector.shape_cast %52 : vector<4x512xf32> to vector<4x1x512xf32>
    %54 = vector.shape_cast %35 : vector<4x512xf32> to vector<1x4x512xf32>
    %55 = vector.broadcast %53 : vector<4x1x512xf32> to vector<4x4x512xf32>
    %56 = vector.broadcast %54 : vector<1x4x512xf32> to vector<4x4x512xf32>
    %57 = arith.mulf %55, %56 : vector<4x4x512xf32>
    %58 = vector.shape_cast %57 : vector<4x4x512xf32> to vector<16x512xf32>
    %c0_22 = arith.constant 0 : index
    %c0_23 = arith.constant 0 : index
    %c0_24 = arith.constant 0 : index
    %59 = vector.load %arg2[%c0_22, %c0_23, %c0_24] : memref<4x8x16xf32, #tpu.memory_space<vmem>>, vector<1x8x16xf32>
    %60 = vector.shape_cast %59 : vector<1x8x16xf32> to vector<8x16xf32>
    %cst_25 = arith.constant dense<0.000000e+00> : vector<8x512xf32>
    %61 = tpu.matmul %60, %58, %cst_25 {dimension_numbers = #tpu.dot_dimension_numbers<[1], [0], [0], [1], [0, 0, 1, 1], [], []>} : vector<8x16xf32>, vector<16x512xf32>, vector<8x512xf32> -> vector<8x512xf32>
    %62 = arith.addf %43, %61 : vector<8x512xf32>
    %cst_26 = arith.constant 1.000000e+00 : f32
    %63 = vector.broadcast %cst_26 : f32 to vector<1x512xf32>
    %64 = arith.subf %26, %63 : vector<1x512xf32>
    %65 = math.absf %64 : vector<1x512xf32>
    %cst_27 = arith.constant 1.000000e+00 : f32
    %66 = vector.broadcast %cst_27 : f32 to vector<1x512xf32>
    %67 = arith.subf %66, %65 : vector<1x512xf32>
    %cst_28 = arith.constant 0.000000e+00 : f32
    %68 = vector.broadcast %cst_28 : f32 to vector<1x512xf32>
    %69 = arith.maximumf %68, %67 : vector<1x512xf32>
    %70 = vector.broadcast %69 : vector<1x512xf32> to vector<4x512xf32>
    %71 = arith.mulf %70, %42 : vector<4x512xf32>
    %72 = vector.shape_cast %71 : vector<4x512xf32> to vector<4x1x512xf32>
    %73 = vector.shape_cast %35 : vector<4x512xf32> to vector<1x4x512xf32>
    %74 = vector.broadcast %72 : vector<4x1x512xf32> to vector<4x4x512xf32>
    %75 = vector.broadcast %73 : vector<1x4x512xf32> to vector<4x4x512xf32>
    %76 = arith.mulf %74, %75 : vector<4x4x512xf32>
    %77 = vector.shape_cast %76 : vector<4x4x512xf32> to vector<16x512xf32>
    %c1_29 = arith.constant 1 : index
    %c0_30 = arith.constant 0 : index
    %c0_31 = arith.constant 0 : index
    %78 = vector.load %arg2[%c1_29, %c0_30, %c0_31] : memref<4x8x16xf32, #tpu.memory_space<vmem>>, vector<1x8x16xf32>
    %79 = vector.shape_cast %78 : vector<1x8x16xf32> to vector<8x16xf32>
    %cst_32 = arith.constant dense<0.000000e+00> : vector<8x512xf32>
    %80 = tpu.matmul %79, %77, %cst_32 {dimension_numbers = #tpu.dot_dimension_numbers<[1], [0], [0], [1], [0, 0, 1, 1], [], []>} : vector<8x16xf32>, vector<16x512xf32>, vector<8x512xf32> -> vector<8x512xf32>
    %81 = arith.addf %62, %80 : vector<8x512xf32>
    %cst_33 = arith.constant 2.000000e+00 : f32
    %82 = vector.broadcast %cst_33 : f32 to vector<1x512xf32>
    %83 = arith.subf %26, %82 : vector<1x512xf32>
    %84 = math.absf %83 : vector<1x512xf32>
    %cst_34 = arith.constant 1.000000e+00 : f32
    %85 = vector.broadcast %cst_34 : f32 to vector<1x512xf32>
    %86 = arith.subf %85, %84 : vector<1x512xf32>
    %cst_35 = arith.constant 0.000000e+00 : f32
    %87 = vector.broadcast %cst_35 : f32 to vector<1x512xf32>
    %88 = arith.maximumf %87, %86 : vector<1x512xf32>
    %89 = vector.broadcast %88 : vector<1x512xf32> to vector<4x512xf32>
    %90 = arith.mulf %89, %42 : vector<4x512xf32>
    %91 = vector.shape_cast %90 : vector<4x512xf32> to vector<4x1x512xf32>
    %92 = vector.shape_cast %35 : vector<4x512xf32> to vector<1x4x512xf32>
    %93 = vector.broadcast %91 : vector<4x1x512xf32> to vector<4x4x512xf32>
    %94 = vector.broadcast %92 : vector<1x4x512xf32> to vector<4x4x512xf32>
    %95 = arith.mulf %93, %94 : vector<4x4x512xf32>
    %96 = vector.shape_cast %95 : vector<4x4x512xf32> to vector<16x512xf32>
    %c2_36 = arith.constant 2 : index
    %c0_37 = arith.constant 0 : index
    %c0_38 = arith.constant 0 : index
    %97 = vector.load %arg2[%c2_36, %c0_37, %c0_38] : memref<4x8x16xf32, #tpu.memory_space<vmem>>, vector<1x8x16xf32>
    %98 = vector.shape_cast %97 : vector<1x8x16xf32> to vector<8x16xf32>
    %cst_39 = arith.constant dense<0.000000e+00> : vector<8x512xf32>
    %99 = tpu.matmul %98, %96, %cst_39 {dimension_numbers = #tpu.dot_dimension_numbers<[1], [0], [0], [1], [0, 0, 1, 1], [], []>} : vector<8x16xf32>, vector<16x512xf32>, vector<8x512xf32> -> vector<8x512xf32>
    %100 = arith.addf %81, %99 : vector<8x512xf32>
    %cst_40 = arith.constant 3.000000e+00 : f32
    %101 = vector.broadcast %cst_40 : f32 to vector<1x512xf32>
    %102 = arith.subf %26, %101 : vector<1x512xf32>
    %103 = math.absf %102 : vector<1x512xf32>
    %cst_41 = arith.constant 1.000000e+00 : f32
    %104 = vector.broadcast %cst_41 : f32 to vector<1x512xf32>
    %105 = arith.subf %104, %103 : vector<1x512xf32>
    %cst_42 = arith.constant 0.000000e+00 : f32
    %106 = vector.broadcast %cst_42 : f32 to vector<1x512xf32>
    %107 = arith.maximumf %106, %105 : vector<1x512xf32>
    %108 = vector.broadcast %107 : vector<1x512xf32> to vector<4x512xf32>
    %109 = arith.mulf %108, %42 : vector<4x512xf32>
    %110 = vector.shape_cast %109 : vector<4x512xf32> to vector<4x1x512xf32>
    %111 = vector.shape_cast %35 : vector<4x512xf32> to vector<1x4x512xf32>
    %112 = vector.broadcast %110 : vector<4x1x512xf32> to vector<4x4x512xf32>
    %113 = vector.broadcast %111 : vector<1x4x512xf32> to vector<4x4x512xf32>
    %114 = arith.mulf %112, %113 : vector<4x4x512xf32>
    %115 = vector.shape_cast %114 : vector<4x4x512xf32> to vector<16x512xf32>
    %c3 = arith.constant 3 : index
    %c0_43 = arith.constant 0 : index
    %c0_44 = arith.constant 0 : index
    %116 = vector.load %arg2[%c3, %c0_43, %c0_44] : memref<4x8x16xf32, #tpu.memory_space<vmem>>, vector<1x8x16xf32>
    %117 = vector.shape_cast %116 : vector<1x8x16xf32> to vector<8x16xf32>
    %cst_45 = arith.constant dense<0.000000e+00> : vector<8x512xf32>
    %118 = tpu.matmul %117, %115, %cst_45 {dimension_numbers = #tpu.dot_dimension_numbers<[1], [0], [0], [1], [0, 0, 1, 1], [], []>} : vector<8x16xf32>, vector<16x512xf32>, vector<8x512xf32> -> vector<8x512xf32>
    %119 = arith.addf %100, %118 : vector<8x512xf32>
    %120 = arith.negf %119 : vector<8x512xf32>
    %121 = math.exp %120 : vector<8x512xf32>
    %cst_46 = arith.constant 1.000000e+00 : f32
    %122 = vector.broadcast %cst_46 : f32 to vector<8x512xf32>
    %123 = arith.addf %122, %121 : vector<8x512xf32>
    %124 = arith.divf %122, %123 : vector<8x512xf32>
    %125 = arith.mulf %119, %124 : vector<8x512xf32>
    %c0_47 = arith.constant 0 : index
    %c0_48 = arith.constant 0 : index
    %126 = vector.load %arg4[%c0_47, %c0_48] : memref<24x512xf32, #tpu.memory_space<vmem>>, vector<8x512xf32>
    tpu.vector_store %arg4[%c0_47, %c0_48], %125 {strides = array<i32>} : memref<24x512xf32, #tpu.memory_space<vmem>>, vector<8x512xf32>,
    %cst_49 = arith.constant 1.000000e+00 : f32
    %127 = vector.broadcast %cst_49 : f32 to vector<1x512xf32>
    %128 = arith.addf %4, %127 : vector<1x512xf32>
    %cst_50 = arith.constant 3.500000e+00 : f32
    %129 = vector.broadcast %cst_50 : f32 to vector<1x512xf32>
    %130 = arith.mulf %128, %129 : vector<1x512xf32>
    %cst_51 = arith.constant 1.000000e+00 : f32
    %131 = vector.broadcast %cst_51 : f32 to vector<1x512xf32>
    %132 = arith.addf %9, %131 : vector<1x512xf32>
    %cst_52 = arith.constant 3.500000e+00 : f32
    %133 = vector.broadcast %cst_52 : f32 to vector<1x512xf32>
    %134 = arith.mulf %132, %133 : vector<1x512xf32>
    %cst_53 = arith.constant 1.000000e+00 : f32
    %135 = vector.broadcast %cst_53 : f32 to vector<1x512xf32>
    %136 = arith.addf %14, %135 : vector<1x512xf32>
    %cst_54 = arith.constant 3.500000e+00 : f32
    %137 = vector.broadcast %cst_54 : f32 to vector<1x512xf32>
    %138 = arith.mulf %136, %137 : vector<1x512xf32>
    %139 = tpu.iota {dimensions = array<i32: 0>} : vector<8x512xi32>
    %140 = arith.sitofp %139 : vector<8x512xi32> to vector<8x512xf32>
    %141 = vector.broadcast %130 : vector<1x512xf32> to vector<8x512xf32>
    %142 = arith.subf %141, %140 : vector<8x512xf32>
    %143 = math.absf %142 : vector<8x512xf32>
    %cst_55 = arith.constant 1.000000e+00 : f32
    %144 = vector.broadcast %cst_55 : f32 to vector<8x512xf32>
    %145 = arith.subf %144, %143 : vector<8x512xf32>
    %cst_56 = arith.constant 0.000000e+00 : f32
    %146 = vector.broadcast %cst_56 : f32 to vector<8x512xf32>
    %147 = arith.maximumf %146, %145 : vector<8x512xf32>
    %148 = vector.broadcast %134 : vector<1x512xf32> to vector<8x512xf32>
    %149 = arith.subf %148, %140 : vector<8x512xf32>
    %150 = math.absf %149 : vector<8x512xf32>
    %cst_57 = arith.constant 1.000000e+00 : f32
    %151 = vector.broadcast %cst_57 : f32 to vector<8x512xf32>
    %152 = arith.subf %151, %150 : vector<8x512xf32>
    %cst_58 = arith.constant 0.000000e+00 : f32
    %153 = vector.broadcast %cst_58 : f32 to vector<8x512xf32>
    %154 = arith.maximumf %153, %152 : vector<8x512xf32>
    %cst_59 = arith.constant 0.000000e+00 : f32
    %155 = vector.broadcast %cst_59 : f32 to vector<16x512xf32>
    %cst_60 = arith.constant 0.000000e+00 : f32
    %156 = vector.broadcast %cst_60 : f32 to vector<1x512xf32>
    %157 = arith.subf %138, %156 : vector<1x512xf32>
    %158 = math.absf %157 : vector<1x512xf32>
    %cst_61 = arith.constant 1.000000e+00 : f32
    %159 = vector.broadcast %cst_61 : f32 to vector<1x512xf32>
    %160 = arith.subf %159, %158 : vector<1x512xf32>
    %cst_62 = arith.constant 0.000000e+00 : f32
    %161 = vector.broadcast %cst_62 : f32 to vector<1x512xf32>
    %162 = arith.maximumf %161, %160 : vector<1x512xf32>
    %163 = vector.broadcast %162 : vector<1x512xf32> to vector<8x512xf32>
    %164 = arith.mulf %163, %154 : vector<8x512xf32>
    %165 = vector.shape_cast %164 : vector<8x512xf32> to vector<8x1x512xf32>
    %166 = vector.shape_cast %147 : vector<8x512xf32> to vector<1x8x512xf32>
    %167 = vector.broadcast %165 : vector<8x1x512xf32> to vector<8x8x512xf32>
    %168 = vector.broadcast %166 : vector<1x8x512xf32> to vector<8x8x512xf32>
    %169 = arith.mulf %167, %168 : vector<8x8x512xf32>
    %170 = vector.shape_cast %169 : vector<8x8x512xf32> to vector<64x512xf32>
    %c0_63 = arith.constant 0 : index
    %c0_64 = arith.constant 0 : index
    %c0_65 = arith.constant 0 : index
    %171 = vector.load %arg3[%c0_63, %c0_64, %c0_65] : memref<8x16x64xf32, #tpu.memory_space<vmem>>, vector<1x16x64xf32>
    %172 = vector.shape_cast %171 : vector<1x16x64xf32> to vector<16x64xf32>
    %cst_66 = arith.constant dense<0.000000e+00> : vector<16x512xf32>
    %173 = tpu.matmul %172, %170, %cst_66 {dimension_numbers = #tpu.dot_dimension_numbers<[1], [0], [0], [1], [0, 0, 1, 1], [], []>} : vector<16x64xf32>, vector<64x512xf32>, vector<16x512xf32> -> vector<16x512xf32>
    %174 = arith.addf %155, %173 : vector<16x512xf32>
    %cst_67 = arith.constant 1.000000e+00 : f32
    %175 = vector.broadcast %cst_67 : f32 to vector<1x512xf32>
    %176 = arith.subf %138, %175 : vector<1x512xf32>
    %177 = math.absf %176 : vector<1x512xf32>
    %cst_68 = arith.constant 1.000000e+00 : f32
    %178 = vector.broadcast %cst_68 : f32 to vector<1x512xf32>
    %179 = arith.subf %178, %177 : vector<1x512xf32>
    %cst_69 = arith.constant 0.000000e+00 : f32
    %180 = vector.broadcast %cst_69 : f32 to vector<1x512xf32>
    %181 = arith.maximumf %180, %179 : vector<1x512xf32>
    %182 = vector.broadcast %181 : vector<1x512xf32> to vector<8x512xf32>
    %183 = arith.mulf %182, %154 : vector<8x512xf32>
    %184 = vector.shape_cast %183 : vector<8x512xf32> to vector<8x1x512xf32>
    %185 = vector.shape_cast %147 : vector<8x512xf32> to vector<1x8x512xf32>
    %186 = vector.broadcast %184 : vector<8x1x512xf32> to vector<8x8x512xf32>
    %187 = vector.broadcast %185 : vector<1x8x512xf32> to vector<8x8x512xf32>
    %188 = arith.mulf %186, %187 : vector<8x8x512xf32>
    %189 = vector.shape_cast %188 : vector<8x8x512xf32> to vector<64x512xf32>
    %c1_70 = arith.constant 1 : index
    %c0_71 = arith.constant 0 : index
    %c0_72 = arith.constant 0 : index
    %190 = vector.load %arg3[%c1_70, %c0_71, %c0_72] : memref<8x16x64xf32, #tpu.memory_space<vmem>>, vector<1x16x64xf32>
    %191 = vector.shape_cast %190 : vector<1x16x64xf32> to vector<16x64xf32>
    %cst_73 = arith.constant dense<0.000000e+00> : vector<16x512xf32>
    %192 = tpu.matmul %191, %189, %cst_73 {dimension_numbers = #tpu.dot_dimension_numbers<[1], [0], [0], [1], [0, 0, 1, 1], [], []>} : vector<16x64xf32>, vector<64x512xf32>, vector<16x512xf32> -> vector<16x512xf32>
    %193 = arith.addf %174, %192 : vector<16x512xf32>
    %cst_74 = arith.constant 2.000000e+00 : f32
    %194 = vector.broadcast %cst_74 : f32 to vector<1x512xf32>
    %195 = arith.subf %138, %194 : vector<1x512xf32>
    %196 = math.absf %195 : vector<1x512xf32>
    %cst_75 = arith.constant 1.000000e+00 : f32
    %197 = vector.broadcast %cst_75 : f32 to vector<1x512xf32>
    %198 = arith.subf %197, %196 : vector<1x512xf32>
    %cst_76 = arith.constant 0.000000e+00 : f32
    %199 = vector.broadcast %cst_76 : f32 to vector<1x512xf32>
    %200 = arith.maximumf %199, %198 : vector<1x512xf32>
    %201 = vector.broadcast %200 : vector<1x512xf32> to vector<8x512xf32>
    %202 = arith.mulf %201, %154 : vector<8x512xf32>
    %203 = vector.shape_cast %202 : vector<8x512xf32> to vector<8x1x512xf32>
    %204 = vector.shape_cast %147 : vector<8x512xf32> to vector<1x8x512xf32>
    %205 = vector.broadcast %203 : vector<8x1x512xf32> to vector<8x8x512xf32>
    %206 = vector.broadcast %204 : vector<1x8x512xf32> to vector<8x8x512xf32>
    %207 = arith.mulf %205, %206 : vector<8x8x512xf32>
    %208 = vector.shape_cast %207 : vector<8x8x512xf32> to vector<64x512xf32>
    %c2_77 = arith.constant 2 : index
    %c0_78 = arith.constant 0 : index
    %c0_79 = arith.constant 0 : index
    %209 = vector.load %arg3[%c2_77, %c0_78, %c0_79] : memref<8x16x64xf32, #tpu.memory_space<vmem>>, vector<1x16x64xf32>
    %210 = vector.shape_cast %209 : vector<1x16x64xf32> to vector<16x64xf32>
    %cst_80 = arith.constant dense<0.000000e+00> : vector<16x512xf32>
    %211 = tpu.matmul %210, %208, %cst_80 {dimension_numbers = #tpu.dot_dimension_numbers<[1], [0], [0], [1], [0, 0, 1, 1], [], []>} : vector<16x64xf32>, vector<64x512xf32>, vector<16x512xf32> -> vector<16x512xf32>
    %212 = arith.addf %193, %211 : vector<16x512xf32>
    %cst_81 = arith.constant 3.000000e+00 : f32
    %213 = vector.broadcast %cst_81 : f32 to vector<1x512xf32>
    %214 = arith.subf %138, %213 : vector<1x512xf32>
    %215 = math.absf %214 : vector<1x512xf32>
    %cst_82 = arith.constant 1.000000e+00 : f32
    %216 = vector.broadcast %cst_82 : f32 to vector<1x512xf32>
    %217 = arith.subf %216, %215 : vector<1x512xf32>
    %cst_83 = arith.constant 0.000000e+00 : f32
    %218 = vector.broadcast %cst_83 : f32 to vector<1x512xf32>
    %219 = arith.maximumf %218, %217 : vector<1x512xf32>
    %220 = vector.broadcast %219 : vector<1x512xf32> to vector<8x512xf32>
    %221 = arith.mulf %220, %154 : vector<8x512xf32>
    %222 = vector.shape_cast %221 : vector<8x512xf32> to vector<8x1x512xf32>
    %223 = vector.shape_cast %147 : vector<8x512xf32> to vector<1x8x512xf32>
    %224 = vector.broadcast %222 : vector<8x1x512xf32> to vector<8x8x512xf32>
    %225 = vector.broadcast %223 : vector<1x8x512xf32> to vector<8x8x512xf32>
    %226 = arith.mulf %224, %225 : vector<8x8x512xf32>
    %227 = vector.shape_cast %226 : vector<8x8x512xf32> to vector<64x512xf32>
    %c3_84 = arith.constant 3 : index
    %c0_85 = arith.constant 0 : index
    %c0_86 = arith.constant 0 : index
    %228 = vector.load %arg3[%c3_84, %c0_85, %c0_86] : memref<8x16x64xf32, #tpu.memory_space<vmem>>, vector<1x16x64xf32>
    %229 = vector.shape_cast %228 : vector<1x16x64xf32> to vector<16x64xf32>
    %cst_87 = arith.constant dense<0.000000e+00> : vector<16x512xf32>
    %230 = tpu.matmul %229, %227, %cst_87 {dimension_numbers = #tpu.dot_dimension_numbers<[1], [0], [0], [1], [0, 0, 1, 1], [], []>} : vector<16x64xf32>, vector<64x512xf32>, vector<16x512xf32> -> vector<16x512xf32>
    %231 = arith.addf %212, %230 : vector<16x512xf32>
    %cst_88 = arith.constant 4.000000e+00 : f32
    %232 = vector.broadcast %cst_88 : f32 to vector<1x512xf32>
    %233 = arith.subf %138, %232 : vector<1x512xf32>
    %234 = math.absf %233 : vector<1x512xf32>
    %cst_89 = arith.constant 1.000000e+00 : f32
    %235 = vector.broadcast %cst_89 : f32 to vector<1x512xf32>
    %236 = arith.subf %235, %234 : vector<1x512xf32>
    %cst_90 = arith.constant 0.000000e+00 : f32
    %237 = vector.broadcast %cst_90 : f32 to vector<1x512xf32>
    %238 = arith.maximumf %237, %236 : vector<1x512xf32>
    %239 = vector.broadcast %238 : vector<1x512xf32> to vector<8x512xf32>
    %240 = arith.mulf %239, %154 : vector<8x512xf32>
    %241 = vector.shape_cast %240 : vector<8x512xf32> to vector<8x1x512xf32>
    %242 = vector.shape_cast %147 : vector<8x512xf32> to vector<1x8x512xf32>
    %243 = vector.broadcast %241 : vector<8x1x512xf32> to vector<8x8x512xf32>
    %244 = vector.broadcast %242 : vector<1x8x512xf32> to vector<8x8x512xf32>
    %245 = arith.mulf %243, %244 : vector<8x8x512xf32>
    %246 = vector.shape_cast %245 : vector<8x8x512xf32> to vector<64x512xf32>
    %c4 = arith.constant 4 : index
    %c0_91 = arith.constant 0 : index
    %c0_92 = arith.constant 0 : index
    %247 = vector.load %arg3[%c4, %c0_91, %c0_92] : memref<8x16x64xf32, #tpu.memory_space<vmem>>, vector<1x16x64xf32>
    %248 = vector.shape_cast %247 : vector<1x16x64xf32> to vector<16x64xf32>
    %cst_93 = arith.constant dense<0.000000e+00> : vector<16x512xf32>
    %249 = tpu.matmul %248, %246, %cst_93 {dimension_numbers = #tpu.dot_dimension_numbers<[1], [0], [0], [1], [0, 0, 1, 1], [], []>} : vector<16x64xf32>, vector<64x512xf32>, vector<16x512xf32> -> vector<16x512xf32>
    %250 = arith.addf %231, %249 : vector<16x512xf32>
    %cst_94 = arith.constant 5.000000e+00 : f32
    %251 = vector.broadcast %cst_94 : f32 to vector<1x512xf32>
    %252 = arith.subf %138, %251 : vector<1x512xf32>
    %253 = math.absf %252 : vector<1x512xf32>
    %cst_95 = arith.constant 1.000000e+00 : f32
    %254 = vector.broadcast %cst_95 : f32 to vector<1x512xf32>
    %255 = arith.subf %254, %253 : vector<1x512xf32>
    %cst_96 = arith.constant 0.000000e+00 : f32
    %256 = vector.broadcast %cst_96 : f32 to vector<1x512xf32>
    %257 = arith.maximumf %256, %255 : vector<1x512xf32>
    %258 = vector.broadcast %257 : vector<1x512xf32> to vector<8x512xf32>
    %259 = arith.mulf %258, %154 : vector<8x512xf32>
    %260 = vector.shape_cast %259 : vector<8x512xf32> to vector<8x1x512xf32>
    %261 = vector.shape_cast %147 : vector<8x512xf32> to vector<1x8x512xf32>
    %262 = vector.broadcast %260 : vector<8x1x512xf32> to vector<8x8x512xf32>
    %263 = vector.broadcast %261 : vector<1x8x512xf32> to vector<8x8x512xf32>
    %264 = arith.mulf %262, %263 : vector<8x8x512xf32>
    %265 = vector.shape_cast %264 : vector<8x8x512xf32> to vector<64x512xf32>
    %c5 = arith.constant 5 : index
    %c0_97 = arith.constant 0 : index
    %c0_98 = arith.constant 0 : index
    %266 = vector.load %arg3[%c5, %c0_97, %c0_98] : memref<8x16x64xf32, #tpu.memory_space<vmem>>, vector<1x16x64xf32>
    %267 = vector.shape_cast %266 : vector<1x16x64xf32> to vector<16x64xf32>
    %cst_99 = arith.constant dense<0.000000e+00> : vector<16x512xf32>
    %268 = tpu.matmul %267, %265, %cst_99 {dimension_numbers = #tpu.dot_dimension_numbers<[1], [0], [0], [1], [0, 0, 1, 1], [], []>} : vector<16x64xf32>, vector<64x512xf32>, vector<16x512xf32> -> vector<16x512xf32>
    %269 = arith.addf %250, %268 : vector<16x512xf32>
    %cst_100 = arith.constant 6.000000e+00 : f32
    %270 = vector.broadcast %cst_100 : f32 to vector<1x512xf32>
    %271 = arith.subf %138, %270 : vector<1x512xf32>
    %272 = math.absf %271 : vector<1x512xf32>
    %cst_101 = arith.constant 1.000000e+00 : f32
    %273 = vector.broadcast %cst_101 : f32 to vector<1x512xf32>
    %274 = arith.subf %273, %272 : vector<1x512xf32>
    %cst_102 = arith.constant 0.000000e+00 : f32
    %275 = vector.broadcast %cst_102 : f32 to vector<1x512xf32>
    %276 = arith.maximumf %275, %274 : vector<1x512xf32>
    %277 = vector.broadcast %276 : vector<1x512xf32> to vector<8x512xf32>
    %278 = arith.mulf %277, %154 : vector<8x512xf32>
    %279 = vector.shape_cast %278 : vector<8x512xf32> to vector<8x1x512xf32>
    %280 = vector.shape_cast %147 : vector<8x512xf32> to vector<1x8x512xf32>
    %281 = vector.broadcast %279 : vector<8x1x512xf32> to vector<8x8x512xf32>
    %282 = vector.broadcast %280 : vector<1x8x512xf32> to vector<8x8x512xf32>
    %283 = arith.mulf %281, %282 : vector<8x8x512xf32>
    %284 = vector.shape_cast %283 : vector<8x8x512xf32> to vector<64x512xf32>
    %c6 = arith.constant 6 : index
    %c0_103 = arith.constant 0 : index
    %c0_104 = arith.constant 0 : index
    %285 = vector.load %arg3[%c6, %c0_103, %c0_104] : memref<8x16x64xf32, #tpu.memory_space<vmem>>, vector<1x16x64xf32>
    %286 = vector.shape_cast %285 : vector<1x16x64xf32> to vector<16x64xf32>
    %cst_105 = arith.constant dense<0.000000e+00> : vector<16x512xf32>
    %287 = tpu.matmul %286, %284, %cst_105 {dimension_numbers = #tpu.dot_dimension_numbers<[1], [0], [0], [1], [0, 0, 1, 1], [], []>} : vector<16x64xf32>, vector<64x512xf32>, vector<16x512xf32> -> vector<16x512xf32>
    %288 = arith.addf %269, %287 : vector<16x512xf32>
    %cst_106 = arith.constant 7.000000e+00 : f32
    %289 = vector.broadcast %cst_106 : f32 to vector<1x512xf32>
    %290 = arith.subf %138, %289 : vector<1x512xf32>
    %291 = math.absf %290 : vector<1x512xf32>
    %cst_107 = arith.constant 1.000000e+00 : f32
    %292 = vector.broadcast %cst_107 : f32 to vector<1x512xf32>
    %293 = arith.subf %292, %291 : vector<1x512xf32>
    %cst_108 = arith.constant 0.000000e+00 : f32
    %294 = vector.broadcast %cst_108 : f32 to vector<1x512xf32>
    %295 = arith.maximumf %294, %293 : vector<1x512xf32>
    %296 = vector.broadcast %295 : vector<1x512xf32> to vector<8x512xf32>
    %297 = arith.mulf %296, %154 : vector<8x512xf32>
    %298 = vector.shape_cast %297 : vector<8x512xf32> to vector<8x1x512xf32>
    %299 = vector.shape_cast %147 : vector<8x512xf32> to vector<1x8x512xf32>
    %300 = vector.broadcast %298 : vector<8x1x512xf32> to vector<8x8x512xf32>
    %301 = vector.broadcast %299 : vector<1x8x512xf32> to vector<8x8x512xf32>
    %302 = arith.mulf %300, %301 : vector<8x8x512xf32>
    %303 = vector.shape_cast %302 : vector<8x8x512xf32> to vector<64x512xf32>
    %c7 = arith.constant 7 : index
    %c0_109 = arith.constant 0 : index
    %c0_110 = arith.constant 0 : index
    %304 = vector.load %arg3[%c7, %c0_109, %c0_110] : memref<8x16x64xf32, #tpu.memory_space<vmem>>, vector<1x16x64xf32>
    %305 = vector.shape_cast %304 : vector<1x16x64xf32> to vector<16x64xf32>
    %cst_111 = arith.constant dense<0.000000e+00> : vector<16x512xf32>
    %306 = tpu.matmul %305, %303, %cst_111 {dimension_numbers = #tpu.dot_dimension_numbers<[1], [0], [0], [1], [0, 0, 1, 1], [], []>} : vector<16x64xf32>, vector<64x512xf32>, vector<16x512xf32> -> vector<16x512xf32>
    %307 = arith.addf %288, %306 : vector<16x512xf32>
    %308 = arith.negf %307 : vector<16x512xf32>
    %309 = math.exp %308 : vector<16x512xf32>
    %cst_112 = arith.constant 1.000000e+00 : f32
    %310 = vector.broadcast %cst_112 : f32 to vector<16x512xf32>
    %311 = arith.addf %310, %309 : vector<16x512xf32>
    %312 = arith.divf %310, %311 : vector<16x512xf32>
    %313 = arith.mulf %307, %312 : vector<16x512xf32>
    %c8 = arith.constant 8 : index
    %c0_113 = arith.constant 0 : index
    %314 = vector.load %arg4[%c8, %c0_113] : memref<24x512xf32, #tpu.memory_space<vmem>>, vector<16x512xf32>
    tpu.vector_store %arg4[%c8, %c0_113], %313 {strides = array<i32>} : memref<24x512xf32, #tpu.memory_space<vmem>>, vector<16x512xf32>,
    return
  }
  func.func @transform_0(%arg0: i32) -> (i32, i32) {
    %c0_i32 = arith.constant 0 : i32
    %c0_i32_0 = arith.constant 0 : i32
    return %c0_i32, %arg0 : i32, i32
  }
  func.func @transform_1(%arg0: i32) -> (i32, i32, i32) {
    %c0_i32 = arith.constant 0 : i32
    %c0_i32_0 = arith.constant 0 : i32
    %c0_i32_1 = arith.constant 0 : i32
    %c0_i32_2 = arith.constant 0 : i32
    return %c0_i32, %c0_i32_0, %c0_i32_1 : i32, i32, i32
  }
  func.func @transform_2(%arg0: i32) -> (i32, i32, i32) {
    %c0_i32 = arith.constant 0 : i32
    %c0_i32_0 = arith.constant 0 : i32
    %c0_i32_1 = arith.constant 0 : i32
    %c0_i32_2 = arith.constant 0 : i32
    return %c0_i32, %c0_i32_0, %c0_i32_1 : i32, i32, i32
  }
  func.func @transform_3(%arg0: i32) -> (i32, i32) {
    %c0_i32 = arith.constant 0 : i32
    %c0_i32_0 = arith.constant 0 : i32
    return %c0_i32, %arg0 : i32, i32
  }
}

</mosaic_0001>

<llo_original>
// kernel: tpu_custom_call.1
$region0: #{tpu_custom_call.1}
  #allocation0 [shape = 'u32[]', space=smem, size = 0x4, offset = 0x4, fixed_abs, tag = 'smem constant byte address 0x4 - core index']
  #allocation1 [shape = 'u32[72,128]{1,0:T(1,128)}', space=vmem, size = 0x9000, scoped, tag = 'internal scratch']
  %s0 = inlined_call_operand.hbm [shape: f32[3,1024], index: 0, kind: input, shape index: {}]
  %s1 = inlined_call_operand.hbm [shape: f32[4,8,16], index: 1, kind: input, shape index: {}]
  %s2 = inlined_call_operand.hbm [shape: f32[8,16,64], index: 2, kind: input, shape index: {}]
  %s3 = inlined_call_operand.hbm [shape: f32[24,1024], index: 3, kind: output, shape index: {}]
  %s4 = sld [smem:[#allocation0]]
  $region57: #{tpu_custom_call.1} parent=0
    _
  %s6 = ssub.s32 1, %s4
  %s7 = scalar_select 0, %s6, %s4
  $region1: #{tpu_custom_call.1} parent=0
    #allocation2 [shape = 'u8[16384]{0}', space=vmem, size = 0x4000, scoped, tag = 'input window, operand 0']
    #allocation3 [shape = 's32[2]{0}', space=sflag, size = 0x8, scoped, tag = 'scoped memory for tpu_custom_call.1']
    #allocation4 [shape = 's32[2]{0}', space=sflag, size = 0x8, scoped, tag = 'scoped memory for tpu_custom_call.1']
    #allocation5 [shape = 'u8[16384]{0}', space=vmem, size = 0x4000, scoped, tag = 'input window, operand 1, single buffered']
    #allocation6 [shape = 's32[1]{0}', space=sflag, size = 0x4, scoped, tag = 'scoped memory for tpu_custom_call.1']
    #allocation7 [shape = 'u8[65536]{0}', space=vmem, size = 0x10000, scoped, tag = 'input window, operand 2, single buffered']
    #allocation8 [shape = 'u8[98304]{0}', space=vmem, size = 0x18000, scoped, tag = 'output window, operand 0']
    %8 = vsyncpa [#allocation3], 0
    %s9 = scalar_lea.sflag [#allocation3], 1
    %10 = vsyncpa %s9, 0
    %11 = vsyncpa [#allocation6], 0
    %12 = vsyncpa [#allocation4], 0
    %s13 = scalar_lea.sflag [#allocation4], 1
    %14 = vsyncpa %s13, 0
    loop: start=0, step=1, limit=4
    $region2: #{tpu_custom_call.1} parent=1 // loop_pre_header
      _
    $region3: #{tpu_custom_call.1} parent=1 // loop_header
      %s16 = sphi 0, %s20
      %p17 = scmp.ge.s32.totalorder %s16, 4
      %s26 = sphi 0, %s28
      %s29 = sphi 0, %s26
      %s30 = sphi 0, %s29
      %s46 = sphi 0, %s30
      %s50 = sphi 0, %s50
      %s52 = sphi 0, %s50
      %s53 = sphi 0, %s52
      %s67 = sphi 0, %s53
      %s71 = sphi 0, %s71
      %s73 = sphi 0, %s71
      %s74 = sphi 0, %s73
      %s88 = sphi 0, %s74
      %s94 = sphi 0, %s96
      %s97 = sphi 0, %s94
      %s98 = sphi 0, %s97
      %s114 = sphi 0, %s98
    $region4: #{tpu_custom_call.1} parent=1 // loop_header_branch
      %19 = sbr.rel (%p17) target = $region8
    $region5: #{tpu_custom_call.1} parent=1 // loop_body
      %s21 = ssub.s32 %s16, 1
      %s22 = ssub.s32 %s16, 2
      %s23 = sadd.s32 %s16, 1
      %s24 = ssub.s32 %s16, %s23
      %p25 = scmp.eq.s32.totalorder %s24, 0
      %s27 = sadd.s32 %s26, 1
      %s28 = scalar_select %p25, %s26, %s27
      %p31 = pneg %p25
      %p32 = scmp.eq.s32.totalorder %s16, 1
      %p33 = por %p31, %p32
      %p34 = scmp.ne.s32.totalorder %s26, %s29
      %p35 = scmp.eq.s32.totalorder %s16, 0
      %p36 = por %p34, %p35
      %p37 = scmp.ne.s32.totalorder %s26, %s29
      %p38 = scmp.eq.s32.totalorder %s21, 1
      %p39 = por %p37, %p38
      %p40 = scmp.ne.s32.totalorder %s29, %s30
      %p41 = scmp.eq.s32.totalorder %s21, 0
      %p42 = por %p40, %p41
      %p43 = scmp.ne.s32.totalorder %s29, %s30
      %p44 = scmp.eq.s32.totalorder %s22, 1
      %p45 = por %p43, %p44
      %p47 = scmp.ne.s32.totalorder %s30, %s46
      %p48 = scmp.eq.s32.totalorder %s22, 0
      %p49 = por %p47, %p48
      %s51 = sadd.s32 %s50, 1
      %p54 = scmp.eq.s32.totalorder %s16, 1
      %p55 = scmp.ne.s32.totalorder %s50, %s52
      %p56 = scmp.eq.s32.totalorder %s16, 0
      %p57 = por %p55, %p56
      %p58 = scmp.ne.s32.totalorder %s50, %s52
      %p59 = scmp.eq.s32.totalorder %s21, 1
      %p60 = por %p58, %p59
      %p61 = scmp.ne.s32.totalorder %s52, %s53
      %p62 = scmp.eq.s32.totalorder %s21, 0
      %p63 = por %p61, %p62
      %p64 = scmp.ne.s32.totalorder %s52, %s53
      %p65 = scmp.eq.s32.totalorder %s22, 1
      %p66 = por %p64, %p65
      %p68 = scmp.ne.s32.totalorder %s53, %s67
      %p69 = scmp.eq.s32.totalorder %s22, 0
      %p70 = por %p68, %p69
      %s72 = sadd.s32 %s71, 1
      %p75 = scmp.eq.s32.totalorder %s16, 1
      %p76 = scmp.ne.s32.totalorder %s71, %s73
      %p77 = scmp.eq.s32.totalorder %s16, 0
      %p78 = por %p76, %p77
      %p79 = scmp.ne.s32.totalorder %s71, %s73
      %p80 = scmp.eq.s32.totalorder %s21, 1
      %p81 = por %p79, %p80
      %p82 = scmp.ne.s32.totalorder %s73, %s74
      %p83 = scmp.eq.s32.totalorder %s21, 0
      %p84 = por %p82, %p83
      %p85 = scmp.ne.s32.totalorder %s73, %s74
      %p86 = scmp.eq.s32.totalorder %s22, 1
      %p87 = por %p85, %p86
      %p89 = scmp.ne.s32.totalorder %s74, %s88
      %p90 = scmp.eq.s32.totalorder %s22, 0
      %p91 = por %p89, %p90
      %s92 = ssub.s32 %s16, %s23
      %p93 = scmp.eq.s32.totalorder %s92, 0
      %s95 = sadd.s32 %s94, 1
      %s96 = scalar_select %p93, %s94, %s95
      %p99 = pneg %p93
      %p100 = scmp.eq.s32.totalorder %s16, 1
      %p101 = por %p99, %p100
      %p102 = scmp.ne.s32.totalorder %s94, %s97
      %p103 = scmp.eq.s32.totalorder %s16, 0
      %p104 = por %p102, %p103
      %p105 = scmp.ne.s32.totalorder %s94, %s97
      %p106 = scmp.eq.s32.totalorder %s21, 1
      %p107 = por %p105, %p106
      %p108 = scmp.ne.s32.totalorder %s97, %s98
      %p109 = scmp.eq.s32.totalorder %s21, 0
      %p110 = por %p108, %p109
      %p111 = scmp.ne.s32.totalorder %s97, %s98
      %p112 = scmp.eq.s32.totalorder %s22, 1
      %p113 = por %p111, %p112
      %p115 = scmp.ne.s32.totalorder %s98, %s114
      %p116 = scmp.eq.s32.totalorder %s22, 0
      %p117 = por %p115, %p116
      %p118 = scmp.le.s32.totalorder 1, %s16
      %p119 = scmp.lt.s32.totalorder %s16, 3
      %p120 = pnand %p118, %p119
      %p121 = pneg %p120
      // Predicated region
      $region9: #{tpu_custom_call.1} parent=5 // pred_check
        _
      $region10: #{tpu_custom_call.1} parent=5 // pred_check_branch
        %123 = sbr.rel (%p120) target = $region12
      $region11: #{tpu_custom_call.1} parent=5 // pred_region
        %s124 = ssub.s32 %s16, 1
        // Predicated region
        $region13: #{tpu_custom_call.1} parent=11 // pred_check
          %p125 = pneg %p63
        $region14: #{tpu_custom_call.1} parent=11 // pred_check_branch
          %127 = sbr.rel (%p125) target = $region16
        $region15: #{tpu_custom_call.1} parent=11 // pred_region
          %129 = vsyncadd [#allocation6], 0
          %s130 = sshll.u32 %s1, 4
          %s131 = int_to_ptr.hbm [resolvable:$true] %s130
          %s132 = sshll.u32 [#allocation5], 4
          %s133 = int_to_ptr.vmem [resolvable:$true] %s132
          %138 = dma.hbm_to_vmem [thread:$0]  %s131, 512, %s133, [#allocation6], 128, 128, 8
        $region16: #{tpu_custom_call.1} parent=11 // pred_fallthru
          _
        // Predicated region
        $region17: #{tpu_custom_call.1} parent=11 // pred_check
          %p139 = pneg %p84
        $region18: #{tpu_custom_call.1} parent=11 // pred_check_branch
          %141 = sbr.rel (%p139) target = $region20
        $region19: #{tpu_custom_call.1} parent=11 // pred_region
          %143 = vsyncadd [#allocation6], 0
          %s144 = sshll.u32 %s2, 4
          %s145 = int_to_ptr.hbm [resolvable:$true] %s144
          %s146 = sshll.u32 [#allocation7], 4
          %s147 = int_to_ptr.vmem [resolvable:$true] %s146
          %152 = dma.hbm_to_vmem [thread:$0]  %s145, 2048, %s147, [#allocation6], 128, 128, 8
        $region20: #{tpu_custom_call.1} parent=11 // pred_fallthru
          _
      $region12: #{tpu_custom_call.1} parent=5 // pred_fallthru
        _
      %p153 = scmp.lt.s32.totalorder %s16, 2
      // Predicated region
      $region21: #{tpu_custom_call.1} parent=5 // pred_check
        %p154 = pneg %p153
      $region22: #{tpu_custom_call.1} parent=5 // pred_check_branch
        %156 = sbr.rel (%p154) target = $region24
      $region23: #{tpu_custom_call.1} parent=5 // pred_region
        // Predicated region
        $region25: #{tpu_custom_call.1} parent=23 // pred_check
          %p157 = pneg %p36
        $region26: #{tpu_custom_call.1} parent=23 // pred_check_branch
          %159 = sbr.rel (%p157) target = $region28
        $region27: #{tpu_custom_call.1} parent=23 // pred_region
          %s160 = sand.u32 %s26, 1
          %s161 = scalar_lea.sflag [#allocation3], %s160
          %s162 = sand.u32 %s26, 1
          %s163 = smul.addr %s162, 16
          %s164 = scalar_lea.vmem [#allocation2], %s163
          %s165 = smul.u32 4, %s16
          %167 = vsyncadd %s161, 0
          %s168 = smul.addr %s165, 4
          %s169 = scalar_lea.hbm %s0, %s168
          %s171 = sshll.u32 %s169, 4
          %s172 = int_to_ptr.hbm [resolvable:$true] %s171
          %s173 = sshll.u32 %s164, 4
          %s174 = int_to_ptr.vmem [resolvable:$true] %s173
          %176 = dma.hbm_to_vmem [thread:$0]  %s172, 256, %s174, %s161
        $region28: #{tpu_custom_call.1} parent=23 // pred_fallthru
          _
      $region24: #{tpu_custom_call.1} parent=5 // pred_fallthru
        _
      %p177 = scmp.le.s32.totalorder 1, %s16
      %p178 = scmp.lt.s32.totalorder %s16, 3
      %p179 = pnand %p177, %p178
      %p180 = pneg %p179
      // Predicated region
      $region29: #{tpu_custom_call.1} parent=5 // pred_check
        _
      $region30: #{tpu_custom_call.1} parent=5 // pred_check_branch
        %182 = sbr.rel (%p179) target = $region32
      $region31: #{tpu_custom_call.1} parent=5 // pred_region
        %s183 = ssub.s32 %s16, 1
        %s184 = sand.u32 %s29, 1
        %s185 = scalar_lea.sflag [#allocation3], %s184
        %s186 = sand.u32 %s29, 1
        %s187 = smul.addr %s186, 16
        %s188 = scalar_lea.vmem [#allocation2], %s187
        // Predicated region
        $region33: #{tpu_custom_call.1} parent=31 // pred_check
          %p189 = pneg %p42
        $region34: #{tpu_custom_call.1} parent=31 // pred_check_branch
          %191 = sbr.rel (%p189) target = $region36
        $region35: #{tpu_custom_call.1} parent=31 // pred_region
          %193 = dma.done %s185, 256
        $region36: #{tpu_custom_call.1} parent=31 // pred_fallthru
          _
        // Predicated region
        $region37: #{tpu_custom_call.1} parent=31 // pred_check
          %p194 = pneg %p63
        $region38: #{tpu_custom_call.1} parent=31 // pred_check_branch
          %196 = sbr.rel (%p194) target = $region40
        $region39: #{tpu_custom_call.1} parent=31 // pred_region
          %198 = dma.done [#allocation6], 512
        $region40: #{tpu_custom_call.1} parent=31 // pred_fallthru
          _
        // Predicated region
        $region41: #{tpu_custom_call.1} parent=31 // pred_check
          %p199 = pneg %p84
        $region42: #{tpu_custom_call.1} parent=31 // pred_check_branch
          %201 = sbr.rel (%p199) target = $region44
        $region43: #{tpu_custom_call.1} parent=31 // pred_region
          %203 = dma.done [#allocation6], 2048
        $region44: #{tpu_custom_call.1} parent=31 // pred_fallthru
          _
        %s204 = sand.u32 %s29, 1
        %s205 = scalar_lea.sflag [#allocation3], %s204
        %s206 = sand.u32 %s29, 1
        %s207 = smul.addr %s206, 16
        %s208 = scalar_lea.vmem [#allocation2], %s207
        %p209 = pneg %p42
        %p210 = pneg %p39
        %p211 = pneg %p63
        %p212 = pneg %p60
        %p213 = pneg %p84
        %p214 = pneg %p81
        %p215 = pneg %p110
        %p216 = pneg %p107
        %s217 = sand.u32 %s97, 1
        %s218 = scalar_lea.sflag [#allocation4], %s217
        %s219 = sand.u32 %s97, 1
        %s220 = smul.addr %s219, 96
        %s221 = scalar_lea.vmem [#allocation8], %s220
        %s222 = smul.u32 4, %s21
        %s223 = smul.u32 4, %s21
        %v224 = vld [vmem:[%s188] ss:$4 sm:$0xf]
        %v225 = vmax.f32 %v224, -1.0
        %v226 = vmin.f32 %v225, 1.0
        %s227 = scalar_lea.vmem %s188, 1 [#allocation2]
        %v228 = vld [vmem:[%s227] ss:$4 sm:$0xf]
        %v229 = vmax.f32 %v228, -1.0
        %v230 = vmin.f32 %v229, 1.0
        %s231 = scalar_lea.vmem %s188, 2 [#allocation2]
        %v232 = vld [vmem:[%s231] ss:$4 sm:$0xf]
        %v233 = vmax.f32 %v232, -1.0
        %v234 = vmin.f32 %v233, 1.0
        %v235 = vadd.f32 %v226, 1.0
        %v236 = vmul.f32 %v235, 1.5
        %v237 = vadd.f32 %v230, 1.0
        %v238 = vmul.f32 %v237, 1.5
        %v239 = vadd.f32 %v234, 1.0
        %v240 = vmul.f32 %v239, 1.5
        %v241 = vlaneseq
        %v242 = vshrl.u32 %v241, 7
        %v243 = vcvt.s32.f32 %v242
        %v245 = vperm.slane %v236, 0
        %v246 = vperm.slane %v236, 1
        %v247 = vperm.slane %v236, 2
        %v248 = vperm.slane %v236, 3
        %v253 = vsub.f32 %v245, %v243
        %v254 = vsub.f32 %v246, %v243
        %v255 = vsub.f32 %v247, %v243
        %v256 = vsub.f32 %v248, %v243
        %v257 = vand.u32 2147483647, %v253
        %v258 = vand.u32 2147483647, %v254
        %v259 = vand.u32 2147483647, %v255
        %v260 = vand.u32 2147483647, %v256
        %v261 = vsub.f32 1.0, %v257
        %v262 = vsub.f32 1.0, %v258
        %v263 = vsub.f32 1.0, %v259
        %v264 = vsub.f32 1.0, %v260
        %v265 = vmax.f32 %v261, 0.0
        %v266 = vmax.f32 %v262, 0.0
        %v267 = vmax.f32 %v263, 0.0
        %v268 = vmax.f32 %v264, 0.0
        %v270 = vperm.slane %v238, 0
        %v271 = vperm.slane %v238, 1
        %v272 = vperm.slane %v238, 2
        %v273 = vperm.slane %v238, 3
        %v278 = vsub.f32 %v270, %v243
        %v279 = vsub.f32 %v271, %v243
        %v280 = vsub.f32 %v272, %v243
        %v281 = vsub.f32 %v273, %v243
        %v282 = vand.u32 2147483647, %v278
        %v283 = vand.u32 2147483647, %v279
        %v284 = vand.u32 2147483647, %v280
        %v285 = vand.u32 2147483647, %v281
        %v286 = vsub.f32 1.0, %v282
        %v287 = vsub.f32 1.0, %v283
        %v288 = vsub.f32 1.0, %v284
        %v289 = vsub.f32 1.0, %v285
        %v290 = vmax.f32 %v286, 0.0
        %v291 = vmax.f32 %v287, 0.0
        %v292 = vmax.f32 %v288, 0.0
        %v293 = vmax.f32 %v289, 0.0
        %v294 = vand.u32 2147483647, %v240
        %v295 = vsub.f32 1.0, %v294
        %v296 = vmax.f32 %v295, 0.0
        %v298 = vperm.slane %v296, 0
        %v299 = vperm.slane %v296, 1
        %v300 = vperm.slane %v296, 2
        %v301 = vperm.slane %v296, 3
        %v306 = vmul.f32 %v298, %v290
        %v307 = vmul.f32 %v299, %v291
        %v308 = vmul.f32 %v300, %v292
        %v309 = vmul.f32 %v301, %v293
        %v314 = vrot.slane %v307, 7
        %v315 = vrot.slane %v308, 6
        %v316 = vrot.slane %v309, 5
        %vm317 = vcmask 1040384
        %v318 = vsel %vm317, %v306, %v314
        %vm319 = vcmask 1042434
        %v320 = vsel %vm319, %v315, %v316
        %vm321 = vcmask 1041408
        %v322 = vsel %vm321, %v318, %v320
        %vm323 = vcmask 1041409
        %v324 = vsel %vm323, %v306, %v314
        %vm325 = vcmask 1043459
        %v326 = vsel %vm325, %v315, %v316
        %vm327 = vcmask 1042433
        %v328 = vsel %vm327, %v324, %v326
        %v329 = vrot.slane %v328, 1
        %v330 = vsel %vm319, %v306, %v314
        %vm331 = vcmask 1044484
        %v332 = vsel %vm331, %v315, %v316
        %vm333 = vcmask 1043458
        %v334 = vsel %vm333, %v330, %v332
        %v335 = vrot.slane %v334, 2
        %v336 = vsel %vm325, %v306, %v314
        %vm337 = vcmask 1045509
        %v338 = vsel %vm337, %v315, %v316
        %vm339 = vcmask 1044483
        %v340 = vsel %vm339, %v336, %v338
        %v341 = vrot.slane %v340, 3
        %v342 = vperm.slane %v322, 0
        %v343 = vperm.slane %v322, 1
        %v344 = vperm.slane %v322, 2
        %v345 = vperm.slane %v322, 3
        %v346 = vperm.slane %v329, 0
        %v347 = vperm.slane %v329, 1
        %v348 = vperm.slane %v329, 2
        %v349 = vperm.slane %v329, 3
        %v350 = vperm.slane %v335, 0
        %v351 = vperm.slane %v335, 1
        %v352 = vperm.slane %v335, 2
        %v353 = vperm.slane %v335, 3
        %v354 = vperm.slane %v341, 0
        %v355 = vperm.slane %v341, 1
        %v356 = vperm.slane %v341, 2
        %v357 = vperm.slane %v341, 3
        %v374 = vmul.f32 %v342, %v265
        %v375 = vmul.f32 %v343, %v266
        %v376 = vmul.f32 %v344, %v267
        %v377 = vmul.f32 %v345, %v268
        %v378 = vmul.f32 %v346, %v265
        %v379 = vmul.f32 %v347, %v266
        %v380 = vmul.f32 %v348, %v267
        %v381 = vmul.f32 %v349, %v268
        %v382 = vmul.f32 %v350, %v265
        %v383 = vmul.f32 %v351, %v266
        %v384 = vmul.f32 %v352, %v267
        %v385 = vmul.f32 %v353, %v268
        %v386 = vmul.f32 %v354, %v265
        %v387 = vmul.f32 %v355, %v266
        %v388 = vmul.f32 %v356, %v267
        %v389 = vmul.f32 %v357, %v268
        %v406 = vrot.slane %v375, 4
        %v407 = vrot.slane %v377, 4
        %v408 = vrot.slane %v379, 4
        %v409 = vrot.slane %v381, 4
        %v410 = vrot.slane %v383, 4
        %v411 = vrot.slane %v385, 4
        %v412 = vrot.slane %v387, 4
        %v413 = vrot.slane %v389, 4
        %vm414 = vcmask 1043456
        %v415 = vsel %vm414, %v374, %v406
        %v416 = vsel %vm414, %v376, %v407
        %v417 = vsel %vm414, %v378, %v408
        %v418 = vsel %vm414, %v380, %v409
        %v419 = vsel %vm414, %v382, %v410
        %v420 = vsel %vm414, %v384, %v411
        %v421 = vsel %vm414, %v386, %v412
        %v422 = vsel %vm414, %v388, %v413
        %v423 = vld [vmem:[#allocation5] sm:$0xff]
        %v424 = vsub.f32 %v240, 1.0
        %v425 = vand.u32 2147483647, %v424
        %v426 = vsub.f32 1.0, %v425
        %v427 = vmax.f32 %v426, 0.0
        %v429 = vperm.slane %v427, 0
        %v430 = vperm.slane %v427, 1
        %v431 = vperm.slane %v427, 2
        %v432 = vperm.slane %v427, 3
        %v437 = vmul.f32 %v429, %v290
        %v438 = vmul.f32 %v430, %v291
        %v439 = vmul.f32 %v431, %v292
        %v440 = vmul.f32 %v432, %v293
        %v445 = vrot.slane %v438, 7
        %v446 = vrot.slane %v439, 6
        %v447 = vrot.slane %v440, 5
        %v448 = vsel %vm317, %v437, %v445
        %v449 = vsel %vm319, %v446, %v447
        %v450 = vsel %vm321, %v448, %v449
        %v451 = vsel %vm323, %v437, %v445
        %v452 = vsel %vm325, %v446, %v447
        %v453 = vsel %vm327, %v451, %v452
        %v454 = vrot.slane %v453, 1
        %v455 = vsel %vm319, %v437, %v445
        %v456 = vsel %vm331, %v446, %v447
        %v457 = vsel %vm333, %v455, %v456
        %v458 = vrot.slane %v457, 2
        %v459 = vsel %vm325, %v437, %v445
        %v460 = vsel %vm337, %v446, %v447
        %v461 = vsel %vm339, %v459, %v460
        %v462 = vrot.slane %v461, 3
        %v463 = vperm.slane %v450, 0
        %v464 = vperm.slane %v450, 1
        %v465 = vperm.slane %v450, 2
        %v466 = vperm.slane %v450, 3
        %v467 = vperm.slane %v454, 0
        %v468 = vperm.slane %v454, 1
        %v469 = vperm.slane %v454, 2
        %v470 = vperm.slane %v454, 3
        %v471 = vperm.slane %v458, 0
        %v472 = vperm.slane %v458, 1
        %v473 = vperm.slane %v458, 2
        %v474 = vperm.slane %v458, 3
        %v475 = vperm.slane %v462, 0
        %v476 = vperm.slane %v462, 1
        %v477 = vperm.slane %v462, 2
        %v478 = vperm.slane %v462, 3
        %v495 = vmul.f32 %v463, %v265
        %v496 = vmul.f32 %v464, %v266
        %v497 = vmul.f32 %v465, %v267
        %v498 = vmul.f32 %v466, %v268
        %v499 = vmul.f32 %v467, %v265
        %v500 = vmul.f32 %v468, %v266
        %v501 = vmul.f32 %v469, %v267
        %v502 = vmul.f32 %v470, %v268
        %v503 = vmul.f32 %v471, %v265
        %v504 = vmul.f32 %v472, %v266
        %v505 = vmul.f32 %v473, %v267
        %v506 = vmul.f32 %v474, %v268
        %v507 = vmul.f32 %v475, %v265
        %v508 = vmul.f32 %v476, %v266
        %v509 = vmul.f32 %v477, %v267
        %v510 = vmul.f32 %v478, %v268
        %v527 = vrot.slane %v496, 4
        %v528 = vrot.slane %v498, 4
        %v529 = vrot.slane %v500, 4
        %v530 = vrot.slane %v502, 4
        %v531 = vrot.slane %v504, 4
        %v532 = vrot.slane %v506, 4
        %v533 = vrot.slane %v508, 4
        %v534 = vrot.slane %v510, 4
        %v535 = vsel %vm414, %v495, %v527
        %v536 = vsel %vm414, %v497, %v528
        %v537 = vsel %vm414, %v499, %v529
        %v538 = vsel %vm414, %v501, %v530
        %v539 = vsel %vm414, %v503, %v531
        %v540 = vsel %vm414, %v505, %v532
        %v541 = vsel %vm414, %v507, %v533
        %v542 = vsel %vm414, %v509, %v534
        %s543 = scalar_lea.vmem [#allocation5], 8
        %v544 = vld [vmem:[%s543] sm:$0xff]
        %545 = vst [vmem:[#allocation1] ss:$2 sm:$0xff] %v535
        %s546 = scalar_lea.vmem [#allocation1], 1
        %547 = vst [vmem:[%s546] ss:$2 sm:$0xff] %v537
        %s548 = scalar_lea.vmem [#allocation1], 16
        %549 = vst [vmem:[%s548] ss:$2 sm:$0xff] %v536
        %s550 = scalar_lea.vmem [#allocation1], 17
        %551 = vst [vmem:[%s550] ss:$2 sm:$0xff] %v538
        %s552 = scalar_lea.vmem [#allocation1], 32
        %553 = vst [vmem:[%s552] ss:$2 sm:$0xff] %v539
        %s554 = scalar_lea.vmem [#allocation1], 33
        %555 = vst [vmem:[%s554] ss:$2 sm:$0xff] %v541
        %s556 = scalar_lea.vmem [#allocation1], 48
        %557 = vst [vmem:[%s556] ss:$2 sm:$0xff] %v540
        %s558 = scalar_lea.vmem [#allocation1], 49
        %559 = vst [vmem:[%s558] ss:$2 sm:$0xff] %v542
        %v560 = vld.sshfl [vmem:[#allocation1] sm:$0xff pattern:$0x75316420]
        %v561 = vld.sshfl [vmem:[#allocation1 + $0x8] sm:$0xff pattern:$0x75316420]
        %v562 = vld.sshfl [vmem:[#allocation1 + $0x10] sm:$0xff pattern:$0x75316420]
        %v563 = vld.sshfl [vmem:[#allocation1 + $0x18] sm:$0xff pattern:$0x75316420]
        %v564 = vld.sshfl [vmem:[#allocation1 + $0x20] sm:$0xff pattern:$0x75316420]
        %v565 = vld.sshfl [vmem:[#allocation1 + $0x28] sm:$0xff pattern:$0x75316420]
        %v566 = vld.sshfl [vmem:[#allocation1 + $0x30] sm:$0xff pattern:$0x75316420]
        %v567 = vld.sshfl [vmem:[#allocation1 + $0x38] sm:$0xff pattern:$0x75316420]
        %vm576 = vcmask 130048
        %v578 = vsel %vm576, %v544, 0
        %580 = vmatpush.msra.mxu0 0.0
        %581 = vmatpush.msra.mxu0 0.0
        %582 = vmatpush.msra.mxu0 0.0
        %583 = vmatpush.msra.mxu0 0.0
        %584 = vmatpush.msra.mxu0 0.0
        %585 = vmatpush.msra.mxu0 0.0
        %586 = vmatpush.msra.mxu0 0.0
        %587 = vmatpush.msra.mxu0 0.0
        %588 = vmatpush.msra.mxu0 0.0
        %589 = vmatpush.msra.mxu0 0.0
        %590 = vmatpush.msra.mxu0 0.0
        %591 = vmatpush.msra.mxu0 0.0
        %592 = vmatpush.msra.mxu0 0.0
        %593 = vmatpush.msra.mxu0 0.0
        %594 = vmatpush.msra.mxu0 %v564
        %595 = vmatpush.msra.mxu0 %v560
        %596 = vmatmul.f32.gmra.mxu0 %v578
        %v597 = vpop.f32.mrf.mxu0
        %v598 = vadd.f32 0.0, %v597
        %599 = vdwg.mxu0
        %600 = vmatpush.msra.mxu0 0.0
        %601 = vmatpush.msra.mxu0 0.0
        %602 = vmatpush.msra.mxu0 0.0
        %603 = vmatpush.msra.mxu0 0.0
        %604 = vmatpush.msra.mxu0 0.0
        %605 = vmatpush.msra.mxu0 0.0
        %606 = vmatpush.msra.mxu0 0.0
        %607 = vmatpush.msra.mxu0 0.0
        %608 = vmatpush.msra.mxu0 0.0
        %609 = vmatpush.msra.mxu0 0.0
        %610 = vmatpush.msra.mxu0 0.0
        %611 = vmatpush.msra.mxu0 0.0
        %612 = vmatpush.msra.mxu0 0.0
        %613 = vmatpush.msra.mxu0 0.0
        %614 = vmatpush.msra.mxu0 %v565
        %615 = vmatpush.msra.mxu0 %v561
        %616 = vmatmul.f32.gmra.mxu0 %v578
        %v617 = vpop.f32.mrf.mxu0
        %v618 = vadd.f32 0.0, %v617
        %619 = vdwg.mxu0
        %620 = vmatpush.msra.mxu0 0.0
        %621 = vmatpush.msra.mxu0 0.0
        %622 = vmatpush.msra.mxu0 0.0
        %623 = vmatpush.msra.mxu0 0.0
        %624 = vmatpush.msra.mxu0 0.0
        %625 = vmatpush.msra.mxu0 0.0
        %626 = vmatpush.msra.mxu0 0.0
        %627 = vmatpush.msra.mxu0 0.0
        %628 = vmatpush.msra.mxu0 0.0
        %629 = vmatpush.msra.mxu0 0.0
        %630 = vmatpush.msra.mxu0 0.0
        %631 = vmatpush.msra.mxu0 0.0
        %632 = vmatpush.msra.mxu0 0.0
        %633 = vmatpush.msra.mxu0 0.0
        %634 = vmatpush.msra.mxu0 %v566
        %635 = vmatpush.msra.mxu0 %v562
        %636 = vmatmul.f32.gmra.mxu0 %v578
        %v637 = vpop.f32.mrf.mxu0
        %v638 = vadd.f32 0.0, %v637
        %639 = vdwg.mxu0
        %640 = vmatpush.msra.mxu0 0.0
        %641 = vmatpush.msra.mxu0 0.0
        %642 = vmatpush.msra.mxu0 0.0
        %643 = vmatpush.msra.mxu0 0.0
        %644 = vmatpush.msra.mxu0 0.0
        %645 = vmatpush.msra.mxu0 0.0
        %646 = vmatpush.msra.mxu0 0.0
        %647 = vmatpush.msra.mxu0 0.0
        %648 = vmatpush.msra.mxu0 0.0
        %649 = vmatpush.msra.mxu0 0.0
        %650 = vmatpush.msra.mxu0 0.0
        %651 = vmatpush.msra.mxu0 0.0
        %652 = vmatpush.msra.mxu0 0.0
        %653 = vmatpush.msra.mxu0 0.0
        %654 = vmatpush.msra.mxu0 %v567
        %655 = vmatpush.msra.mxu0 %v563
        %656 = vmatmul.f32.gmra.mxu0 %v578
        %v657 = vpop.f32.mrf.mxu0
        %v658 = vadd.f32 0.0, %v657
        %659 = vdwg.mxu0
        %660 = vst [vmem:[#allocation1] ss:$2 sm:$0xff] %v415
        %s661 = scalar_lea.vmem [#allocation1], 1
        %662 = vst [vmem:[%s661] ss:$2 sm:$0xff] %v417
        %s663 = scalar_lea.vmem [#allocation1], 16
        %664 = vst [vmem:[%s663] ss:$2 sm:$0xff] %v416
        %s665 = scalar_lea.vmem [#allocation1], 17
        %666 = vst [vmem:[%s665] ss:$2 sm:$0xff] %v418
        %s667 = scalar_lea.vmem [#allocation1], 32
        %668 = vst [vmem:[%s667] ss:$2 sm:$0xff] %v419
        %s669 = scalar_lea.vmem [#allocation1], 33
        %670 = vst [vmem:[%s669] ss:$2 sm:$0xff] %v421
        %s671 = scalar_lea.vmem [#allocation1], 48
        %672 = vst [vmem:[%s671] ss:$2 sm:$0xff] %v420
        %s673 = scalar_lea.vmem [#allocation1], 49
        %674 = vst [vmem:[%s673] ss:$2 sm:$0xff] %v422
        %v675 = vld.sshfl [vmem:[#allocation1] sm:$0xff pattern:$0x75316420]
        %v676 = vld.sshfl [vmem:[#allocation1 + $0x8] sm:$0xff pattern:$0x75316420]
        %v677 = vld.sshfl [vmem:[#allocation1 + $0x10] sm:$0xff pattern:$0x75316420]
        %v678 = vld.sshfl [vmem:[#allocation1 + $0x18] sm:$0xff pattern:$0x75316420]
        %v679 = vld.sshfl [vmem:[#allocation1 + $0x20] sm:$0xff pattern:$0x75316420]
        %v680 = vld.sshfl [vmem:[#allocation1 + $0x28] sm:$0xff pattern:$0x75316420]
        %v681 = vld.sshfl [vmem:[#allocation1 + $0x30] sm:$0xff pattern:$0x75316420]
        %v682 = vld.sshfl [vmem:[#allocation1 + $0x38] sm:$0xff pattern:$0x75316420]
        %v692 = vsel %vm576, %v423, 0
        %694 = vmatpush.msra.mxu0 0.0
        %695 = vmatpush.msra.mxu0 0.0
        %696 = vmatpush.msra.mxu0 0.0
        %697 = vmatpush.msra.mxu0 0.0
        %698 = vmatpush.msra.mxu0 0.0
        %699 = vmatpush.msra.mxu0 0.0
        %700 = vmatpush.msra.mxu0 0.0
        %701 = vmatpush.msra.mxu0 0.0
        %702 = vmatpush.msra.mxu0 0.0
        %703 = vmatpush.msra.mxu0 0.0
        %704 = vmatpush.msra.mxu0 0.0
        %705 = vmatpush.msra.mxu0 0.0
        %706 = vmatpush.msra.mxu0 0.0
        %707 = vmatpush.msra.mxu0 0.0
        %708 = vmatpush.msra.mxu0 %v679
        %709 = vmatpush.msra.mxu0 %v675
        %710 = vmatmul.f32.gmra.mxu0 %v692
        %v711 = vpop.f32.mrf.mxu0
        %v712 = vadd.f32 %v598, %v711
        %713 = vdwg.mxu0
        %714 = vmatpush.msra.mxu0 0.0
        %715 = vmatpush.msra.mxu0 0.0
        %716 = vmatpush.msra.mxu0 0.0
        %717 = vmatpush.msra.mxu0 0.0
        %718 = vmatpush.msra.mxu0 0.0
        %719 = vmatpush.msra.mxu0 0.0
        %720 = vmatpush.msra.mxu0 0.0
        %721 = vmatpush.msra.mxu0 0.0
        %722 = vmatpush.msra.mxu0 0.0
        %723 = vmatpush.msra.mxu0 0.0
        %724 = vmatpush.msra.mxu0 0.0
        %725 = vmatpush.msra.mxu0 0.0
        %726 = vmatpush.msra.mxu0 0.0
        %727 = vmatpush.msra.mxu0 0.0
        %728 = vmatpush.msra.mxu0 %v680
        %729 = vmatpush.msra.mxu0 %v676
        %730 = vmatmul.f32.gmra.mxu0 %v692
        %v731 = vpop.f32.mrf.mxu0
        %v732 = vadd.f32 %v618, %v731
        %733 = vdwg.mxu0
        %734 = vmatpush.msra.mxu0 0.0
        %735 = vmatpush.msra.mxu0 0.0
        %736 = vmatpush.msra.mxu0 0.0
        %737 = vmatpush.msra.mxu0 0.0
        %738 = vmatpush.msra.mxu0 0.0
        %739 = vmatpush.msra.mxu0 0.0
        %740 = vmatpush.msra.mxu0 0.0
        %741 = vmatpush.msra.mxu0 0.0
        %742 = vmatpush.msra.mxu0 0.0
        %743 = vmatpush.msra.mxu0 0.0
        %744 = vmatpush.msra.mxu0 0.0
        %745 = vmatpush.msra.mxu0 0.0
        %746 = vmatpush.msra.mxu0 0.0
        %747 = vmatpush.msra.mxu0 0.0
        %748 = vmatpush.msra.mxu0 %v681
        %749 = vmatpush.msra.mxu0 %v677
        %750 = vmatmul.f32.gmra.mxu0 %v692
        %v751 = vpop.f32.mrf.mxu0
        %v752 = vadd.f32 %v638, %v751
        %753 = vdwg.mxu0
        %754 = vmatpush.msra.mxu0 0.0
        %755 = vmatpush.msra.mxu0 0.0
        %756 = vmatpush.msra.mxu0 0.0
        %757 = vmatpush.msra.mxu0 0.0
        %758 = vmatpush.msra.mxu0 0.0
        %759 = vmatpush.msra.mxu0 0.0
        %760 = vmatpush.msra.mxu0 0.0
        %761 = vmatpush.msra.mxu0 0.0
        %762 = vmatpush.msra.mxu0 0.0
        %763 = vmatpush.msra.mxu0 0.0
        %764 = vmatpush.msra.mxu0 0.0
        %765 = vmatpush.msra.mxu0 0.0
        %766 = vmatpush.msra.mxu0 0.0
        %767 = vmatpush.msra.mxu0 0.0
        %768 = vmatpush.msra.mxu0 %v682
        %769 = vmatpush.msra.mxu0 %v678
        %770 = vmatmul.f32.gmra.mxu0 %v692
        %v771 = vpop.f32.mrf.mxu0
        %v772 = vadd.f32 %v658, %v771
        %773 = vdwg.mxu0
        %v774 = vsub.f32 %v240, 2.0
        %v775 = vand.u32 2147483647, %v774
        %v776 = vsub.f32 1.0, %v775
        %v777 = vmax.f32 %v776, 0.0
        %v779 = vperm.slane %v777, 0
        %v780 = vperm.slane %v777, 1
        %v781 = vperm.slane %v777, 2
        %v782 = vperm.slane %v777, 3
        %v787 = vmul.f32 %v779, %v290
        %v788 = vmul.f32 %v780, %v291
        %v789 = vmul.f32 %v781, %v292
        %v790 = vmul.f32 %v782, %v293
        %v795 = vrot.slane %v788, 7
        %v796 = vrot.slane %v789, 6
        %v797 = vrot.slane %v790, 5
        %v798 = vsel %vm317, %v787, %v795
        %v799 = vsel %vm319, %v796, %v797
        %v800 = vsel %vm321, %v798, %v799
        %v801 = vsel %vm323, %v787, %v795
        %v802 = vsel %vm325, %v796, %v797
        %v803 = vsel %vm327, %v801, %v802
        %v804 = vrot.slane %v803, 1
        %v805 = vsel %vm319, %v787, %v795
        %v806 = vsel %vm331, %v796, %v797
        %v807 = vsel %vm333, %v805, %v806
        %v808 = vrot.slane %v807, 2
        %v809 = vsel %vm325, %v787, %v795
        %v810 = vsel %vm337, %v796, %v797
        %v811 = vsel %vm339, %v809, %v810
        %v812 = vrot.slane %v811, 3
        %v813 = vperm.slane %v800, 0
        %v814 = vperm.slane %v800, 1
        %v815 = vperm.slane %v800, 2
        %v816 = vperm.slane %v800, 3
        %v817 = vperm.slane %v804, 0
        %v818 = vperm.slane %v804, 1
        %v819 = vperm.slane %v804, 2
        %v820 = vperm.slane %v804, 3
        %v821 = vperm.slane %v808, 0
        %v822 = vperm.slane %v808, 1
        %v823 = vperm.slane %v808, 2
        %v824 = vperm.slane %v808, 3
        %v825 = vperm.slane %v812, 0
        %v826 = vperm.slane %v812, 1
        %v827 = vperm.slane %v812, 2
        %v828 = vperm.slane %v812, 3
        %v845 = vmul.f32 %v813, %v265
        %v846 = vmul.f32 %v814, %v266
        %v847 = vmul.f32 %v815, %v267
        %v848 = vmul.f32 %v816, %v268
        %v849 = vmul.f32 %v817, %v265
        %v850 = vmul.f32 %v818, %v266
        %v851 = vmul.f32 %v819, %v267
        %v852 = vmul.f32 %v820, %v268
        %v853 = vmul.f32 %v821, %v265
        %v854 = vmul.f32 %v822, %v266
        %v855 = vmul.f32 %v823, %v267
        %v856 = vmul.f32 %v824, %v268
        %v857 = vmul.f32 %v825, %v265
        %v858 = vmul.f32 %v826, %v266
        %v859 = vmul.f32 %v827, %v267
        %v860 = vmul.f32 %v828, %v268
        %v877 = vrot.slane %v846, 4
        %v878 = vrot.slane %v848, 4
        %v879 = vrot.slane %v850, 4
        %v880 = vrot.slane %v852, 4
        %v881 = vrot.slane %v854, 4
        %v882 = vrot.slane %v856, 4
        %v883 = vrot.slane %v858, 4
        %v884 = vrot.slane %v860, 4
        %v885 = vsel %vm414, %v845, %v877
        %v886 = vsel %vm414, %v847, %v878
        %v887 = vsel %vm414, %v849, %v879
        %v888 = vsel %vm414, %v851, %v880
        %v889 = vsel %vm414, %v853, %v881
        %v890 = vsel %vm414, %v855, %v882
        %v891 = vsel %vm414, %v857, %v883
        %v892 = vsel %vm414, %v859, %v884
        %s893 = scalar_lea.vmem [#allocation5], 16
        %v894 = vld [vmem:[%s893] sm:$0xff]
        %895 = vst [vmem:[#allocation1] ss:$2 sm:$0xff] %v885
        %s896 = scalar_lea.vmem [#allocation1], 1
        %897 = vst [vmem:[%s896] ss:$2 sm:$0xff] %v887
        %s898 = scalar_lea.vmem [#allocation1], 16
        %899 = vst [vmem:[%s898] ss:$2 sm:$0xff] %v886
        %s900 = scalar_lea.vmem [#allocation1], 17
        %901 = vst [vmem:[%s900] ss:$2 sm:$0xff] %v888
        %s902 = scalar_lea.vmem [#allocation1], 32
        %903 = vst [vmem:[%s902] ss:$2 sm:$0xff] %v889
        %s904 = scalar_lea.vmem [#allocation1], 33
        %905 = vst [vmem:[%s904] ss:$2 sm:$0xff] %v891
        %s906 = scalar_lea.vmem [#allocation1], 48
        %907 = vst [vmem:[%s906] ss:$2 sm:$0xff] %v890
        %s908 = scalar_lea.vmem [#allocation1], 49
        %909 = vst [vmem:[%s908] ss:$2 sm:$0xff] %v892
        %v910 = vld.sshfl [vmem:[#allocation1] sm:$0xff pattern:$0x75316420]
        %v911 = vld.sshfl [vmem:[#allocation1 + $0x8] sm:$0xff pattern:$0x75316420]
        %v912 = vld.sshfl [vmem:[#allocation1 + $0x10] sm:$0xff pattern:$0x75316420]
        %v913 = vld.sshfl [vmem:[#allocation1 + $0x18] sm:$0xff pattern:$0x75316420]
        %v914 = vld.sshfl [vmem:[#allocation1 + $0x20] sm:$0xff pattern:$0x75316420]
        %v915 = vld.sshfl [vmem:[#allocation1 + $0x28] sm:$0xff pattern:$0x75316420]
        %v916 = vld.sshfl [vmem:[#allocation1 + $0x30] sm:$0xff pattern:$0x75316420]
        %v917 = vld.sshfl [vmem:[#allocation1 + $0x38] sm:$0xff pattern:$0x75316420]
        %v927 = vsel %vm576, %v894, 0
        %929 = vmatpush.msra.mxu0 0.0
        %930 = vmatpush.msra.mxu0 0.0
        %931 = vmatpush.msra.mxu0 0.0
        %932 = vmatpush.msra.mxu0 0.0
        %933 = vmatpush.msra.mxu0 0.0
        %934 = vmatpush.msra.mxu0 0.0
        %935 = vmatpush.msra.mxu0 0.0
        %936 = vmatpush.msra.mxu0 0.0
        %937 = vmatpush.msra.mxu0 0.0
        %938 = vmatpush.msra.mxu0 0.0
        %939 = vmatpush.msra.mxu0 0.0
        %940 = vmatpush.msra.mxu0 0.0
        %941 = vmatpush.msra.mxu0 0.0
        %942 = vmatpush.msra.mxu0 0.0
        %943 = vmatpush.msra.mxu0 %v914
        %944 = vmatpush.msra.mxu0 %v910
        %945 = vmatmul.f32.gmra.mxu0 %v927
        %v946 = vpop.f32.mrf.mxu0
        %v947 = vadd.f32 0.0, %v946
        %948 = vdwg.mxu0
        %949 = vmatpush.msra.mxu0 0.0
        %950 = vmatpush.msra.mxu0 0.0
        %951 = vmatpush.msra.mxu0 0.0
        %952 = vmatpush.msra.mxu0 0.0
        %953 = vmatpush.msra.mxu0 0.0
        %954 = vmatpush.msra.mxu0 0.0
        %955 = vmatpush.msra.mxu0 0.0
        %956 = vmatpush.msra.mxu0 0.0
        %957 = vmatpush.msra.mxu0 0.0
        %958 = vmatpush.msra.mxu0 0.0
        %959 = vmatpush.msra.mxu0 0.0
        %960 = vmatpush.msra.mxu0 0.0
        %961 = vmatpush.msra.mxu0 0.0
        %962 = vmatpush.msra.mxu0 0.0
        %963 = vmatpush.msra.mxu0 %v915
        %964 = vmatpush.msra.mxu0 %v911
        %965 = vmatmul.f32.gmra.mxu0 %v927
        %v966 = vpop.f32.mrf.mxu0
        %v967 = vadd.f32 0.0, %v966
        %968 = vdwg.mxu0
        %969 = vmatpush.msra.mxu0 0.0
        %970 = vmatpush.msra.mxu0 0.0
        %971 = vmatpush.msra.mxu0 0.0
        %972 = vmatpush.msra.mxu0 0.0
        %973 = vmatpush.msra.mxu0 0.0
        %974 = vmatpush.msra.mxu0 0.0
        %975 = vmatpush.msra.mxu0 0.0
        %976 = vmatpush.msra.mxu0 0.0
        %977 = vmatpush.msra.mxu0 0.0
        %978 = vmatpush.msra.mxu0 0.0
        %979 = vmatpush.msra.mxu0 0.0
        %980 = vmatpush.msra.mxu0 0.0
        %981 = vmatpush.msra.mxu0 0.0
        %982 = vmatpush.msra.mxu0 0.0
        %983 = vmatpush.msra.mxu0 %v916
        %984 = vmatpush.msra.mxu0 %v912
        %985 = vmatmul.f32.gmra.mxu0 %v927
        %v986 = vpop.f32.mrf.mxu0
        %v987 = vadd.f32 0.0, %v986
        %988 = vdwg.mxu0
        %989 = vmatpush.msra.mxu0 0.0
        %990 = vmatpush.msra.mxu0 0.0
        %991 = vmatpush.msra.mxu0 0.0
        %992 = vmatpush.msra.mxu0 0.0
        %993 = vmatpush.msra.mxu0 0.0
        %994 = vmatpush.msra.mxu0 0.0
        %995 = vmatpush.msra.mxu0 0.0
        %996 = vmatpush.msra.mxu0 0.0
        %997 = vmatpush.msra.mxu0 0.0
        %998 = vmatpush.msra.mxu0 0.0
        %999 = vmatpush.msra.mxu0 0.0
        %1000 = vmatpush.msra.mxu0 0.0
        %1001 = vmatpush.msra.mxu0 0.0
        %1002 = vmatpush.msra.mxu0 0.0
        %1003 = vmatpush.msra.mxu0 %v917
        %1004 = vmatpush.msra.mxu0 %v913
        %1005 = vmatmul.f32.gmra.mxu0 %v927
        %v1006 = vpop.f32.mrf.mxu0
        %v1007 = vadd.f32 0.0, %v1006
        %1008 = vdwg.mxu0
        %v1009 = vadd.f32 %v712, %v947
        %v1010 = vadd.f32 %v732, %v967
        %v1011 = vadd.f32 %v752, %v987
        %v1012 = vadd.f32 %v772, %v1007
        %v1013 = vsub.f32 %v240, 3.0
        %v1014 = vand.u32 2147483647, %v1013
        %v1015 = vsub.f32 1.0, %v1014
        %v1016 = vmax.f32 %v1015, 0.0
        %v1018 = vperm.slane %v1016, 0
        %v1019 = vperm.slane %v1016, 1
        %v1020 = vperm.slane %v1016, 2
        %v1021 = vperm.slane %v1016, 3
        %v1026 = vmul.f32 %v1018, %v290
        %v1027 = vmul.f32 %v1019, %v291
        %v1028 = vmul.f32 %v1020, %v292
        %v1029 = vmul.f32 %v1021, %v293
        %v1034 = vrot.slane %v1027, 7
        %v1035 = vrot.slane %v1028, 6
        %v1036 = vrot.slane %v1029, 5
        %v1037 = vsel %vm317, %v1026, %v1034
        %v1038 = vsel %vm319, %v1035, %v1036
        %v1039 = vsel %vm321, %v1037, %v1038
        %v1040 = vsel %vm323, %v1026, %v1034
        %v1041 = vsel %vm325, %v1035, %v1036
        %v1042 = vsel %vm327, %v1040, %v1041
        %v1043 = vrot.slane %v1042, 1
        %v1044 = vsel %vm319, %v1026, %v1034
        %v1045 = vsel %vm331, %v1035, %v1036
        %v1046 = vsel %vm333, %v1044, %v1045
        %v1047 = vrot.slane %v1046, 2
        %v1048 = vsel %vm325, %v1026, %v1034
        %v1049 = vsel %vm337, %v1035, %v1036
        %v1050 = vsel %vm339, %v1048, %v1049
        %v1051 = vrot.slane %v1050, 3
        %v1052 = vperm.slane %v1039, 0
        %v1053 = vperm.slane %v1039, 1
        %v1054 = vperm.slane %v1039, 2
        %v1055 = vperm.slane %v1039, 3
        %v1056 = vperm.slane %v1043, 0
        %v1057 = vperm.slane %v1043, 1
        %v1058 = vperm.slane %v1043, 2
        %v1059 = vperm.slane %v1043, 3
        %v1060 = vperm.slane %v1047, 0
        %v1061 = vperm.slane %v1047, 1
        %v1062 = vperm.slane %v1047, 2
        %v1063 = vperm.slane %v1047, 3
        %v1064 = vperm.slane %v1051, 0
        %v1065 = vperm.slane %v1051, 1
        %v1066 = vperm.slane %v1051, 2
        %v1067 = vperm.slane %v1051, 3
        %v1084 = vmul.f32 %v1052, %v265
        %v1085 = vmul.f32 %v1053, %v266
        %v1086 = vmul.f32 %v1054, %v267
        %v1087 = vmul.f32 %v1055, %v268
        %v1088 = vmul.f32 %v1056, %v265
        %v1089 = vmul.f32 %v1057, %v266
        %v1090 = vmul.f32 %v1058, %v267
        %v1091 = vmul.f32 %v1059, %v268
        %v1092 = vmul.f32 %v1060, %v265
        %v1093 = vmul.f32 %v1061, %v266
        %v1094 = vmul.f32 %v1062, %v267
        %v1095 = vmul.f32 %v1063, %v268
        %v1096 = vmul.f32 %v1064, %v265
        %v1097 = vmul.f32 %v1065, %v266
        %v1098 = vmul.f32 %v1066, %v267
        %v1099 = vmul.f32 %v1067, %v268
        %v1116 = vrot.slane %v1085, 4
        %v1117 = vrot.slane %v1087, 4
        %v1118 = vrot.slane %v1089, 4
        %v1119 = vrot.slane %v1091, 4
        %v1120 = vrot.slane %v1093, 4
        %v1121 = vrot.slane %v1095, 4
        %v1122 = vrot.slane %v1097, 4
        %v1123 = vrot.slane %v1099, 4
        %v1124 = vsel %vm414, %v1084, %v1116
        %v1125 = vsel %vm414, %v1086, %v1117
        %v1126 = vsel %vm414, %v1088, %v1118
        %v1127 = vsel %vm414, %v1090, %v1119
        %v1128 = vsel %vm414, %v1092, %v1120
        %v1129 = vsel %vm414, %v1094, %v1121
        %v1130 = vsel %vm414, %v1096, %v1122
        %v1131 = vsel %vm414, %v1098, %v1123
        %s1132 = scalar_lea.vmem [#allocation5], 24
        %v1133 = vld [vmem:[%s1132] sm:$0xff]
        %1134 = vst [vmem:[#allocation1] ss:$2 sm:$0xff] %v1124
        %s1135 = scalar_lea.vmem [#allocation1], 1
        %1136 = vst [vmem:[%s1135] ss:$2 sm:$0xff] %v1126
        %s1137 = scalar_lea.vmem [#allocation1], 16
        %1138 = vst [vmem:[%s1137] ss:$2 sm:$0xff] %v1125
        %s1139 = scalar_lea.vmem [#allocation1], 17
        %1140 = vst [vmem:[%s1139] ss:$2 sm:$0xff] %v1127
        %s1141 = scalar_lea.vmem [#allocation1], 32
        %1142 = vst [vmem:[%s1141] ss:$2 sm:$0xff] %v1128
        %s1143 = scalar_lea.vmem [#allocation1], 33
        %1144 = vst [vmem:[%s1143] ss:$2 sm:$0xff] %v1130
        %s1145 = scalar_lea.vmem [#allocation1], 48
        %1146 = vst [vmem:[%s1145] ss:$2 sm:$0xff] %v1129
        %s1147 = scalar_lea.vmem [#allocation1], 49
        %1148 = vst [vmem:[%s1147] ss:$2 sm:$0xff] %v1131
        %v1149 = vld.sshfl [vmem:[#allocation1] sm:$0xff pattern:$0x75316420]
        %v1150 = vld.sshfl [vmem:[#allocation1 + $0x8] sm:$0xff pattern:$0x75316420]
        %v1151 = vld.sshfl [vmem:[#allocation1 + $0x10] sm:$0xff pattern:$0x75316420]
        %v1152 = vld.sshfl [vmem:[#allocation1 + $0x18] sm:$0xff pattern:$0x75316420]
        %v1153 = vld.sshfl [vmem:[#allocation1 + $0x20] sm:$0xff pattern:$0x75316420]
        %v1154 = vld.sshfl [vmem:[#allocation1 + $0x28] sm:$0xff pattern:$0x75316420]
        %v1155 = vld.sshfl [vmem:[#allocation1 + $0x30] sm:$0xff pattern:$0x75316420]
        %v1156 = vld.sshfl [vmem:[#allocation1 + $0x38] sm:$0xff pattern:$0x75316420]
        %v1166 = vsel %vm576, %v1133, 0
        %1168 = vmatpush.msra.mxu0 0.0
        %1169 = vmatpush.msra.mxu0 0.0
        %1170 = vmatpush.msra.mxu0 0.0
        %1171 = vmatpush.msra.mxu0 0.0
        %1172 = vmatpush.msra.mxu0 0.0
        %1173 = vmatpush.msra.mxu0 0.0
        %1174 = vmatpush.msra.mxu0 0.0
        %1175 = vmatpush.msra.mxu0 0.0
        %1176 = vmatpush.msra.mxu0 0.0
        %1177 = vmatpush.msra.mxu0 0.0
        %1178 = vmatpush.msra.mxu0 0.0
        %1179 = vmatpush.msra.mxu0 0.0
        %1180 = vmatpush.msra.mxu0 0.0
        %1181 = vmatpush.msra.mxu0 0.0
        %1182 = vmatpush.msra.mxu0 %v1153
        %1183 = vmatpush.msra.mxu0 %v1149
        %1184 = vmatmul.f32.gmra.mxu0 %v1166
        %v1185 = vpop.f32.mrf.mxu0
        %v1186 = vadd.f32 0.0, %v1185
        %1187 = vdwg.mxu0
        %1188 = vmatpush.msra.mxu0 0.0
        %1189 = vmatpush.msra.mxu0 0.0
        %1190 = vmatpush.msra.mxu0 0.0
        %1191 = vmatpush.msra.mxu0 0.0
        %1192 = vmatpush.msra.mxu0 0.0
        %1193 = vmatpush.msra.mxu0 0.0
        %1194 = vmatpush.msra.mxu0 0.0
        %1195 = vmatpush.msra.mxu0 0.0
        %1196 = vmatpush.msra.mxu0 0.0
        %1197 = vmatpush.msra.mxu0 0.0
        %1198 = vmatpush.msra.mxu0 0.0
        %1199 = vmatpush.msra.mxu0 0.0
        %1200 = vmatpush.msra.mxu0 0.0
        %1201 = vmatpush.msra.mxu0 0.0
        %1202 = vmatpush.msra.mxu0 %v1154
        %1203 = vmatpush.msra.mxu0 %v1150
        %1204 = vmatmul.f32.gmra.mxu0 %v1166
        %v1205 = vpop.f32.mrf.mxu0
        %v1206 = vadd.f32 0.0, %v1205
        %1207 = vdwg.mxu0
        %1208 = vmatpush.msra.mxu0 0.0
        %1209 = vmatpush.msra.mxu0 0.0
        %1210 = vmatpush.msra.mxu0 0.0
        %1211 = vmatpush.msra.mxu0 0.0
        %1212 = vmatpush.msra.mxu0 0.0
        %1213 = vmatpush.msra.mxu0 0.0
        %1214 = vmatpush.msra.mxu0 0.0
        %1215 = vmatpush.msra.mxu0 0.0
        %1216 = vmatpush.msra.mxu0 0.0
        %1217 = vmatpush.msra.mxu0 0.0
        %1218 = vmatpush.msra.mxu0 0.0
        %1219 = vmatpush.msra.mxu0 0.0
        %1220 = vmatpush.msra.mxu0 0.0
        %1221 = vmatpush.msra.mxu0 0.0
        %1222 = vmatpush.msra.mxu0 %v1155
        %1223 = vmatpush.msra.mxu0 %v1151
        %1224 = vmatmul.f32.gmra.mxu0 %v1166
        %v1225 = vpop.f32.mrf.mxu0
        %v1226 = vadd.f32 0.0, %v1225
        %1227 = vdwg.mxu0
        %1228 = vmatpush.msra.mxu0 0.0
        %1229 = vmatpush.msra.mxu0 0.0
        %1230 = vmatpush.msra.mxu0 0.0
        %1231 = vmatpush.msra.mxu0 0.0
        %1232 = vmatpush.msra.mxu0 0.0
        %1233 = vmatpush.msra.mxu0 0.0
        %1234 = vmatpush.msra.mxu0 0.0
        %1235 = vmatpush.msra.mxu0 0.0
        %1236 = vmatpush.msra.mxu0 0.0
        %1237 = vmatpush.msra.mxu0 0.0
        %1238 = vmatpush.msra.mxu0 0.0
        %1239 = vmatpush.msra.mxu0 0.0
        %1240 = vmatpush.msra.mxu0 0.0
        %1241 = vmatpush.msra.mxu0 0.0
        %1242 = vmatpush.msra.mxu0 %v1156
        %1243 = vmatpush.msra.mxu0 %v1152
        %1244 = vmatmul.f32.gmra.mxu0 %v1166
        %v1245 = vpop.f32.mrf.mxu0
        %v1246 = vadd.f32 0.0, %v1245
        %1247 = vdwg.mxu0
        %v1248 = vadd.f32 %v1009, %v1186
        %v1249 = vadd.f32 %v1010, %v1206
        %v1250 = vadd.f32 %v1011, %v1226
        %v1251 = vadd.f32 %v1012, %v1246
        %v1252 = vxor.u32 %v1248, 2147483648
        %v1253 = vxor.u32 %v1249, 2147483648
        %v1254 = vxor.u32 %v1250, 2147483648
        %v1255 = vxor.u32 %v1251, 2147483648
        %v1256 = vmul.f32 %v1252, 1.442695
        %v1257 = vpow.pop %v1256
        %v1258 = vmul.f32 %v1253, 1.442695
        %v1259 = vpow.pop %v1258
        %v1260 = vmul.f32 %v1254, 1.442695
        %v1261 = vpow.pop %v1260
        %v1262 = vmul.f32 %v1255, 1.442695
        %v1263 = vpow.pop %v1262
        %v1264 = vadd.f32 %v1257, 1.0
        %v1265 = vadd.f32 %v1259, 1.0
        %v1266 = vadd.f32 %v1261, 1.0
        %v1267 = vadd.f32 %v1263, 1.0
        %v1268 = vrcp.pop %v1264
        %v1269 = vmul.f32 %v1264, %v1268
        %v1270 = vsub.f32 1.0, %v1269
        %v1271 = vmul.f32 %v1268, %v1270
        %v1272 = vadd.f32 %v1268, %v1271
        %vm1273 = vweird.f32 %v1264
        %vm1274 = vweird.f32 %v1268
        %vm1275 = vmor %vm1273, %vm1274
        %v1276 = vsel %vm1275, %v1268, %v1272
        %v1277 = vand.u32 2147483647, %v1264
        %vm1278 = vcmp.eq.f32.partialorder %v1277, 8.507059e+37
        %v1279 = vand.u32 %v1264, 2147483648
        %v1280 = vor.u32 1.1754944e-38, %v1279
        %v1281 = vsel %vm1278, %v1280, %v1276
        %v1282 = vmul.f32 1.0, %v1281
        %v1283 = vrcp.pop %v1265
        %v1284 = vmul.f32 %v1265, %v1283
        %v1285 = vsub.f32 1.0, %v1284
        %v1286 = vmul.f32 %v1283, %v1285
        %v1287 = vadd.f32 %v1283, %v1286
        %vm1288 = vweird.f32 %v1265
        %vm1289 = vweird.f32 %v1283
        %vm1290 = vmor %vm1288, %vm1289
        %v1291 = vsel %vm1290, %v1283, %v1287
        %v1292 = vand.u32 2147483647, %v1265
        %vm1293 = vcmp.eq.f32.partialorder %v1292, 8.507059e+37
        %v1294 = vand.u32 %v1265, 2147483648
        %v1295 = vor.u32 1.1754944e-38, %v1294
        %v1296 = vsel %vm1293, %v1295, %v1291
        %v1297 = vmul.f32 1.0, %v1296
        %v1298 = vrcp.pop %v1266
        %v1299 = vmul.f32 %v1266, %v1298
        %v1300 = vsub.f32 1.0, %v1299
        %v1301 = vmul.f32 %v1298, %v1300
        %v1302 = vadd.f32 %v1298, %v1301
        %vm1303 = vweird.f32 %v1266
        %vm1304 = vweird.f32 %v1298
        %vm1305 = vmor %vm1303, %vm1304
        %v1306 = vsel %vm1305, %v1298, %v1302
        %v1307 = vand.u32 2147483647, %v1266
        %vm1308 = vcmp.eq.f32.partialorder %v1307, 8.507059e+37
        %v1309 = vand.u32 %v1266, 2147483648
        %v1310 = vor.u32 1.1754944e-38, %v1309
        %v1311 = vsel %vm1308, %v1310, %v1306
        %v1312 = vmul.f32 1.0, %v1311
        %v1313 = vrcp.pop %v1267
        %v1314 = vmul.f32 %v1267, %v1313
        %v1315 = vsub.f32 1.0, %v1314
        %v1316 = vmul.f32 %v1313, %v1315
        %v1317 = vadd.f32 %v1313, %v1316
        %vm1318 = vweird.f32 %v1267
        %vm1319 = vweird.f32 %v1313
        %vm1320 = vmor %vm1318, %vm1319
        %v1321 = vsel %vm1320, %v1313, %v1317
        %v1322 = vand.u32 2147483647, %v1267
        %vm1323 = vcmp.eq.f32.partialorder %v1322, 8.507059e+37
        %v1324 = vand.u32 %v1267, 2147483648
        %v1325 = vor.u32 1.1754944e-38, %v1324
        %v1326 = vsel %vm1323, %v1325, %v1321
        %v1327 = vmul.f32 1.0, %v1326
        %v1328 = vmul.f32 %v1248, %v1282
        %v1329 = vmul.f32 %v1249, %v1297
        %v1330 = vmul.f32 %v1250, %v1312
        %v1331 = vmul.f32 %v1251, %v1327
        %1332 = vst [vmem:[%s221] sm:$0xff] %v1328
        %1333 = vst [vmem:[%s221 + $0x8] sm:$0xff] %v1329
        %1334 = vst [vmem:[%s221 + $0x10] sm:$0xff] %v1330
        %1335 = vst [vmem:[%s221 + $0x18] sm:$0xff] %v1331
        %v1336 = vmul.f32 %v235, 3.5
        %v1337 = vmul.f32 %v237, 3.5
        %v1338 = vmul.f32 %v239, 3.5
        %v1340 = vperm.slane %v1336, 0
        %v1341 = vperm.slane %v1336, 1
        %v1342 = vperm.slane %v1336, 2
        %v1343 = vperm.slane %v1336, 3
        %v1348 = vsub.f32 %v1340, %v243
        %v1349 = vsub.f32 %v1341, %v243
        %v1350 = vsub.f32 %v1342, %v243
        %v1351 = vsub.f32 %v1343, %v243
        %v1352 = vand.u32 2147483647, %v1348
        %v1353 = vand.u32 2147483647, %v1349
        %v1354 = vand.u32 2147483647, %v1350
        %v1355 = vand.u32 2147483647, %v1351
        %v1356 = vsub.f32 1.0, %v1352
        %v1357 = vsub.f32 1.0, %v1353
        %v1358 = vsub.f32 1.0, %v1354
        %v1359 = vsub.f32 1.0, %v1355
        %v1360 = vmax.f32 %v1356, 0.0
        %v1361 = vmax.f32 %v1357, 0.0
        %v1362 = vmax.f32 %v1358, 0.0
        %v1363 = vmax.f32 %v1359, 0.0
        %v1365 = vperm.slane %v1337, 0
        %v1366 = vperm.slane %v1337, 1
        %v1367 = vperm.slane %v1337, 2
        %v1368 = vperm.slane %v1337, 3
        %v1373 = vsub.f32 %v1365, %v243
        %v1374 = vsub.f32 %v1366, %v243
        %v1375 = vsub.f32 %v1367, %v243
        %v1376 = vsub.f32 %v1368, %v243
        %v1377 = vand.u32 2147483647, %v1373
        %v1378 = vand.u32 2147483647, %v1374
        %v1379 = vand.u32 2147483647, %v1375
        %v1380 = vand.u32 2147483647, %v1376
        %v1381 = vsub.f32 1.0, %v1377
        %v1382 = vsub.f32 1.0, %v1378
        %v1383 = vsub.f32 1.0, %v1379
        %v1384 = vsub.f32 1.0, %v1380
        %v1385 = vmax.f32 %v1381, 0.0
        %v1386 = vmax.f32 %v1382, 0.0
        %v1387 = vmax.f32 %v1383, 0.0
        %v1388 = vmax.f32 %v1384, 0.0
        %v1389 = vand.u32 2147483647, %v1338
        %v1390 = vsub.f32 1.0, %v1389
        %v1391 = vmax.f32 %v1390, 0.0
        %v1393 = vperm.slane %v1391, 0
        %v1394 = vperm.slane %v1391, 1
        %v1395 = vperm.slane %v1391, 2
        %v1396 = vperm.slane %v1391, 3
        %v1401 = vmul.f32 %v1393, %v1385
        %v1402 = vmul.f32 %v1394, %v1386
        %v1403 = vmul.f32 %v1395, %v1387
        %v1404 = vmul.f32 %v1396, %v1388
        %v1409 = vrot.slane %v1402, 7
        %v1410 = vrot.slane %v1403, 6
        %v1411 = vrot.slane %v1404, 5
        %v1412 = vsel %vm317, %v1401, %v1409
        %v1413 = vsel %vm319, %v1410, %v1411
        %v1414 = vsel %vm321, %v1412, %v1413
        %v1415 = vsel %vm323, %v1401, %v1409
        %v1416 = vsel %vm325, %v1410, %v1411
        %v1417 = vsel %vm327, %v1415, %v1416
        %v1418 = vrot.slane %v1417, 1
        %v1419 = vsel %vm319, %v1401, %v1409
        %v1420 = vsel %vm331, %v1410, %v1411
        %v1421 = vsel %vm333, %v1419, %v1420
        %v1422 = vrot.slane %v1421, 2
        %v1423 = vsel %vm325, %v1401, %v1409
        %v1424 = vsel %vm337, %v1410, %v1411
        %v1425 = vsel %vm339, %v1423, %v1424
        %v1426 = vrot.slane %v1425, 3
        %v1427 = vsel %vm331, %v1401, %v1409
        %vm1428 = vcmask 1046534
        %v1429 = vsel %vm1428, %v1410, %v1411
        %vm1430 = vcmask 1045508
        %v1431 = vsel %vm1430, %v1427, %v1429
        %v1432 = vrot.slane %v1431, 4
        %v1433 = vsel %vm337, %v1401, %v1409
        %vm1434 = vcmask 1046528
        %v1435 = vsel %vm1434, %v1411, %v1410
        %vm1436 = vcmask 1046533
        %v1437 = vsel %vm1436, %v1433, %v1435
        %v1438 = vrot.slane %v1437, 5
        %v1439 = vsel %vm1428, %v1401, %v1409
        %v1440 = vsel %vm317, %v1410, %v1411
        %vm1441 = vcmask 1045504
        %v1442 = vsel %vm1441, %v1440, %v1439
        %v1443 = vrot.slane %v1442, 6
        %v1444 = vsel %vm1434, %v1409, %v1401
        %v1445 = vsel %vm323, %v1410, %v1411
        %vm1446 = vcmask 1046529
        %v1447 = vsel %vm1446, %v1445, %v1444
        %v1448 = vrot.slane %v1447, 7
        %v1449 = vperm.slane %v1414, 0
        %v1450 = vperm.slane %v1414, 1
        %v1451 = vperm.slane %v1414, 2
        %v1452 = vperm.slane %v1414, 3
        %v1453 = vperm.slane %v1418, 0
        %v1454 = vperm.slane %v1418, 1
        %v1455 = vperm.slane %v1418, 2
        %v1456 = vperm.slane %v1418, 3
        %v1457 = vperm.slane %v1422, 0
        %v1458 = vperm.slane %v1422, 1
        %v1459 = vperm.slane %v1422, 2
        %v1460 = vperm.slane %v1422, 3
        %v1461 = vperm.slane %v1426, 0
        %v1462 = vperm.slane %v1426, 1
        %v1463 = vperm.slane %v1426, 2
        %v1464 = vperm.slane %v1426, 3
        %v1465 = vperm.slane %v1432, 0
        %v1466 = vperm.slane %v1432, 1
        %v1467 = vperm.slane %v1432, 2
        %v1468 = vperm.slane %v1432, 3
        %v1469 = vperm.slane %v1438, 0
        %v1470 = vperm.slane %v1438, 1
        %v1471 = vperm.slane %v1438, 2
        %v1472 = vperm.slane %v1438, 3
        %v1473 = vperm.slane %v1443, 0
        %v1474 = vperm.slane %v1443, 1
        %v1475 = vperm.slane %v1443, 2
        %v1476 = vperm.slane %v1443, 3
        %v1477 = vperm.slane %v1448, 0
        %v1478 = vperm.slane %v1448, 1
        %v1479 = vperm.slane %v1448, 2
        %v1480 = vperm.slane %v1448, 3
        %v1513 = vmul.f32 %v1449, %v1360
        %v1514 = vmul.f32 %v1450, %v1361
        %v1515 = vmul.f32 %v1451, %v1362
        %v1516 = vmul.f32 %v1452, %v1363
        %v1517 = vmul.f32 %v1453, %v1360
        %v1518 = vmul.f32 %v1454, %v1361
        %v1519 = vmul.f32 %v1455, %v1362
        %v1520 = vmul.f32 %v1456, %v1363
        %v1521 = vmul.f32 %v1457, %v1360
        %v1522 = vmul.f32 %v1458, %v1361
        %v1523 = vmul.f32 %v1459, %v1362
        %v1524 = vmul.f32 %v1460, %v1363
        %v1525 = vmul.f32 %v1461, %v1360
        %v1526 = vmul.f32 %v1462, %v1361
        %v1527 = vmul.f32 %v1463, %v1362
        %v1528 = vmul.f32 %v1464, %v1363
        %v1529 = vmul.f32 %v1465, %v1360
        %v1530 = vmul.f32 %v1466, %v1361
        %v1531 = vmul.f32 %v1467, %v1362
        %v1532 = vmul.f32 %v1468, %v1363
        %v1533 = vmul.f32 %v1469, %v1360
        %v1534 = vmul.f32 %v1470, %v1361
        %v1535 = vmul.f32 %v1471, %v1362
        %v1536 = vmul.f32 %v1472, %v1363
        %v1537 = vmul.f32 %v1473, %v1360
        %v1538 = vmul.f32 %v1474, %v1361
        %v1539 = vmul.f32 %v1475, %v1362
        %v1540 = vmul.f32 %v1476, %v1363
        %v1541 = vmul.f32 %v1477, %v1360
        %v1542 = vmul.f32 %v1478, %v1361
        %v1543 = vmul.f32 %v1479, %v1362
        %v1544 = vmul.f32 %v1480, %v1363
        %v1545 = vld [vmem:[#allocation7] sm:$0xff]
        %v1546 = vld [vmem:[#allocation7 + $0x8] sm:$0xff]
        %v1547 = vsub.f32 %v1338, 1.0
        %v1548 = vand.u32 2147483647, %v1547
        %v1549 = vsub.f32 1.0, %v1548
        %v1550 = vmax.f32 %v1549, 0.0
        %v1552 = vperm.slane %v1550, 0
        %v1553 = vperm.slane %v1550, 1
        %v1554 = vperm.slane %v1550, 2
        %v1555 = vperm.slane %v1550, 3
        %v1560 = vmul.f32 %v1552, %v1385
        %v1561 = vmul.f32 %v1553, %v1386
        %v1562 = vmul.f32 %v1554, %v1387
        %v1563 = vmul.f32 %v1555, %v1388
        %v1568 = vrot.slane %v1561, 7
        %v1569 = vrot.slane %v1562, 6
        %v1570 = vrot.slane %v1563, 5
        %v1571 = vsel %vm317, %v1560, %v1568
        %v1572 = vsel %vm319, %v1569, %v1570
        %v1573 = vsel %vm321, %v1571, %v1572
        %v1574 = vsel %vm323, %v1560, %v1568
        %v1575 = vsel %vm325, %v1569, %v1570
        %v1576 = vsel %vm327, %v1574, %v1575
        %v1577 = vrot.slane %v1576, 1
        %v1578 = vsel %vm319, %v1560, %v1568
        %v1579 = vsel %vm331, %v1569, %v1570
        %v1580 = vsel %vm333, %v1578, %v1579
        %v1581 = vrot.slane %v1580, 2
        %v1582 = vsel %vm325, %v1560, %v1568
        %v1583 = vsel %vm337, %v1569, %v1570
        %v1584 = vsel %vm339, %v1582, %v1583
        %v1585 = vrot.slane %v1584, 3
        %v1586 = vsel %vm331, %v1560, %v1568
        %v1587 = vsel %vm1428, %v1569, %v1570
        %v1588 = vsel %vm1430, %v1586, %v1587
        %v1589 = vrot.slane %v1588, 4
        %v1590 = vsel %vm337, %v1560, %v1568
        %v1591 = vsel %vm1434, %v1570, %v1569
        %v1592 = vsel %vm1436, %v1590, %v1591
        %v1593 = vrot.slane %v1592, 5
        %v1594 = vsel %vm1428, %v1560, %v1568
        %v1595 = vsel %vm317, %v1569, %v1570
        %v1596 = vsel %vm1441, %v1595, %v1594
        %v1597 = vrot.slane %v1596, 6
        %v1598 = vsel %vm1434, %v1568, %v1560
        %v1599 = vsel %vm323, %v1569, %v1570
        %v1600 = vsel %vm1446, %v1599, %v1598
        %v1601 = vrot.slane %v1600, 7
        %v1602 = vperm.slane %v1573, 0
        %v1603 = vperm.slane %v1573, 1
        %v1604 = vperm.slane %v1573, 2
        %v1605 = vperm.slane %v1573, 3
        %v1606 = vperm.slane %v1577, 0
        %v1607 = vperm.slane %v1577, 1
        %v1608 = vperm.slane %v1577, 2
        %v1609 = vperm.slane %v1577, 3
        %v1610 = vperm.slane %v1581, 0
        %v1611 = vperm.slane %v1581, 1
        %v1612 = vperm.slane %v1581, 2
        %v1613 = vperm.slane %v1581, 3
        %v1614 = vperm.slane %v1585, 0
        %v1615 = vperm.slane %v1585, 1
        %v1616 = vperm.slane %v1585, 2
        %v1617 = vperm.slane %v1585, 3
        %v1618 = vperm.slane %v1589, 0
        %v1619 = vperm.slane %v1589, 1
        %v1620 = vperm.slane %v1589, 2
        %v1621 = vperm.slane %v1589, 3
        %v1622 = vperm.slane %v1593, 0
        %v1623 = vperm.slane %v1593, 1
        %v1624 = vperm.slane %v1593, 2
        %v1625 = vperm.slane %v1593, 3
        %v1626 = vperm.slane %v1597, 0
        %v1627 = vperm.slane %v1597, 1
        %v1628 = vperm.slane %v1597, 2
        %v1629 = vperm.slane %v1597, 3
        %v1630 = vperm.slane %v1601, 0
        %v1631 = vperm.slane %v1601, 1
        %v1632 = vperm.slane %v1601, 2
        %v1633 = vperm.slane %v1601, 3
        %v1666 = vmul.f32 %v1602, %v1360
        %v1667 = vmul.f32 %v1603, %v1361
        %v1668 = vmul.f32 %v1604, %v1362
        %v1669 = vmul.f32 %v1605, %v1363
        %v1670 = vmul.f32 %v1606, %v1360
        %v1671 = vmul.f32 %v1607, %v1361
        %v1672 = vmul.f32 %v1608, %v1362
        %v1673 = vmul.f32 %v1609, %v1363
        %v1674 = vmul.f32 %v1610, %v1360
        %v1675 = vmul.f32 %v1611, %v1361
        %v1676 = vmul.f32 %v1612, %v1362
        %v1677 = vmul.f32 %v1613, %v1363
        %v1678 = vmul.f32 %v1614, %v1360
        %v1679 = vmul.f32 %v1615, %v1361
        %v1680 = vmul.f32 %v1616, %v1362
        %v1681 = vmul.f32 %v1617, %v1363
        %v1682 = vmul.f32 %v1618, %v1360
        %v1683 = vmul.f32 %v1619, %v1361
        %v1684 = vmul.f32 %v1620, %v1362
        %v1685 = vmul.f32 %v1621, %v1363
        %v1686 = vmul.f32 %v1622, %v1360
        %v1687 = vmul.f32 %v1623, %v1361
        %v1688 = vmul.f32 %v1624, %v1362
        %v1689 = vmul.f32 %v1625, %v1363
        %v1690 = vmul.f32 %v1626, %v1360
        %v1691 = vmul.f32 %v1627, %v1361
        %v1692 = vmul.f32 %v1628, %v1362
        %v1693 = vmul.f32 %v1629, %v1363
        %v1694 = vmul.f32 %v1630, %v1360
        %v1695 = vmul.f32 %v1631, %v1361
        %v1696 = vmul.f32 %v1632, %v1362
        %v1697 = vmul.f32 %v1633, %v1363
        %s1698 = scalar_lea.vmem [#allocation7], 16
        %v1699 = vld [vmem:[%s1698] sm:$0xff]
        %v1700 = vld [vmem:[%s1698 + $0x8] sm:$0xff]
        %vm1701 = vcmask 523264
        %v1703 = vsel %vm1701, %v1699, 0
        %v1706 = vsel %vm1701, %v1700, 0
        %1708 = vmatpush.msra.mxu0 0.0
        %1709 = vmatpush.msra.mxu0 0.0
        %1710 = vmatpush.msra.mxu0 0.0
        %1711 = vmatpush.msra.mxu0 0.0
        %1712 = vmatpush.msra.mxu0 0.0
        %1713 = vmatpush.msra.mxu0 0.0
        %1714 = vmatpush.msra.mxu0 0.0
        %1715 = vmatpush.msra.mxu0 0.0
        %1716 = vmatpush.msra.mxu0 %v1694
        %1717 = vmatpush.msra.mxu0 %v1690
        %1718 = vmatpush.msra.mxu0 %v1686
        %1719 = vmatpush.msra.mxu0 %v1682
        %1720 = vmatpush.msra.mxu0 %v1678
        %1721 = vmatpush.msra.mxu0 %v1674
        %1722 = vmatpush.msra.mxu0 %v1670
        %1723 = vmatpush.msra.mxu0 %v1666
        %1724 = vmatmul.f32.gmra.mxu0 %v1703
        %v1725 = vpop.f32.mrf.mxu0
        %v1726 = vadd.f32 0.0, %v1725
        %1727 = vmatmul.f32.gmra.mxu0 %v1706
        %v1728 = vpop.f32.mrf.mxu0
        %v1729 = vadd.f32 0.0, %v1728
        %1730 = vdwg.mxu0
        %1731 = vmatpush.msra.mxu0 0.0
        %1732 = vmatpush.msra.mxu0 0.0
        %1733 = vmatpush.msra.mxu0 0.0
        %1734 = vmatpush.msra.mxu0 0.0
        %1735 = vmatpush.msra.mxu0 0.0
        %1736 = vmatpush.msra.mxu0 0.0
        %1737 = vmatpush.msra.mxu0 0.0
        %1738 = vmatpush.msra.mxu0 0.0
        %1739 = vmatpush.msra.mxu0 %v1695
        %1740 = vmatpush.msra.mxu0 %v1691
        %1741 = vmatpush.msra.mxu0 %v1687
        %1742 = vmatpush.msra.mxu0 %v1683
        %1743 = vmatpush.msra.mxu0 %v1679
        %1744 = vmatpush.msra.mxu0 %v1675
        %1745 = vmatpush.msra.mxu0 %v1671
        %1746 = vmatpush.msra.mxu0 %v1667
        %1747 = vmatmul.f32.gmra.mxu0 %v1703
        %v1748 = vpop.f32.mrf.mxu0
        %v1749 = vadd.f32 0.0, %v1748
        %1750 = vmatmul.f32.gmra.mxu0 %v1706
        %v1751 = vpop.f32.mrf.mxu0
        %v1752 = vadd.f32 0.0, %v1751
        %1753 = vdwg.mxu0
        %1754 = vmatpush.msra.mxu0 0.0
        %1755 = vmatpush.msra.mxu0 0.0
        %1756 = vmatpush.msra.mxu0 0.0
        %1757 = vmatpush.msra.mxu0 0.0
        %1758 = vmatpush.msra.mxu0 0.0
        %1759 = vmatpush.msra.mxu0 0.0
        %1760 = vmatpush.msra.mxu0 0.0
        %1761 = vmatpush.msra.mxu0 0.0
        %1762 = vmatpush.msra.mxu0 %v1696
        %1763 = vmatpush.msra.mxu0 %v1692
        %1764 = vmatpush.msra.mxu0 %v1688
        %1765 = vmatpush.msra.mxu0 %v1684
        %1766 = vmatpush.msra.mxu0 %v1680
        %1767 = vmatpush.msra.mxu0 %v1676
        %1768 = vmatpush.msra.mxu0 %v1672
        %1769 = vmatpush.msra.mxu0 %v1668
        %1770 = vmatmul.f32.gmra.mxu0 %v1703
        %v1771 = vpop.f32.mrf.mxu0
        %v1772 = vadd.f32 0.0, %v1771
        %1773 = vmatmul.f32.gmra.mxu0 %v1706
        %v1774 = vpop.f32.mrf.mxu0
        %v1775 = vadd.f32 0.0, %v1774
        %1776 = vdwg.mxu0
        %1777 = vmatpush.msra.mxu0 0.0
        %1778 = vmatpush.msra.mxu0 0.0
        %1779 = vmatpush.msra.mxu0 0.0
        %1780 = vmatpush.msra.mxu0 0.0
        %1781 = vmatpush.msra.mxu0 0.0
        %1782 = vmatpush.msra.mxu0 0.0
        %1783 = vmatpush.msra.mxu0 0.0
        %1784 = vmatpush.msra.mxu0 0.0
        %1785 = vmatpush.msra.mxu0 %v1697
        %1786 = vmatpush.msra.mxu0 %v1693
        %1787 = vmatpush.msra.mxu0 %v1689
        %1788 = vmatpush.msra.mxu0 %v1685
        %1789 = vmatpush.msra.mxu0 %v1681
        %1790 = vmatpush.msra.mxu0 %v1677
        %1791 = vmatpush.msra.mxu0 %v1673
        %1792 = vmatpush.msra.mxu0 %v1669
        %1793 = vmatmul.f32.gmra.mxu0 %v1703
        %v1794 = vpop.f32.mrf.mxu0
        %v1795 = vadd.f32 0.0, %v1794
        %1796 = vmatmul.f32.gmra.mxu0 %v1706
        %v1797 = vpop.f32.mrf.mxu0
        %v1798 = vadd.f32 0.0, %v1797
        %1799 = vdwg.mxu0
        %v1801 = vsel %vm1701, %v1545, 0
        %v1804 = vsel %vm1701, %v1546, 0
        %1806 = vmatpush.msra.mxu0 0.0
        %1807 = vmatpush.msra.mxu0 0.0
        %1808 = vmatpush.msra.mxu0 0.0
        %1809 = vmatpush.msra.mxu0 0.0
        %1810 = vmatpush.msra.mxu0 0.0
        %1811 = vmatpush.msra.mxu0 0.0
        %1812 = vmatpush.msra.mxu0 0.0
        %1813 = vmatpush.msra.mxu0 0.0
        %1814 = vmatpush.msra.mxu0 %v1541
        %1815 = vmatpush.msra.mxu0 %v1537
        %1816 = vmatpush.msra.mxu0 %v1533
        %1817 = vmatpush.msra.mxu0 %v1529
        %1818 = vmatpush.msra.mxu0 %v1525
        %1819 = vmatpush.msra.mxu0 %v1521
        %1820 = vmatpush.msra.mxu0 %v1517
        %1821 = vmatpush.msra.mxu0 %v1513
        %1822 = vmatmul.f32.gmra.mxu0 %v1801
        %v1823 = vpop.f32.mrf.mxu0
        %v1824 = vadd.f32 %v1726, %v1823
        %1825 = vmatmul.f32.gmra.mxu0 %v1804
        %v1826 = vpop.f32.mrf.mxu0
        %v1827 = vadd.f32 %v1729, %v1826
        %1828 = vdwg.mxu0
        %1829 = vmatpush.msra.mxu0 0.0
        %1830 = vmatpush.msra.mxu0 0.0
        %1831 = vmatpush.msra.mxu0 0.0
        %1832 = vmatpush.msra.mxu0 0.0
        %1833 = vmatpush.msra.mxu0 0.0
        %1834 = vmatpush.msra.mxu0 0.0
        %1835 = vmatpush.msra.mxu0 0.0
        %1836 = vmatpush.msra.mxu0 0.0
        %1837 = vmatpush.msra.mxu0 %v1542
        %1838 = vmatpush.msra.mxu0 %v1538
        %1839 = vmatpush.msra.mxu0 %v1534
        %1840 = vmatpush.msra.mxu0 %v1530
        %1841 = vmatpush.msra.mxu0 %v1526
        %1842 = vmatpush.msra.mxu0 %v1522
        %1843 = vmatpush.msra.mxu0 %v1518
        %1844 = vmatpush.msra.mxu0 %v1514
        %1845 = vmatmul.f32.gmra.mxu0 %v1801
        %v1846 = vpop.f32.mrf.mxu0
        %v1847 = vadd.f32 %v1749, %v1846
        %1848 = vmatmul.f32.gmra.mxu0 %v1804
        %v1849 = vpop.f32.mrf.mxu0
        %v1850 = vadd.f32 %v1752, %v1849
        %1851 = vdwg.mxu0
        %1852 = vmatpush.msra.mxu0 0.0
        %1853 = vmatpush.msra.mxu0 0.0
        %1854 = vmatpush.msra.mxu0 0.0
        %1855 = vmatpush.msra.mxu0 0.0
        %1856 = vmatpush.msra.mxu0 0.0
        %1857 = vmatpush.msra.mxu0 0.0
        %1858 = vmatpush.msra.mxu0 0.0
        %1859 = vmatpush.msra.mxu0 0.0
        %1860 = vmatpush.msra.mxu0 %v1543
        %1861 = vmatpush.msra.mxu0 %v1539
        %1862 = vmatpush.msra.mxu0 %v1535
        %1863 = vmatpush.msra.mxu0 %v1531
        %1864 = vmatpush.msra.mxu0 %v1527
        %1865 = vmatpush.msra.mxu0 %v1523
        %1866 = vmatpush.msra.mxu0 %v1519
        %1867 = vmatpush.msra.mxu0 %v1515
        %1868 = vmatmul.f32.gmra.mxu0 %v1801
        %v1869 = vpop.f32.mrf.mxu0
        %v1870 = vadd.f32 %v1772, %v1869
        %1871 = vmatmul.f32.gmra.mxu0 %v1804
        %v1872 = vpop.f32.mrf.mxu0
        %v1873 = vadd.f32 %v1775, %v1872
        %1874 = vdwg.mxu0
        %1875 = vmatpush.msra.mxu0 0.0
        %1876 = vmatpush.msra.mxu0 0.0
        %1877 = vmatpush.msra.mxu0 0.0
        %1878 = vmatpush.msra.mxu0 0.0
        %1879 = vmatpush.msra.mxu0 0.0
        %1880 = vmatpush.msra.mxu0 0.0
        %1881 = vmatpush.msra.mxu0 0.0
        %1882 = vmatpush.msra.mxu0 0.0
        %1883 = vmatpush.msra.mxu0 %v1544
        %1884 = vmatpush.msra.mxu0 %v1540
        %1885 = vmatpush.msra.mxu0 %v1536
        %1886 = vmatpush.msra.mxu0 %v1532
        %1887 = vmatpush.msra.mxu0 %v1528
        %1888 = vmatpush.msra.mxu0 %v1524
        %1889 = vmatpush.msra.mxu0 %v1520
        %1890 = vmatpush.msra.mxu0 %v1516
        %1891 = vmatmul.f32.gmra.mxu0 %v1801
        %v1892 = vpop.f32.mrf.mxu0
        %v1893 = vadd.f32 %v1795, %v1892
        %1894 = vmatmul.f32.gmra.mxu0 %v1804
        %v1895 = vpop.f32.mrf.mxu0
        %v1896 = vadd.f32 %v1798, %v1895
        %1897 = vdwg.mxu0
        %v1898 = vsub.f32 %v1338, 2.0
        %v1899 = vand.u32 2147483647, %v1898
        %v1900 = vsub.f32 1.0, %v1899
        %v1901 = vmax.f32 %v1900, 0.0
        %v1903 = vperm.slane %v1901, 0
        %v1904 = vperm.slane %v1901, 1
        %v1905 = vperm.slane %v1901, 2
        %v1906 = vperm.slane %v1901, 3
        %v1911 = vmul.f32 %v1903, %v1385
        %v1912 = vmul.f32 %v1904, %v1386
        %v1913 = vmul.f32 %v1905, %v1387
        %v1914 = vmul.f32 %v1906, %v1388
        %v1919 = vrot.slane %v1912, 7
        %v1920 = vrot.slane %v1913, 6
        %v1921 = vrot.slane %v1914, 5
        %v1922 = vsel %vm317, %v1911, %v1919
        %v1923 = vsel %vm319, %v1920, %v1921
        %v1924 = vsel %vm321, %v1922, %v1923
        %v1925 = vsel %vm323, %v1911, %v1919
        %v1926 = vsel %vm325, %v1920, %v1921
        %v1927 = vsel %vm327, %v1925, %v1926
        %v1928 = vrot.slane %v1927, 1
        %v1929 = vsel %vm319, %v1911, %v1919
        %v1930 = vsel %vm331, %v1920, %v1921
        %v1931 = vsel %vm333, %v1929, %v1930
        %v1932 = vrot.slane %v1931, 2
        %v1933 = vsel %vm325, %v1911, %v1919
        %v1934 = vsel %vm337, %v1920, %v1921
        %v1935 = vsel %vm339, %v1933, %v1934
        %v1936 = vrot.slane %v1935, 3
        %v1937 = vsel %vm331, %v1911, %v1919
        %v1938 = vsel %vm1428, %v1920, %v1921
        %v1939 = vsel %vm1430, %v1937, %v1938
        %v1940 = vrot.slane %v1939, 4
        %v1941 = vsel %vm337, %v1911, %v1919
        %v1942 = vsel %vm1434, %v1921, %v1920
        %v1943 = vsel %vm1436, %v1941, %v1942
        %v1944 = vrot.slane %v1943, 5
        %v1945 = vsel %vm1428, %v1911, %v1919
        %v1946 = vsel %vm317, %v1920, %v1921
        %v1947 = vsel %vm1441, %v1946, %v1945
        %v1948 = vrot.slane %v1947, 6
        %v1949 = vsel %vm1434, %v1919, %v1911
        %v1950 = vsel %vm323, %v1920, %v1921
        %v1951 = vsel %vm1446, %v1950, %v1949
        %v1952 = vrot.slane %v1951, 7
        %v1953 = vperm.slane %v1924, 0
        %v1954 = vperm.slane %v1924, 1
        %v1955 = vperm.slane %v1924, 2
        %v1956 = vperm.slane %v1924, 3
        %v1957 = vperm.slane %v1928, 0
        %v1958 = vperm.slane %v1928, 1
        %v1959 = vperm.slane %v1928, 2
        %v1960 = vperm.slane %v1928, 3
        %v1961 = vperm.slane %v1932, 0
        %v1962 = vperm.slane %v1932, 1
        %v1963 = vperm.slane %v1932, 2
        %v1964 = vperm.slane %v1932, 3
        %v1965 = vperm.slane %v1936, 0
        %v1966 = vperm.slane %v1936, 1
        %v1967 = vperm.slane %v1936, 2
        %v1968 = vperm.slane %v1936, 3
        %v1969 = vperm.slane %v1940, 0
        %v1970 = vperm.slane %v1940, 1
        %v1971 = vperm.slane %v1940, 2
        %v1972 = vperm.slane %v1940, 3
        %v1973 = vperm.slane %v1944, 0
        %v1974 = vperm.slane %v1944, 1
        %v1975 = vperm.slane %v1944, 2
        %v1976 = vperm.slane %v1944, 3
        %v1977 = vperm.slane %v1948, 0
        %v1978 = vperm.slane %v1948, 1
        %v1979 = vperm.slane %v1948, 2
        %v1980 = vperm.slane %v1948, 3
        %v1981 = vperm.slane %v1952, 0
        %v1982 = vperm.slane %v1952, 1
        %v1983 = vperm.slane %v1952, 2
        %v1984 = vperm.slane %v1952, 3
        %v2017 = vmul.f32 %v1953, %v1360
        %v2018 = vmul.f32 %v1954, %v1361
        %v2019 = vmul.f32 %v1955, %v1362
        %v2020 = vmul.f32 %v1956, %v1363
        %v2021 = vmul.f32 %v1957, %v1360
        %v2022 = vmul.f32 %v1958, %v1361
        %v2023 = vmul.f32 %v1959, %v1362
        %v2024 = vmul.f32 %v1960, %v1363
        %v2025 = vmul.f32 %v1961, %v1360
        %v2026 = vmul.f32 %v1962, %v1361
        %v2027 = vmul.f32 %v1963, %v1362
        %v2028 = vmul.f32 %v1964, %v1363
        %v2029 = vmul.f32 %v1965, %v1360
        %v2030 = vmul.f32 %v1966, %v1361
        %v2031 = vmul.f32 %v1967, %v1362
        %v2032 = vmul.f32 %v1968, %v1363
        %v2033 = vmul.f32 %v1969, %v1360
        %v2034 = vmul.f32 %v1970, %v1361
        %v2035 = vmul.f32 %v1971, %v1362
        %v2036 = vmul.f32 %v1972, %v1363
        %v2037 = vmul.f32 %v1973, %v1360
        %v2038 = vmul.f32 %v1974, %v1361
        %v2039 = vmul.f32 %v1975, %v1362
        %v2040 = vmul.f32 %v1976, %v1363
        %v2041 = vmul.f32 %v1977, %v1360
        %v2042 = vmul.f32 %v1978, %v1361
        %v2043 = vmul.f32 %v1979, %v1362
        %v2044 = vmul.f32 %v1980, %v1363
        %v2045 = vmul.f32 %v1981, %v1360
        %v2046 = vmul.f32 %v1982, %v1361
        %v2047 = vmul.f32 %v1983, %v1362
        %v2048 = vmul.f32 %v1984, %v1363
        %s2049 = scalar_lea.vmem [#allocation7], 32
        %v2050 = vld [vmem:[%s2049] sm:$0xff]
        %v2051 = vld [vmem:[%s2049 + $0x8] sm:$0xff]
        %v2053 = vsel %vm1701, %v2050, 0
        %v2056 = vsel %vm1701, %v2051, 0
        %2058 = vmatpush.msra.mxu0 0.0
        %2059 = vmatpush.msra.mxu0 0.0
        %2060 = vmatpush.msra.mxu0 0.0
        %2061 = vmatpush.msra.mxu0 0.0
        %2062 = vmatpush.msra.mxu0 0.0
        %2063 = vmatpush.msra.mxu0 0.0
        %2064 = vmatpush.msra.mxu0 0.0
        %2065 = vmatpush.msra.mxu0 0.0
        %2066 = vmatpush.msra.mxu0 %v2045
        %2067 = vmatpush.msra.mxu0 %v2041
        %2068 = vmatpush.msra.mxu0 %v2037
        %2069 = vmatpush.msra.mxu0 %v2033
        %2070 = vmatpush.msra.mxu0 %v2029
        %2071 = vmatpush.msra.mxu0 %v2025
        %2072 = vmatpush.msra.mxu0 %v2021
        %2073 = vmatpush.msra.mxu0 %v2017
        %2074 = vmatmul.f32.gmra.mxu0 %v2053
        %v2075 = vpop.f32.mrf.mxu0
        %v2076 = vadd.f32 0.0, %v2075
        %2077 = vmatmul.f32.gmra.mxu0 %v2056
        %v2078 = vpop.f32.mrf.mxu0
        %v2079 = vadd.f32 0.0, %v2078
        %2080 = vdwg.mxu0
        %2081 = vmatpush.msra.mxu0 0.0
        %2082 = vmatpush.msra.mxu0 0.0
        %2083 = vmatpush.msra.mxu0 0.0
        %2084 = vmatpush.msra.mxu0 0.0
        %2085 = vmatpush.msra.mxu0 0.0
        %2086 = vmatpush.msra.mxu0 0.0
        %2087 = vmatpush.msra.mxu0 0.0
        %2088 = vmatpush.msra.mxu0 0.0
        %2089 = vmatpush.msra.mxu0 %v2046
        %2090 = vmatpush.msra.mxu0 %v2042
        %2091 = vmatpush.msra.mxu0 %v2038
        %2092 = vmatpush.msra.mxu0 %v2034
        %2093 = vmatpush.msra.mxu0 %v2030
        %2094 = vmatpush.msra.mxu0 %v2026
        %2095 = vmatpush.msra.mxu0 %v2022
        %2096 = vmatpush.msra.mxu0 %v2018
        %2097 = vmatmul.f32.gmra.mxu0 %v2053
        %v2098 = vpop.f32.mrf.mxu0
        %v2099 = vadd.f32 0.0, %v2098
        %2100 = vmatmul.f32.gmra.mxu0 %v2056
        %v2101 = vpop.f32.mrf.mxu0
        %v2102 = vadd.f32 0.0, %v2101
        %2103 = vdwg.mxu0
        %2104 = vmatpush.msra.mxu0 0.0
        %2105 = vmatpush.msra.mxu0 0.0
        %2106 = vmatpush.msra.mxu0 0.0
        %2107 = vmatpush.msra.mxu0 0.0
        %2108 = vmatpush.msra.mxu0 0.0
        %2109 = vmatpush.msra.mxu0 0.0
        %2110 = vmatpush.msra.mxu0 0.0
        %2111 = vmatpush.msra.mxu0 0.0
        %2112 = vmatpush.msra.mxu0 %v2047
        %2113 = vmatpush.msra.mxu0 %v2043
        %2114 = vmatpush.msra.mxu0 %v2039
        %2115 = vmatpush.msra.mxu0 %v2035
        %2116 = vmatpush.msra.mxu0 %v2031
        %2117 = vmatpush.msra.mxu0 %v2027
        %2118 = vmatpush.msra.mxu0 %v2023
        %2119 = vmatpush.msra.mxu0 %v2019
        %2120 = vmatmul.f32.gmra.mxu0 %v2053
        %v2121 = vpop.f32.mrf.mxu0
        %v2122 = vadd.f32 0.0, %v2121
        %2123 = vmatmul.f32.gmra.mxu0 %v2056
        %v2124 = vpop.f32.mrf.mxu0
        %v2125 = vadd.f32 0.0, %v2124
        %2126 = vdwg.mxu0
        %2127 = vmatpush.msra.mxu0 0.0
        %2128 = vmatpush.msra.mxu0 0.0
        %2129 = vmatpush.msra.mxu0 0.0
        %2130 = vmatpush.msra.mxu0 0.0
        %2131 = vmatpush.msra.mxu0 0.0
        %2132 = vmatpush.msra.mxu0 0.0
        %2133 = vmatpush.msra.mxu0 0.0
        %2134 = vmatpush.msra.mxu0 0.0
        %2135 = vmatpush.msra.mxu0 %v2048
        %2136 = vmatpush.msra.mxu0 %v2044
        %2137 = vmatpush.msra.mxu0 %v2040
        %2138 = vmatpush.msra.mxu0 %v2036
        %2139 = vmatpush.msra.mxu0 %v2032
        %2140 = vmatpush.msra.mxu0 %v2028
        %2141 = vmatpush.msra.mxu0 %v2024
        %2142 = vmatpush.msra.mxu0 %v2020
        %2143 = vmatmul.f32.gmra.mxu0 %v2053
        %v2144 = vpop.f32.mrf.mxu0
        %v2145 = vadd.f32 0.0, %v2144
        %2146 = vmatmul.f32.gmra.mxu0 %v2056
        %v2147 = vpop.f32.mrf.mxu0
        %v2148 = vadd.f32 0.0, %v2147
        %2149 = vdwg.mxu0
        %v2150 = vadd.f32 %v1824, %v2076
        %v2151 = vadd.f32 %v1847, %v2099
        %v2152 = vadd.f32 %v1870, %v2122
        %v2153 = vadd.f32 %v1893, %v2145
        %v2154 = vadd.f32 %v1827, %v2079
        %v2155 = vadd.f32 %v1850, %v2102
        %v2156 = vadd.f32 %v1873, %v2125
        %v2157 = vadd.f32 %v1896, %v2148
        %v2158 = vsub.f32 %v1338, 3.0
        %v2159 = vand.u32 2147483647, %v2158
        %v2160 = vsub.f32 1.0, %v2159
        %v2161 = vmax.f32 %v2160, 0.0
        %v2163 = vperm.slane %v2161, 0
        %v2164 = vperm.slane %v2161, 1
        %v2165 = vperm.slane %v2161, 2
        %v2166 = vperm.slane %v2161, 3
        %v2171 = vmul.f32 %v2163, %v1385
        %v2172 = vmul.f32 %v2164, %v1386
        %v2173 = vmul.f32 %v2165, %v1387
        %v2174 = vmul.f32 %v2166, %v1388
        %v2179 = vrot.slane %v2172, 7
        %v2180 = vrot.slane %v2173, 6
        %v2181 = vrot.slane %v2174, 5
        %v2182 = vsel %vm317, %v2171, %v2179
        %v2183 = vsel %vm319, %v2180, %v2181
        %v2184 = vsel %vm321, %v2182, %v2183
        %v2185 = vsel %vm323, %v2171, %v2179
        %v2186 = vsel %vm325, %v2180, %v2181
        %v2187 = vsel %vm327, %v2185, %v2186
        %v2188 = vrot.slane %v2187, 1
        %v2189 = vsel %vm319, %v2171, %v2179
        %v2190 = vsel %vm331, %v2180, %v2181
        %v2191 = vsel %vm333, %v2189, %v2190
        %v2192 = vrot.slane %v2191, 2
        %v2193 = vsel %vm325, %v2171, %v2179
        %v2194 = vsel %vm337, %v2180, %v2181
        %v2195 = vsel %vm339, %v2193, %v2194
        %v2196 = vrot.slane %v2195, 3
        %v2197 = vsel %vm331, %v2171, %v2179
        %v2198 = vsel %vm1428, %v2180, %v2181
        %v2199 = vsel %vm1430, %v2197, %v2198
        %v2200 = vrot.slane %v2199, 4
        %v2201 = vsel %vm337, %v2171, %v2179
        %v2202 = vsel %vm1434, %v2181, %v2180
        %v2203 = vsel %vm1436, %v2201, %v2202
        %v2204 = vrot.slane %v2203, 5
        %v2205 = vsel %vm1428, %v2171, %v2179
        %v2206 = vsel %vm317, %v2180, %v2181
        %v2207 = vsel %vm1441, %v2206, %v2205
        %v2208 = vrot.slane %v2207, 6
        %v2209 = vsel %vm1434, %v2179, %v2171
        %v2210 = vsel %vm323, %v2180, %v2181
        %v2211 = vsel %vm1446, %v2210, %v2209
        %v2212 = vrot.slane %v2211, 7
        %v2213 = vperm.slane %v2184, 0
        %v2214 = vperm.slane %v2184, 1
        %v2215 = vperm.slane %v2184, 2
        %v2216 = vperm.slane %v2184, 3
        %v2217 = vperm.slane %v2188, 0
        %v2218 = vperm.slane %v2188, 1
        %v2219 = vperm.slane %v2188, 2
        %v2220 = vperm.slane %v2188, 3
        %v2221 = vperm.slane %v2192, 0
        %v2222 = vperm.slane %v2192, 1
        %v2223 = vperm.slane %v2192, 2
        %v2224 = vperm.slane %v2192, 3
        %v2225 = vperm.slane %v2196, 0
        %v2226 = vperm.slane %v2196, 1
        %v2227 = vperm.slane %v2196, 2
        %v2228 = vperm.slane %v2196, 3
        %v2229 = vperm.slane %v2200, 0
        %v2230 = vperm.slane %v2200, 1
        %v2231 = vperm.slane %v2200, 2
        %v2232 = vperm.slane %v2200, 3
        %v2233 = vperm.slane %v2204, 0
        %v2234 = vperm.slane %v2204, 1
        %v2235 = vperm.slane %v2204, 2
        %v2236 = vperm.slane %v2204, 3
        %v2237 = vperm.slane %v2208, 0
        %v2238 = vperm.slane %v2208, 1
        %v2239 = vperm.slane %v2208, 2
        %v2240 = vperm.slane %v2208, 3
        %v2241 = vperm.slane %v2212, 0
        %v2242 = vperm.slane %v2212, 1
        %v2243 = vperm.slane %v2212, 2
        %v2244 = vperm.slane %v2212, 3
        %v2277 = vmul.f32 %v2213, %v1360
        %v2278 = vmul.f32 %v2214, %v1361
        %v2279 = vmul.f32 %v2215, %v1362
        %v2280 = vmul.f32 %v2216, %v1363
        %v2281 = vmul.f32 %v2217, %v1360
        %v2282 = vmul.f32 %v2218, %v1361
        %v2283 = vmul.f32 %v2219, %v1362
        %v2284 = vmul.f32 %v2220, %v1363
        %v2285 = vmul.f32 %v2221, %v1360
        %v2286 = vmul.f32 %v2222, %v1361
        %v2287 = vmul.f32 %v2223, %v1362
        %v2288 = vmul.f32 %v2224, %v1363
        %v2289 = vmul.f32 %v2225, %v1360
        %v2290 = vmul.f32 %v2226, %v1361
        %v2291 = vmul.f32 %v2227, %v1362
        %v2292 = vmul.f32 %v2228, %v1363
        %v2293 = vmul.f32 %v2229, %v1360
        %v2294 = vmul.f32 %v2230, %v1361
        %v2295 = vmul.f32 %v2231, %v1362
        %v2296 = vmul.f32 %v2232, %v1363
        %v2297 = vmul.f32 %v2233, %v1360
        %v2298 = vmul.f32 %v2234, %v1361
        %v2299 = vmul.f32 %v2235, %v1362
        %v2300 = vmul.f32 %v2236, %v1363
        %v2301 = vmul.f32 %v2237, %v1360
        %v2302 = vmul.f32 %v2238, %v1361
        %v2303 = vmul.f32 %v2239, %v1362
        %v2304 = vmul.f32 %v2240, %v1363
        %v2305 = vmul.f32 %v2241, %v1360
        %v2306 = vmul.f32 %v2242, %v1361
        %v2307 = vmul.f32 %v2243, %v1362
        %v2308 = vmul.f32 %v2244, %v1363
        %s2309 = scalar_lea.vmem [#allocation7], 48
        %v2310 = vld [vmem:[%s2309] sm:$0xff]
        %v2311 = vld [vmem:[%s2309 + $0x8] sm:$0xff]
        %v2313 = vsel %vm1701, %v2310, 0
        %v2316 = vsel %vm1701, %v2311, 0
        %2318 = vmatpush.msra.mxu0 0.0
        %2319 = vmatpush.msra.mxu0 0.0
        %2320 = vmatpush.msra.mxu0 0.0
        %2321 = vmatpush.msra.mxu0 0.0
        %2322 = vmatpush.msra.mxu0 0.0
        %2323 = vmatpush.msra.mxu0 0.0
        %2324 = vmatpush.msra.mxu0 0.0
        %2325 = vmatpush.msra.mxu0 0.0
        %2326 = vmatpush.msra.mxu0 %v2305
        %2327 = vmatpush.msra.mxu0 %v2301
        %2328 = vmatpush.msra.mxu0 %v2297
        %2329 = vmatpush.msra.mxu0 %v2293
        %2330 = vmatpush.msra.mxu0 %v2289
        %2331 = vmatpush.msra.mxu0 %v2285
        %2332 = vmatpush.msra.mxu0 %v2281
        %2333 = vmatpush.msra.mxu0 %v2277
        %2334 = vmatmul.f32.gmra.mxu0 %v2313
        %v2335 = vpop.f32.mrf.mxu0
        %v2336 = vadd.f32 0.0, %v2335
        %2337 = vmatmul.f32.gmra.mxu0 %v2316
        %v2338 = vpop.f32.mrf.mxu0
        %v2339 = vadd.f32 0.0, %v2338
        %2340 = vdwg.mxu0
        %2341 = vmatpush.msra.mxu0 0.0
        %2342 = vmatpush.msra.mxu0 0.0
        %2343 = vmatpush.msra.mxu0 0.0
        %2344 = vmatpush.msra.mxu0 0.0
        %2345 = vmatpush.msra.mxu0 0.0
        %2346 = vmatpush.msra.mxu0 0.0
        %2347 = vmatpush.msra.mxu0 0.0
        %2348 = vmatpush.msra.mxu0 0.0
        %2349 = vmatpush.msra.mxu0 %v2306
        %2350 = vmatpush.msra.mxu0 %v2302
        %2351 = vmatpush.msra.mxu0 %v2298
        %2352 = vmatpush.msra.mxu0 %v2294
        %2353 = vmatpush.msra.mxu0 %v2290
        %2354 = vmatpush.msra.mxu0 %v2286
        %2355 = vmatpush.msra.mxu0 %v2282
        %2356 = vmatpush.msra.mxu0 %v2278
        %2357 = vmatmul.f32.gmra.mxu0 %v2313
        %v2358 = vpop.f32.mrf.mxu0
        %v2359 = vadd.f32 0.0, %v2358
        %2360 = vmatmul.f32.gmra.mxu0 %v2316
        %v2361 = vpop.f32.mrf.mxu0
        %v2362 = vadd.f32 0.0, %v2361
        %2363 = vdwg.mxu0
        %2364 = vmatpush.msra.mxu0 0.0
        %2365 = vmatpush.msra.mxu0 0.0
        %2366 = vmatpush.msra.mxu0 0.0
        %2367 = vmatpush.msra.mxu0 0.0
        %2368 = vmatpush.msra.mxu0 0.0
        %2369 = vmatpush.msra.mxu0 0.0
        %2370 = vmatpush.msra.mxu0 0.0
        %2371 = vmatpush.msra.mxu0 0.0
        %2372 = vmatpush.msra.mxu0 %v2307
        %2373 = vmatpush.msra.mxu0 %v2303
        %2374 = vmatpush.msra.mxu0 %v2299
        %2375 = vmatpush.msra.mxu0 %v2295
        %2376 = vmatpush.msra.mxu0 %v2291
        %2377 = vmatpush.msra.mxu0 %v2287
        %2378 = vmatpush.msra.mxu0 %v2283
        %2379 = vmatpush.msra.mxu0 %v2279
        %2380 = vmatmul.f32.gmra.mxu0 %v2313
        %v2381 = vpop.f32.mrf.mxu0
        %v2382 = vadd.f32 0.0, %v2381
        %2383 = vmatmul.f32.gmra.mxu0 %v2316
        %v2384 = vpop.f32.mrf.mxu0
        %v2385 = vadd.f32 0.0, %v2384
        %2386 = vdwg.mxu0
        %2387 = vmatpush.msra.mxu0 0.0
        %2388 = vmatpush.msra.mxu0 0.0
        %2389 = vmatpush.msra.mxu0 0.0
        %2390 = vmatpush.msra.mxu0 0.0
        %2391 = vmatpush.msra.mxu0 0.0
        %2392 = vmatpush.msra.mxu0 0.0
        %2393 = vmatpush.msra.mxu0 0.0
        %2394 = vmatpush.msra.mxu0 0.0
        %2395 = vmatpush.msra.mxu0 %v2308
        %2396 = vmatpush.msra.mxu0 %v2304
        %2397 = vmatpush.msra.mxu0 %v2300
        %2398 = vmatpush.msra.mxu0 %v2296
        %2399 = vmatpush.msra.mxu0 %v2292
        %2400 = vmatpush.msra.mxu0 %v2288
        %2401 = vmatpush.msra.mxu0 %v2284
        %2402 = vmatpush.msra.mxu0 %v2280
        %2403 = vmatmul.f32.gmra.mxu0 %v2313
        %v2404 = vpop.f32.mrf.mxu0
        %v2405 = vadd.f32 0.0, %v2404
        %2406 = vmatmul.f32.gmra.mxu0 %v2316
        %v2407 = vpop.f32.mrf.mxu0
        %v2408 = vadd.f32 0.0, %v2407
        %2409 = vdwg.mxu0
        %v2410 = vadd.f32 %v2150, %v2336
        %v2411 = vadd.f32 %v2151, %v2359
        %v2412 = vadd.f32 %v2152, %v2382
        %v2413 = vadd.f32 %v2153, %v2405
        %v2414 = vadd.f32 %v2154, %v2339
        %v2415 = vadd.f32 %v2155, %v2362
        %v2416 = vadd.f32 %v2156, %v2385
        %v2417 = vadd.f32 %v2157, %v2408
        %v2418 = vsub.f32 %v1338, 4.0
        %v2419 = vand.u32 2147483647, %v2418
        %v2420 = vsub.f32 1.0, %v2419
        %v2421 = vmax.f32 %v2420, 0.0
        %v2423 = vperm.slane %v2421, 0
        %v2424 = vperm.slane %v2421, 1
        %v2425 = vperm.slane %v2421, 2
        %v2426 = vperm.slane %v2421, 3
        %v2431 = vmul.f32 %v2423, %v1385
        %v2432 = vmul.f32 %v2424, %v1386
        %v2433 = vmul.f32 %v2425, %v1387
        %v2434 = vmul.f32 %v2426, %v1388
        %v2439 = vrot.slane %v2432, 7
        %v2440 = vrot.slane %v2433, 6
        %v2441 = vrot.slane %v2434, 5
        %v2442 = vsel %vm317, %v2431, %v2439
        %v2443 = vsel %vm319, %v2440, %v2441
        %v2444 = vsel %vm321, %v2442, %v2443
        %v2445 = vsel %vm323, %v2431, %v2439
        %v2446 = vsel %vm325, %v2440, %v2441
        %v2447 = vsel %vm327, %v2445, %v2446
        %v2448 = vrot.slane %v2447, 1
        %v2449 = vsel %vm319, %v2431, %v2439
        %v2450 = vsel %vm331, %v2440, %v2441
        %v2451 = vsel %vm333, %v2449, %v2450
        %v2452 = vrot.slane %v2451, 2
        %v2453 = vsel %vm325, %v2431, %v2439
        %v2454 = vsel %vm337, %v2440, %v2441
        %v2455 = vsel %vm339, %v2453, %v2454
        %v2456 = vrot.slane %v2455, 3
        %v2457 = vsel %vm331, %v2431, %v2439
        %v2458 = vsel %vm1428, %v2440, %v2441
        %v2459 = vsel %vm1430, %v2457, %v2458
        %v2460 = vrot.slane %v2459, 4
        %v2461 = vsel %vm337, %v2431, %v2439
        %v2462 = vsel %vm1434, %v2441, %v2440
        %v2463 = vsel %vm1436, %v2461, %v2462
        %v2464 = vrot.slane %v2463, 5
        %v2465 = vsel %vm1428, %v2431, %v2439
        %v2466 = vsel %vm317, %v2440, %v2441
        %v2467 = vsel %vm1441, %v2466, %v2465
        %v2468 = vrot.slane %v2467, 6
        %v2469 = vsel %vm1434, %v2439, %v2431
        %v2470 = vsel %vm323, %v2440, %v2441
        %v2471 = vsel %vm1446, %v2470, %v2469
        %v2472 = vrot.slane %v2471, 7
        %v2473 = vperm.slane %v2444, 0
        %v2474 = vperm.slane %v2444, 1
        %v2475 = vperm.slane %v2444, 2
        %v2476 = vperm.slane %v2444, 3
        %v2477 = vperm.slane %v2448, 0
        %v2478 = vperm.slane %v2448, 1
        %v2479 = vperm.slane %v2448, 2
        %v2480 = vperm.slane %v2448, 3
        %v2481 = vperm.slane %v2452, 0
        %v2482 = vperm.slane %v2452, 1
        %v2483 = vperm.slane %v2452, 2
        %v2484 = vperm.slane %v2452, 3
        %v2485 = vperm.slane %v2456, 0
        %v2486 = vperm.slane %v2456, 1
        %v2487 = vperm.slane %v2456, 2
        %v2488 = vperm.slane %v2456, 3
        %v2489 = vperm.slane %v2460, 0
        %v2490 = vperm.slane %v2460, 1
        %v2491 = vperm.slane %v2460, 2
        %v2492 = vperm.slane %v2460, 3
        %v2493 = vperm.slane %v2464, 0
        %v2494 = vperm.slane %v2464, 1
        %v2495 = vperm.slane %v2464, 2
        %v2496 = vperm.slane %v2464, 3
        %v2497 = vperm.slane %v2468, 0
        %v2498 = vperm.slane %v2468, 1
        %v2499 = vperm.slane %v2468, 2
        %v2500 = vperm.slane %v2468, 3
        %v2501 = vperm.slane %v2472, 0
        %v2502 = vperm.slane %v2472, 1
        %v2503 = vperm.slane %v2472, 2
        %v2504 = vperm.slane %v2472, 3
        %v2537 = vmul.f32 %v2473, %v1360
        %v2538 = vmul.f32 %v2474, %v1361
        %v2539 = vmul.f32 %v2475, %v1362
        %v2540 = vmul.f32 %v2476, %v1363
        %v2541 = vmul.f32 %v2477, %v1360
        %v2542 = vmul.f32 %v2478, %v1361
        %v2543 = vmul.f32 %v2479, %v1362
        %v2544 = vmul.f32 %v2480, %v1363
        %v2545 = vmul.f32 %v2481, %v1360
        %v2546 = vmul.f32 %v2482, %v1361
        %v2547 = vmul.f32 %v2483, %v1362
        %v2548 = vmul.f32 %v2484, %v1363
        %v2549 = vmul.f32 %v2485, %v1360
        %v2550 = vmul.f32 %v2486, %v1361
        %v2551 = vmul.f32 %v2487, %v1362
        %v2552 = vmul.f32 %v2488, %v1363
        %v2553 = vmul.f32 %v2489, %v1360
        %v2554 = vmul.f32 %v2490, %v1361
        %v2555 = vmul.f32 %v2491, %v1362
        %v2556 = vmul.f32 %v2492, %v1363
        %v2557 = vmul.f32 %v2493, %v1360
        %v2558 = vmul.f32 %v2494, %v1361
        %v2559 = vmul.f32 %v2495, %v1362
        %v2560 = vmul.f32 %v2496, %v1363
        %v2561 = vmul.f32 %v2497, %v1360
        %v2562 = vmul.f32 %v2498, %v1361
        %v2563 = vmul.f32 %v2499, %v1362
        %v2564 = vmul.f32 %v2500, %v1363
        %v2565 = vmul.f32 %v2501, %v1360
        %v2566 = vmul.f32 %v2502, %v1361
        %v2567 = vmul.f32 %v2503, %v1362
        %v2568 = vmul.f32 %v2504, %v1363
        %s2569 = scalar_lea.vmem [#allocation7], 64
        %v2570 = vld [vmem:[%s2569] sm:$0xff]
        %v2571 = vld [vmem:[%s2569 + $0x8] sm:$0xff]
        %v2573 = vsel %vm1701, %v2570, 0
        %v2576 = vsel %vm1701, %v2571, 0
        %2578 = vmatpush.msra.mxu0 0.0
        %2579 = vmatpush.msra.mxu0 0.0
        %2580 = vmatpush.msra.mxu0 0.0
        %2581 = vmatpush.msra.mxu0 0.0
        %2582 = vmatpush.msra.mxu0 0.0
        %2583 = vmatpush.msra.mxu0 0.0
        %2584 = vmatpush.msra.mxu0 0.0
        %2585 = vmatpush.msra.mxu0 0.0
        %2586 = vmatpush.msra.mxu0 %v2565
        %2587 = vmatpush.msra.mxu0 %v2561
        %2588 = vmatpush.msra.mxu0 %v2557
        %2589 = vmatpush.msra.mxu0 %v2553
        %2590 = vmatpush.msra.mxu0 %v2549
        %2591 = vmatpush.msra.mxu0 %v2545
        %2592 = vmatpush.msra.mxu0 %v2541
        %2593 = vmatpush.msra.mxu0 %v2537
        %2594 = vmatmul.f32.gmra.mxu0 %v2573
        %v2595 = vpop.f32.mrf.mxu0
        %v2596 = vadd.f32 0.0, %v2595
        %2597 = vmatmul.f32.gmra.mxu0 %v2576
        %v2598 = vpop.f32.mrf.mxu0
        %v2599 = vadd.f32 0.0, %v2598
        %2600 = vdwg.mxu0
        %2601 = vmatpush.msra.mxu0 0.0
        %2602 = vmatpush.msra.mxu0 0.0
        %2603 = vmatpush.msra.mxu0 0.0
        %2604 = vmatpush.msra.mxu0 0.0
        %2605 = vmatpush.msra.mxu0 0.0
        %2606 = vmatpush.msra.mxu0 0.0
        %2607 = vmatpush.msra.mxu0 0.0
        %2608 = vmatpush.msra.mxu0 0.0
        %2609 = vmatpush.msra.mxu0 %v2566
        %2610 = vmatpush.msra.mxu0 %v2562
        %2611 = vmatpush.msra.mxu0 %v2558
        %2612 = vmatpush.msra.mxu0 %v2554
        %2613 = vmatpush.msra.mxu0 %v2550
        %2614 = vmatpush.msra.mxu0 %v2546
        %2615 = vmatpush.msra.mxu0 %v2542
        %2616 = vmatpush.msra.mxu0 %v2538
        %2617 = vmatmul.f32.gmra.mxu0 %v2573
        %v2618 = vpop.f32.mrf.mxu0
        %v2619 = vadd.f32 0.0, %v2618
        %2620 = vmatmul.f32.gmra.mxu0 %v2576
        %v2621 = vpop.f32.mrf.mxu0
        %v2622 = vadd.f32 0.0, %v2621
        %2623 = vdwg.mxu0
        %2624 = vmatpush.msra.mxu0 0.0
        %2625 = vmatpush.msra.mxu0 0.0
        %2626 = vmatpush.msra.mxu0 0.0
        %2627 = vmatpush.msra.mxu0 0.0
        %2628 = vmatpush.msra.mxu0 0.0
        %2629 = vmatpush.msra.mxu0 0.0
        %2630 = vmatpush.msra.mxu0 0.0
        %2631 = vmatpush.msra.mxu0 0.0
        %2632 = vmatpush.msra.mxu0 %v2567
        %2633 = vmatpush.msra.mxu0 %v2563
        %2634 = vmatpush.msra.mxu0 %v2559
        %2635 = vmatpush.msra.mxu0 %v2555
        %2636 = vmatpush.msra.mxu0 %v2551
        %2637 = vmatpush.msra.mxu0 %v2547
        %2638 = vmatpush.msra.mxu0 %v2543
        %2639 = vmatpush.msra.mxu0 %v2539
        %2640 = vmatmul.f32.gmra.mxu0 %v2573
        %v2641 = vpop.f32.mrf.mxu0
        %v2642 = vadd.f32 0.0, %v2641
        %2643 = vmatmul.f32.gmra.mxu0 %v2576
        %v2644 = vpop.f32.mrf.mxu0
        %v2645 = vadd.f32 0.0, %v2644
        %2646 = vdwg.mxu0
        %2647 = vmatpush.msra.mxu0 0.0
        %2648 = vmatpush.msra.mxu0 0.0
        %2649 = vmatpush.msra.mxu0 0.0
        %2650 = vmatpush.msra.mxu0 0.0
        %2651 = vmatpush.msra.mxu0 0.0
        %2652 = vmatpush.msra.mxu0 0.0
        %2653 = vmatpush.msra.mxu0 0.0
        %2654 = vmatpush.msra.mxu0 0.0
        %2655 = vmatpush.msra.mxu0 %v2568
        %2656 = vmatpush.msra.mxu0 %v2564
        %2657 = vmatpush.msra.mxu0 %v2560
        %2658 = vmatpush.msra.mxu0 %v2556
        %2659 = vmatpush.msra.mxu0 %v2552
        %2660 = vmatpush.msra.mxu0 %v2548
        %2661 = vmatpush.msra.mxu0 %v2544
        %2662 = vmatpush.msra.mxu0 %v2540
        %2663 = vmatmul.f32.gmra.mxu0 %v2573
        %v2664 = vpop.f32.mrf.mxu0
        %v2665 = vadd.f32 0.0, %v2664
        %2666 = vmatmul.f32.gmra.mxu0 %v2576
        %v2667 = vpop.f32.mrf.mxu0
        %v2668 = vadd.f32 0.0, %v2667
        %2669 = vdwg.mxu0
        %v2670 = vadd.f32 %v2410, %v2596
        %v2671 = vadd.f32 %v2411, %v2619
        %v2672 = vadd.f32 %v2412, %v2642
        %v2673 = vadd.f32 %v2413, %v2665
        %v2674 = vadd.f32 %v2414, %v2599
        %v2675 = vadd.f32 %v2415, %v2622
        %v2676 = vadd.f32 %v2416, %v2645
        %v2677 = vadd.f32 %v2417, %v2668
        %v2678 = vsub.f32 %v1338, 5.0
        %v2679 = vand.u32 2147483647, %v2678
        %v2680 = vsub.f32 1.0, %v2679
        %v2681 = vmax.f32 %v2680, 0.0
        %v2683 = vperm.slane %v2681, 0
        %v2684 = vperm.slane %v2681, 1
        %v2685 = vperm.slane %v2681, 2
        %v2686 = vperm.slane %v2681, 3
        %v2691 = vmul.f32 %v2683, %v1385
        %v2692 = vmul.f32 %v2684, %v1386
        %v2693 = vmul.f32 %v2685, %v1387
        %v2694 = vmul.f32 %v2686, %v1388
        %v2699 = vrot.slane %v2692, 7
        %v2700 = vrot.slane %v2693, 6
        %v2701 = vrot.slane %v2694, 5
        %v2702 = vsel %vm317, %v2691, %v2699
        %v2703 = vsel %vm319, %v2700, %v2701
        %v2704 = vsel %vm321, %v2702, %v2703
        %v2705 = vsel %vm323, %v2691, %v2699
        %v2706 = vsel %vm325, %v2700, %v2701
        %v2707 = vsel %vm327, %v2705, %v2706
        %v2708 = vrot.slane %v2707, 1
        %v2709 = vsel %vm319, %v2691, %v2699
        %v2710 = vsel %vm331, %v2700, %v2701
        %v2711 = vsel %vm333, %v2709, %v2710
        %v2712 = vrot.slane %v2711, 2
        %v2713 = vsel %vm325, %v2691, %v2699
        %v2714 = vsel %vm337, %v2700, %v2701
        %v2715 = vsel %vm339, %v2713, %v2714
        %v2716 = vrot.slane %v2715, 3
        %v2717 = vsel %vm331, %v2691, %v2699
        %v2718 = vsel %vm1428, %v2700, %v2701
        %v2719 = vsel %vm1430, %v2717, %v2718
        %v2720 = vrot.slane %v2719, 4
        %v2721 = vsel %vm337, %v2691, %v2699
        %v2722 = vsel %vm1434, %v2701, %v2700
        %v2723 = vsel %vm1436, %v2721, %v2722
        %v2724 = vrot.slane %v2723, 5
        %v2725 = vsel %vm1428, %v2691, %v2699
        %v2726 = vsel %vm317, %v2700, %v2701
        %v2727 = vsel %vm1441, %v2726, %v2725
        %v2728 = vrot.slane %v2727, 6
        %v2729 = vsel %vm1434, %v2699, %v2691
        %v2730 = vsel %vm323, %v2700, %v2701
        %v2731 = vsel %vm1446, %v2730, %v2729
        %v2732 = vrot.slane %v2731, 7
        %v2733 = vperm.slane %v2704, 0
        %v2734 = vperm.slane %v2704, 1
        %v2735 = vperm.slane %v2704, 2
        %v2736 = vperm.slane %v2704, 3
        %v2737 = vperm.slane %v2708, 0
        %v2738 = vperm.slane %v2708, 1
        %v2739 = vperm.slane %v2708, 2
        %v2740 = vperm.slane %v2708, 3
        %v2741 = vperm.slane %v2712, 0
        %v2742 = vperm.slane %v2712, 1
        %v2743 = vperm.slane %v2712, 2
        %v2744 = vperm.slane %v2712, 3
        %v2745 = vperm.slane %v2716, 0
        %v2746 = vperm.slane %v2716, 1
        %v2747 = vperm.slane %v2716, 2
        %v2748 = vperm.slane %v2716, 3
        %v2749 = vperm.slane %v2720, 0
        %v2750 = vperm.slane %v2720, 1
        %v2751 = vperm.slane %v2720, 2
        %v2752 = vperm.slane %v2720, 3
        %v2753 = vperm.slane %v2724, 0
        %v2754 = vperm.slane %v2724, 1
        %v2755 = vperm.slane %v2724, 2
        %v2756 = vperm.slane %v2724, 3
        %v2757 = vperm.slane %v2728, 0
        %v2758 = vperm.slane %v2728, 1
        %v2759 = vperm.slane %v2728, 2
        %v2760 = vperm.slane %v2728, 3
        %v2761 = vperm.slane %v2732, 0
        %v2762 = vperm.slane %v2732, 1
        %v2763 = vperm.slane %v2732, 2
        %v2764 = vperm.slane %v2732, 3
        %v2797 = vmul.f32 %v2733, %v1360
        %v2798 = vmul.f32 %v2734, %v1361
        %v2799 = vmul.f32 %v2735, %v1362
        %v2800 = vmul.f32 %v2736, %v1363
        %v2801 = vmul.f32 %v2737, %v1360
        %v2802 = vmul.f32 %v2738, %v1361
        %v2803 = vmul.f32 %v2739, %v1362
        %v2804 = vmul.f32 %v2740, %v1363
        %v2805 = vmul.f32 %v2741, %v1360
        %v2806 = vmul.f32 %v2742, %v1361
        %v2807 = vmul.f32 %v2743, %v1362
        %v2808 = vmul.f32 %v2744, %v1363
        %v2809 = vmul.f32 %v2745, %v1360
        %v2810 = vmul.f32 %v2746, %v1361
        %v2811 = vmul.f32 %v2747, %v1362
        %v2812 = vmul.f32 %v2748, %v1363
        %v2813 = vmul.f32 %v2749, %v1360
        %v2814 = vmul.f32 %v2750, %v1361
        %v2815 = vmul.f32 %v2751, %v1362
        %v2816 = vmul.f32 %v2752, %v1363
        %v2817 = vmul.f32 %v2753, %v1360
        %v2818 = vmul.f32 %v2754, %v1361
        %v2819 = vmul.f32 %v2755, %v1362
        %v2820 = vmul.f32 %v2756, %v1363
        %v2821 = vmul.f32 %v2757, %v1360
        %v2822 = vmul.f32 %v2758, %v1361
        %v2823 = vmul.f32 %v2759, %v1362
        %v2824 = vmul.f32 %v2760, %v1363
        %v2825 = vmul.f32 %v2761, %v1360
        %v2826 = vmul.f32 %v2762, %v1361
        %v2827 = vmul.f32 %v2763, %v1362
        %v2828 = vmul.f32 %v2764, %v1363
        %s2829 = scalar_lea.vmem [#allocation7], 80
        %v2830 = vld [vmem:[%s2829] sm:$0xff]
        %v2831 = vld [vmem:[%s2829 + $0x8] sm:$0xff]
        %v2833 = vsel %vm1701, %v2830, 0
        %v2836 = vsel %vm1701, %v2831, 0
        %2838 = vmatpush.msra.mxu0 0.0
        %2839 = vmatpush.msra.mxu0 0.0
        %2840 = vmatpush.msra.mxu0 0.0
        %2841 = vmatpush.msra.mxu0 0.0
        %2842 = vmatpush.msra.mxu0 0.0
        %2843 = vmatpush.msra.mxu0 0.0
        %2844 = vmatpush.msra.mxu0 0.0
        %2845 = vmatpush.msra.mxu0 0.0
        %2846 = vmatpush.msra.mxu0 %v2825
        %2847 = vmatpush.msra.mxu0 %v2821
        %2848 = vmatpush.msra.mxu0 %v2817
        %2849 = vmatpush.msra.mxu0 %v2813
        %2850 = vmatpush.msra.mxu0 %v2809
        %2851 = vmatpush.msra.mxu0 %v2805
        %2852 = vmatpush.msra.mxu0 %v2801
        %2853 = vmatpush.msra.mxu0 %v2797
        %2854 = vmatmul.f32.gmra.mxu0 %v2833
        %v2855 = vpop.f32.mrf.mxu0
        %v2856 = vadd.f32 0.0, %v2855
        %2857 = vmatmul.f32.gmra.mxu0 %v2836
        %v2858 = vpop.f32.mrf.mxu0
        %v2859 = vadd.f32 0.0, %v2858
        %2860 = vdwg.mxu0
        %2861 = vmatpush.msra.mxu0 0.0
        %2862 = vmatpush.msra.mxu0 0.0
        %2863 = vmatpush.msra.mxu0 0.0
        %2864 = vmatpush.msra.mxu0 0.0
        %2865 = vmatpush.msra.mxu0 0.0
        %2866 = vmatpush.msra.mxu0 0.0
        %2867 = vmatpush.msra.mxu0 0.0
        %2868 = vmatpush.msra.mxu0 0.0
        %2869 = vmatpush.msra.mxu0 %v2826
        %2870 = vmatpush.msra.mxu0 %v2822
        %2871 = vmatpush.msra.mxu0 %v2818
        %2872 = vmatpush.msra.mxu0 %v2814
        %2873 = vmatpush.msra.mxu0 %v2810
        %2874 = vmatpush.msra.mxu0 %v2806
        %2875 = vmatpush.msra.mxu0 %v2802
        %2876 = vmatpush.msra.mxu0 %v2798
        %2877 = vmatmul.f32.gmra.mxu0 %v2833
        %v2878 = vpop.f32.mrf.mxu0
        %v2879 = vadd.f32 0.0, %v2878
        %2880 = vmatmul.f32.gmra.mxu0 %v2836
        %v2881 = vpop.f32.mrf.mxu0
        %v2882 = vadd.f32 0.0, %v2881
        %2883 = vdwg.mxu0
        %2884 = vmatpush.msra.mxu0 0.0
        %2885 = vmatpush.msra.mxu0 0.0
        %2886 = vmatpush.msra.mxu0 0.0
        %2887 = vmatpush.msra.mxu0 0.0
        %2888 = vmatpush.msra.mxu0 0.0
        %2889 = vmatpush.msra.mxu0 0.0
        %2890 = vmatpush.msra.mxu0 0.0
        %2891 = vmatpush.msra.mxu0 0.0
        %2892 = vmatpush.msra.mxu0 %v2827
        %2893 = vmatpush.msra.mxu0 %v2823
        %2894 = vmatpush.msra.mxu0 %v2819
        %2895 = vmatpush.msra.mxu0 %v2815
        %2896 = vmatpush.msra.mxu0 %v2811
        %2897 = vmatpush.msra.mxu0 %v2807
        %2898 = vmatpush.msra.mxu0 %v2803
        %2899 = vmatpush.msra.mxu0 %v2799
        %2900 = vmatmul.f32.gmra.mxu0 %v2833
        %v2901 = vpop.f32.mrf.mxu0
        %v2902 = vadd.f32 0.0, %v2901
        %2903 = vmatmul.f32.gmra.mxu0 %v2836
        %v2904 = vpop.f32.mrf.mxu0
        %v2905 = vadd.f32 0.0, %v2904
        %2906 = vdwg.mxu0
        %2907 = vmatpush.msra.mxu0 0.0
        %2908 = vmatpush.msra.mxu0 0.0
        %2909 = vmatpush.msra.mxu0 0.0
        %2910 = vmatpush.msra.mxu0 0.0
        %2911 = vmatpush.msra.mxu0 0.0
        %2912 = vmatpush.msra.mxu0 0.0
        %2913 = vmatpush.msra.mxu0 0.0
        %2914 = vmatpush.msra.mxu0 0.0
        %2915 = vmatpush.msra.mxu0 %v2828
        %2916 = vmatpush.msra.mxu0 %v2824
        %2917 = vmatpush.msra.mxu0 %v2820
        %2918 = vmatpush.msra.mxu0 %v2816
        %2919 = vmatpush.msra.mxu0 %v2812
        %2920 = vmatpush.msra.mxu0 %v2808
        %2921 = vmatpush.msra.mxu0 %v2804
        %2922 = vmatpush.msra.mxu0 %v2800
        %2923 = vmatmul.f32.gmra.mxu0 %v2833
        %v2924 = vpop.f32.mrf.mxu0
        %v2925 = vadd.f32 0.0, %v2924
        %2926 = vmatmul.f32.gmra.mxu0 %v2836
        %v2927 = vpop.f32.mrf.mxu0
        %v2928 = vadd.f32 0.0, %v2927
        %2929 = vdwg.mxu0
        %v2930 = vadd.f32 %v2670, %v2856
        %v2931 = vadd.f32 %v2671, %v2879
        %v2932 = vadd.f32 %v2672, %v2902
        %v2933 = vadd.f32 %v2673, %v2925
        %v2934 = vadd.f32 %v2674, %v2859
        %v2935 = vadd.f32 %v2675, %v2882
        %v2936 = vadd.f32 %v2676, %v2905
        %v2937 = vadd.f32 %v2677, %v2928
        %v2938 = vsub.f32 %v1338, 6.0
        %v2939 = vand.u32 2147483647, %v2938
        %v2940 = vsub.f32 1.0, %v2939
        %v2941 = vmax.f32 %v2940, 0.0
        %v2943 = vperm.slane %v2941, 0
        %v2944 = vperm.slane %v2941, 1
        %v2945 = vperm.slane %v2941, 2
        %v2946 = vperm.slane %v2941, 3
        %v2951 = vmul.f32 %v2943, %v1385
        %v2952 = vmul.f32 %v2944, %v1386
        %v2953 = vmul.f32 %v2945, %v1387
        %v2954 = vmul.f32 %v2946, %v1388
        %v2959 = vrot.slane %v2952, 7
        %v2960 = vrot.slane %v2953, 6
        %v2961 = vrot.slane %v2954, 5
        %v2962 = vsel %vm317, %v2951, %v2959
        %v2963 = vsel %vm319, %v2960, %v2961
        %v2964 = vsel %vm321, %v2962, %v2963
        %v2965 = vsel %vm323, %v2951, %v2959
        %v2966 = vsel %vm325, %v2960, %v2961
        %v2967 = vsel %vm327, %v2965, %v2966
        %v2968 = vrot.slane %v2967, 1
        %v2969 = vsel %vm319, %v2951, %v2959
        %v2970 = vsel %vm331, %v2960, %v2961
        %v2971 = vsel %vm333, %v2969, %v2970
        %v2972 = vrot.slane %v2971, 2
        %v2973 = vsel %vm325, %v2951, %v2959
        %v2974 = vsel %vm337, %v2960, %v2961
        %v2975 = vsel %vm339, %v2973, %v2974
        %v2976 = vrot.slane %v2975, 3
        %v2977 = vsel %vm331, %v2951, %v2959
        %v2978 = vsel %vm1428, %v2960, %v2961
        %v2979 = vsel %vm1430, %v2977, %v2978
        %v2980 = vrot.slane %v2979, 4
        %v2981 = vsel %vm337, %v2951, %v2959
        %v2982 = vsel %vm1434, %v2961, %v2960
        %v2983 = vsel %vm1436, %v2981, %v2982
        %v2984 = vrot.slane %v2983, 5
        %v2985 = vsel %vm1428, %v2951, %v2959
        %v2986 = vsel %vm317, %v2960, %v2961
        %v2987 = vsel %vm1441, %v2986, %v2985
        %v2988 = vrot.slane %v2987, 6
        %v2989 = vsel %vm1434, %v2959, %v2951
        %v2990 = vsel %vm323, %v2960, %v2961
        %v2991 = vsel %vm1446, %v2990, %v2989
        %v2992 = vrot.slane %v2991, 7
        %v2993 = vperm.slane %v2964, 0
        %v2994 = vperm.slane %v2964, 1
        %v2995 = vperm.slane %v2964, 2
        %v2996 = vperm.slane %v2964, 3
        %v2997 = vperm.slane %v2968, 0
        %v2998 = vperm.slane %v2968, 1
        %v2999 = vperm.slane %v2968, 2
        %v3000 = vperm.slane %v2968, 3
        %v3001 = vperm.slane %v2972, 0
        %v3002 = vperm.slane %v2972, 1
        %v3003 = vperm.slane %v2972, 2
        %v3004 = vperm.slane %v2972, 3
        %v3005 = vperm.slane %v2976, 0
        %v3006 = vperm.slane %v2976, 1
        %v3007 = vperm.slane %v2976, 2
        %v3008 = vperm.slane %v2976, 3
        %v3009 = vperm.slane %v2980, 0
        %v3010 = vperm.slane %v2980, 1
        %v3011 = vperm.slane %v2980, 2
        %v3012 = vperm.slane %v2980, 3
        %v3013 = vperm.slane %v2984, 0
        %v3014 = vperm.slane %v2984, 1
        %v3015 = vperm.slane %v2984, 2
        %v3016 = vperm.slane %v2984, 3
        %v3017 = vperm.slane %v2988, 0
        %v3018 = vperm.slane %v2988, 1
        %v3019 = vperm.slane %v2988, 2
        %v3020 = vperm.slane %v2988, 3
        %v3021 = vperm.slane %v2992, 0
        %v3022 = vperm.slane %v2992, 1
        %v3023 = vperm.slane %v2992, 2
        %v3024 = vperm.slane %v2992, 3
        %v3057 = vmul.f32 %v2993, %v1360
        %v3058 = vmul.f32 %v2994, %v1361
        %v3059 = vmul.f32 %v2995, %v1362
        %v3060 = vmul.f32 %v2996, %v1363
        %v3061 = vmul.f32 %v2997, %v1360
        %v3062 = vmul.f32 %v2998, %v1361
        %v3063 = vmul.f32 %v2999, %v1362
        %v3064 = vmul.f32 %v3000, %v1363
        %v3065 = vmul.f32 %v3001, %v1360
        %v3066 = vmul.f32 %v3002, %v1361
        %v3067 = vmul.f32 %v3003, %v1362
        %v3068 = vmul.f32 %v3004, %v1363
        %v3069 = vmul.f32 %v3005, %v1360
        %v3070 = vmul.f32 %v3006, %v1361
        %v3071 = vmul.f32 %v3007, %v1362
        %v3072 = vmul.f32 %v3008, %v1363
        %v3073 = vmul.f32 %v3009, %v1360
        %v3074 = vmul.f32 %v3010, %v1361
        %v3075 = vmul.f32 %v3011, %v1362
        %v3076 = vmul.f32 %v3012, %v1363
        %v3077 = vmul.f32 %v3013, %v1360
        %v3078 = vmul.f32 %v3014, %v1361
        %v3079 = vmul.f32 %v3015, %v1362
        %v3080 = vmul.f32 %v3016, %v1363
        %v3081 = vmul.f32 %v3017, %v1360
        %v3082 = vmul.f32 %v3018, %v1361
        %v3083 = vmul.f32 %v3019, %v1362
        %v3084 = vmul.f32 %v3020, %v1363
        %v3085 = vmul.f32 %v3021, %v1360
        %v3086 = vmul.f32 %v3022, %v1361
        %v3087 = vmul.f32 %v3023, %v1362
        %v3088 = vmul.f32 %v3024, %v1363
        %s3089 = scalar_lea.vmem [#allocation7], 96
        %v3090 = vld [vmem:[%s3089] sm:$0xff]
        %v3091 = vld [vmem:[%s3089 + $0x8] sm:$0xff]
        %v3093 = vsel %vm1701, %v3090, 0
        %v3096 = vsel %vm1701, %v3091, 0
        %3098 = vmatpush.msra.mxu0 0.0
        %3099 = vmatpush.msra.mxu0 0.0
        %3100 = vmatpush.msra.mxu0 0.0
        %3101 = vmatpush.msra.mxu0 0.0
        %3102 = vmatpush.msra.mxu0 0.0
        %3103 = vmatpush.msra.mxu0 0.0
        %3104 = vmatpush.msra.mxu0 0.0
        %3105 = vmatpush.msra.mxu0 0.0
        %3106 = vmatpush.msra.mxu0 %v3085
        %3107 = vmatpush.msra.mxu0 %v3081
        %3108 = vmatpush.msra.mxu0 %v3077
        %3109 = vmatpush.msra.mxu0 %v3073
        %3110 = vmatpush.msra.mxu0 %v3069
        %3111 = vmatpush.msra.mxu0 %v3065
        %3112 = vmatpush.msra.mxu0 %v3061
        %3113 = vmatpush.msra.mxu0 %v3057
        %3114 = vmatmul.f32.gmra.mxu0 %v3093
        %v3115 = vpop.f32.mrf.mxu0
        %v3116 = vadd.f32 0.0, %v3115
        %3117 = vmatmul.f32.gmra.mxu0 %v3096
        %v3118 = vpop.f32.mrf.mxu0
        %v3119 = vadd.f32 0.0, %v3118
        %3120 = vdwg.mxu0
        %3121 = vmatpush.msra.mxu0 0.0
        %3122 = vmatpush.msra.mxu0 0.0
        %3123 = vmatpush.msra.mxu0 0.0
        %3124 = vmatpush.msra.mxu0 0.0
        %3125 = vmatpush.msra.mxu0 0.0
        %3126 = vmatpush.msra.mxu0 0.0
        %3127 = vmatpush.msra.mxu0 0.0
        %3128 = vmatpush.msra.mxu0 0.0
        %3129 = vmatpush.msra.mxu0 %v3086
        %3130 = vmatpush.msra.mxu0 %v3082
        %3131 = vmatpush.msra.mxu0 %v3078
        %3132 = vmatpush.msra.mxu0 %v3074
        %3133 = vmatpush.msra.mxu0 %v3070
        %3134 = vmatpush.msra.mxu0 %v3066
        %3135 = vmatpush.msra.mxu0 %v3062
        %3136 = vmatpush.msra.mxu0 %v3058
        %3137 = vmatmul.f32.gmra.mxu0 %v3093
        %v3138 = vpop.f32.mrf.mxu0
        %v3139 = vadd.f32 0.0, %v3138
        %3140 = vmatmul.f32.gmra.mxu0 %v3096
        %v3141 = vpop.f32.mrf.mxu0
        %v3142 = vadd.f32 0.0, %v3141
        %3143 = vdwg.mxu0
        %3144 = vmatpush.msra.mxu0 0.0
        %3145 = vmatpush.msra.mxu0 0.0
        %3146 = vmatpush.msra.mxu0 0.0
        %3147 = vmatpush.msra.mxu0 0.0
        %3148 = vmatpush.msra.mxu0 0.0
        %3149 = vmatpush.msra.mxu0 0.0
        %3150 = vmatpush.msra.mxu0 0.0
        %3151 = vmatpush.msra.mxu0 0.0
        %3152 = vmatpush.msra.mxu0 %v3087
        %3153 = vmatpush.msra.mxu0 %v3083
        %3154 = vmatpush.msra.mxu0 %v3079
        %3155 = vmatpush.msra.mxu0 %v3075
        %3156 = vmatpush.msra.mxu0 %v3071
        %3157 = vmatpush.msra.mxu0 %v3067
        %3158 = vmatpush.msra.mxu0 %v3063
        %3159 = vmatpush.msra.mxu0 %v3059
        %3160 = vmatmul.f32.gmra.mxu0 %v3093
        %v3161 = vpop.f32.mrf.mxu0
        %v3162 = vadd.f32 0.0, %v3161
        %3163 = vmatmul.f32.gmra.mxu0 %v3096
        %v3164 = vpop.f32.mrf.mxu0
        %v3165 = vadd.f32 0.0, %v3164
        %3166 = vdwg.mxu0
        %3167 = vmatpush.msra.mxu0 0.0
        %3168 = vmatpush.msra.mxu0 0.0
        %3169 = vmatpush.msra.mxu0 0.0
        %3170 = vmatpush.msra.mxu0 0.0
        %3171 = vmatpush.msra.mxu0 0.0
        %3172 = vmatpush.msra.mxu0 0.0
        %3173 = vmatpush.msra.mxu0 0.0
        %3174 = vmatpush.msra.mxu0 0.0
        %3175 = vmatpush.msra.mxu0 %v3088
        %3176 = vmatpush.msra.mxu0 %v3084
        %3177 = vmatpush.msra.mxu0 %v3080
        %3178 = vmatpush.msra.mxu0 %v3076
        %3179 = vmatpush.msra.mxu0 %v3072
        %3180 = vmatpush.msra.mxu0 %v3068
        %3181 = vmatpush.msra.mxu0 %v3064
        %3182 = vmatpush.msra.mxu0 %v3060
        %3183 = vmatmul.f32.gmra.mxu0 %v3093
        %v3184 = vpop.f32.mrf.mxu0
        %v3185 = vadd.f32 0.0, %v3184
        %3186 = vmatmul.f32.gmra.mxu0 %v3096
        %v3187 = vpop.f32.mrf.mxu0
        %v3188 = vadd.f32 0.0, %v3187
        %3189 = vdwg.mxu0
        %v3190 = vadd.f32 %v2930, %v3116
        %v3191 = vadd.f32 %v2931, %v3139
        %v3192 = vadd.f32 %v2932, %v3162
        %v3193 = vadd.f32 %v2933, %v3185
        %v3194 = vadd.f32 %v2934, %v3119
        %v3195 = vadd.f32 %v2935, %v3142
        %v3196 = vadd.f32 %v2936, %v3165
        %v3197 = vadd.f32 %v2937, %v3188
        %v3198 = vsub.f32 %v1338, 7.0
        %v3199 = vand.u32 2147483647, %v3198
        %v3200 = vsub.f32 1.0, %v3199
        %v3201 = vmax.f32 %v3200, 0.0
        %v3203 = vperm.slane %v3201, 0
        %v3204 = vperm.slane %v3201, 1
        %v3205 = vperm.slane %v3201, 2
        %v3206 = vperm.slane %v3201, 3
        %v3211 = vmul.f32 %v3203, %v1385
        %v3212 = vmul.f32 %v3204, %v1386
        %v3213 = vmul.f32 %v3205, %v1387
        %v3214 = vmul.f32 %v3206, %v1388
        %v3219 = vrot.slane %v3212, 7
        %v3220 = vrot.slane %v3213, 6
        %v3221 = vrot.slane %v3214, 5
        %v3222 = vsel %vm317, %v3211, %v3219
        %v3223 = vsel %vm319, %v3220, %v3221
        %v3224 = vsel %vm321, %v3222, %v3223
        %v3225 = vsel %vm323, %v3211, %v3219
        %v3226 = vsel %vm325, %v3220, %v3221
        %v3227 = vsel %vm327, %v3225, %v3226
        %v3228 = vrot.slane %v3227, 1
        %v3229 = vsel %vm319, %v3211, %v3219
        %v3230 = vsel %vm331, %v3220, %v3221
        %v3231 = vsel %vm333, %v3229, %v3230
        %v3232 = vrot.slane %v3231, 2
        %v3233 = vsel %vm325, %v3211, %v3219
        %v3234 = vsel %vm337, %v3220, %v3221
        %v3235 = vsel %vm339, %v3233, %v3234
        %v3236 = vrot.slane %v3235, 3
        %v3237 = vsel %vm331, %v3211, %v3219
        %v3238 = vsel %vm1428, %v3220, %v3221
        %v3239 = vsel %vm1430, %v3237, %v3238
        %v3240 = vrot.slane %v3239, 4
        %v3241 = vsel %vm337, %v3211, %v3219
        %v3242 = vsel %vm1434, %v3221, %v3220
        %v3243 = vsel %vm1436, %v3241, %v3242
        %v3244 = vrot.slane %v3243, 5
        %v3245 = vsel %vm1428, %v3211, %v3219
        %v3246 = vsel %vm317, %v3220, %v3221
        %v3247 = vsel %vm1441, %v3246, %v3245
        %v3248 = vrot.slane %v3247, 6
        %v3249 = vsel %vm1434, %v3219, %v3211
        %v3250 = vsel %vm323, %v3220, %v3221
        %v3251 = vsel %vm1446, %v3250, %v3249
        %v3252 = vrot.slane %v3251, 7
        %v3253 = vperm.slane %v3224, 0
        %v3254 = vperm.slane %v3224, 1
        %v3255 = vperm.slane %v3224, 2
        %v3256 = vperm.slane %v3224, 3
        %v3257 = vperm.slane %v3228, 0
        %v3258 = vperm.slane %v3228, 1
        %v3259 = vperm.slane %v3228, 2
        %v3260 = vperm.slane %v3228, 3
        %v3261 = vperm.slane %v3232, 0
        %v3262 = vperm.slane %v3232, 1
        %v3263 = vperm.slane %v3232, 2
        %v3264 = vperm.slane %v3232, 3
        %v3265 = vperm.slane %v3236, 0
        %v3266 = vperm.slane %v3236, 1
        %v3267 = vperm.slane %v3236, 2
        %v3268 = vperm.slane %v3236, 3
        %v3269 = vperm.slane %v3240, 0
        %v3270 = vperm.slane %v3240, 1
        %v3271 = vperm.slane %v3240, 2
        %v3272 = vperm.slane %v3240, 3
        %v3273 = vperm.slane %v3244, 0
        %v3274 = vperm.slane %v3244, 1
        %v3275 = vperm.slane %v3244, 2
        %v3276 = vperm.slane %v3244, 3
        %v3277 = vperm.slane %v3248, 0
        %v3278 = vperm.slane %v3248, 1
        %v3279 = vperm.slane %v3248, 2
        %v3280 = vperm.slane %v3248, 3
        %v3281 = vperm.slane %v3252, 0
        %v3282 = vperm.slane %v3252, 1
        %v3283 = vperm.slane %v3252, 2
        %v3284 = vperm.slane %v3252, 3
        %v3317 = vmul.f32 %v3253, %v1360
        %v3318 = vmul.f32 %v3254, %v1361
        %v3319 = vmul.f32 %v3255, %v1362
        %v3320 = vmul.f32 %v3256, %v1363
        %v3321 = vmul.f32 %v3257, %v1360
        %v3322 = vmul.f32 %v3258, %v1361
        %v3323 = vmul.f32 %v3259, %v1362
        %v3324 = vmul.f32 %v3260, %v1363
        %v3325 = vmul.f32 %v3261, %v1360
        %v3326 = vmul.f32 %v3262, %v1361
        %v3327 = vmul.f32 %v3263, %v1362
        %v3328 = vmul.f32 %v3264, %v1363
        %v3329 = vmul.f32 %v3265, %v1360
        %v3330 = vmul.f32 %v3266, %v1361
        %v3331 = vmul.f32 %v3267, %v1362
        %v3332 = vmul.f32 %v3268, %v1363
        %v3333 = vmul.f32 %v3269, %v1360
        %v3334 = vmul.f32 %v3270, %v1361
        %v3335 = vmul.f32 %v3271, %v1362
        %v3336 = vmul.f32 %v3272, %v1363
        %v3337 = vmul.f32 %v3273, %v1360
        %v3338 = vmul.f32 %v3274, %v1361
        %v3339 = vmul.f32 %v3275, %v1362
        %v3340 = vmul.f32 %v3276, %v1363
        %v3341 = vmul.f32 %v3277, %v1360
        %v3342 = vmul.f32 %v3278, %v1361
        %v3343 = vmul.f32 %v3279, %v1362
        %v3344 = vmul.f32 %v3280, %v1363
        %v3345 = vmul.f32 %v3281, %v1360
        %v3346 = vmul.f32 %v3282, %v1361
        %v3347 = vmul.f32 %v3283, %v1362
        %v3348 = vmul.f32 %v3284, %v1363
        %s3349 = scalar_lea.vmem [#allocation7], 112
        %v3350 = vld [vmem:[%s3349] sm:$0xff]
        %v3351 = vld [vmem:[%s3349 + $0x8] sm:$0xff]
        %v3353 = vsel %vm1701, %v3350, 0
        %v3356 = vsel %vm1701, %v3351, 0
        %3358 = vmatpush.msra.mxu0 0.0
        %3359 = vmatpush.msra.mxu0 0.0
        %3360 = vmatpush.msra.mxu0 0.0
        %3361 = vmatpush.msra.mxu0 0.0
        %3362 = vmatpush.msra.mxu0 0.0
        %3363 = vmatpush.msra.mxu0 0.0
        %3364 = vmatpush.msra.mxu0 0.0
        %3365 = vmatpush.msra.mxu0 0.0
        %3366 = vmatpush.msra.mxu0 %v3345
        %3367 = vmatpush.msra.mxu0 %v3341
        %3368 = vmatpush.msra.mxu0 %v3337
        %3369 = vmatpush.msra.mxu0 %v3333
        %3370 = vmatpush.msra.mxu0 %v3329
        %3371 = vmatpush.msra.mxu0 %v3325
        %3372 = vmatpush.msra.mxu0 %v3321
        %3373 = vmatpush.msra.mxu0 %v3317
        %3374 = vmatmul.f32.gmra.mxu0 %v3353
        %v3375 = vpop.f32.mrf.mxu0
        %v3376 = vadd.f32 0.0, %v3375
        %3377 = vmatmul.f32.gmra.mxu0 %v3356
        %v3378 = vpop.f32.mrf.mxu0
        %v3379 = vadd.f32 0.0, %v3378
        %3380 = vdwg.mxu0
        %3381 = vmatpush.msra.mxu0 0.0
        %3382 = vmatpush.msra.mxu0 0.0
        %3383 = vmatpush.msra.mxu0 0.0
        %3384 = vmatpush.msra.mxu0 0.0
        %3385 = vmatpush.msra.mxu0 0.0
        %3386 = vmatpush.msra.mxu0 0.0
        %3387 = vmatpush.msra.mxu0 0.0
        %3388 = vmatpush.msra.mxu0 0.0
        %3389 = vmatpush.msra.mxu0 %v3346
        %3390 = vmatpush.msra.mxu0 %v3342
        %3391 = vmatpush.msra.mxu0 %v3338
        %3392 = vmatpush.msra.mxu0 %v3334
        %3393 = vmatpush.msra.mxu0 %v3330
        %3394 = vmatpush.msra.mxu0 %v3326
        %3395 = vmatpush.msra.mxu0 %v3322
        %3396 = vmatpush.msra.mxu0 %v3318
        %3397 = vmatmul.f32.gmra.mxu0 %v3353
        %v3398 = vpop.f32.mrf.mxu0
        %v3399 = vadd.f32 0.0, %v3398
        %3400 = vmatmul.f32.gmra.mxu0 %v3356
        %v3401 = vpop.f32.mrf.mxu0
        %v3402 = vadd.f32 0.0, %v3401
        %3403 = vdwg.mxu0
        %3404 = vmatpush.msra.mxu0 0.0
        %3405 = vmatpush.msra.mxu0 0.0
        %3406 = vmatpush.msra.mxu0 0.0
        %3407 = vmatpush.msra.mxu0 0.0
        %3408 = vmatpush.msra.mxu0 0.0
        %3409 = vmatpush.msra.mxu0 0.0
        %3410 = vmatpush.msra.mxu0 0.0
        %3411 = vmatpush.msra.mxu0 0.0
        %3412 = vmatpush.msra.mxu0 %v3347
        %3413 = vmatpush.msra.mxu0 %v3343
        %3414 = vmatpush.msra.mxu0 %v3339
        %3415 = vmatpush.msra.mxu0 %v3335
        %3416 = vmatpush.msra.mxu0 %v3331
        %3417 = vmatpush.msra.mxu0 %v3327
        %3418 = vmatpush.msra.mxu0 %v3323
        %3419 = vmatpush.msra.mxu0 %v3319
        %3420 = vmatmul.f32.gmra.mxu0 %v3353
        %v3421 = vpop.f32.mrf.mxu0
        %v3422 = vadd.f32 0.0, %v3421
        %3423 = vmatmul.f32.gmra.mxu0 %v3356
        %v3424 = vpop.f32.mrf.mxu0
        %v3425 = vadd.f32 0.0, %v3424
        %3426 = vdwg.mxu0
        %3427 = vmatpush.msra.mxu0 0.0
        %3428 = vmatpush.msra.mxu0 0.0
        %3429 = vmatpush.msra.mxu0 0.0
        %3430 = vmatpush.msra.mxu0 0.0
        %3431 = vmatpush.msra.mxu0 0.0
        %3432 = vmatpush.msra.mxu0 0.0
        %3433 = vmatpush.msra.mxu0 0.0
        %3434 = vmatpush.msra.mxu0 0.0
        %3435 = vmatpush.msra.mxu0 %v3348
        %3436 = vmatpush.msra.mxu0 %v3344
        %3437 = vmatpush.msra.mxu0 %v3340
        %3438 = vmatpush.msra.mxu0 %v3336
        %3439 = vmatpush.msra.mxu0 %v3332
        %3440 = vmatpush.msra.mxu0 %v3328
        %3441 = vmatpush.msra.mxu0 %v3324
        %3442 = vmatpush.msra.mxu0 %v3320
        %3443 = vmatmul.f32.gmra.mxu0 %v3353
        %v3444 = vpop.f32.mrf.mxu0
        %v3445 = vadd.f32 0.0, %v3444
        %3446 = vmatmul.f32.gmra.mxu0 %v3356
        %v3447 = vpop.f32.mrf.mxu0
        %v3448 = vadd.f32 0.0, %v3447
        %3449 = vdwg.mxu0
        %v3450 = vadd.f32 %v3190, %v3376
        %v3451 = vadd.f32 %v3191, %v3399
        %v3452 = vadd.f32 %v3192, %v3422
        %v3453 = vadd.f32 %v3193, %v3445
        %v3454 = vadd.f32 %v3194, %v3379
        %v3455 = vadd.f32 %v3195, %v3402
        %v3456 = vadd.f32 %v3196, %v3425
        %v3457 = vadd.f32 %v3197, %v3448
        %v3458 = vxor.u32 %v3450, 2147483648
        %v3459 = vxor.u32 %v3451, 2147483648
        %v3460 = vxor.u32 %v3452, 2147483648
        %v3461 = vxor.u32 %v3453, 2147483648
        %v3462 = vxor.u32 %v3454, 2147483648
        %v3463 = vxor.u32 %v3455, 2147483648
        %v3464 = vxor.u32 %v3456, 2147483648
        %v3465 = vxor.u32 %v3457, 2147483648
        %v3466 = vmul.f32 %v3458, 1.442695
        %v3467 = vpow.pop %v3466
        %v3468 = vmul.f32 %v3459, 1.442695
        %v3469 = vpow.pop %v3468
        %v3470 = vmul.f32 %v3460, 1.442695
        %v3471 = vpow.pop %v3470
        %v3472 = vmul.f32 %v3461, 1.442695
        %v3473 = vpow.pop %v3472
        %v3474 = vmul.f32 %v3462, 1.442695
        %v3475 = vpow.pop %v3474
        %v3476 = vmul.f32 %v3463, 1.442695
        %v3477 = vpow.pop %v3476
        %v3478 = vmul.f32 %v3464, 1.442695
        %v3479 = vpow.pop %v3478
        %v3480 = vmul.f32 %v3465, 1.442695
        %v3481 = vpow.pop %v3480
        %v3482 = vadd.f32 %v3467, 1.0
        %v3483 = vadd.f32 %v3469, 1.0
        %v3484 = vadd.f32 %v3471, 1.0
        %v3485 = vadd.f32 %v3473, 1.0
        %v3486 = vadd.f32 %v3475, 1.0
        %v3487 = vadd.f32 %v3477, 1.0
        %v3488 = vadd.f32 %v3479, 1.0
        %v3489 = vadd.f32 %v3481, 1.0
        %v3490 = vrcp.pop %v3482
        %v3491 = vmul.f32 %v3482, %v3490
        %v3492 = vsub.f32 1.0, %v3491
        %v3493 = vmul.f32 %v3490, %v3492
        %v3494 = vadd.f32 %v3490, %v3493
        %vm3495 = vweird.f32 %v3482
        %vm3496 = vweird.f32 %v3490
        %vm3497 = vmor %vm3495, %vm3496
        %v3498 = vsel %vm3497, %v3490, %v3494
        %v3499 = vand.u32 2147483647, %v3482
        %vm3500 = vcmp.eq.f32.partialorder %v3499, 8.507059e+37
        %v3501 = vand.u32 %v3482, 2147483648
        %v3502 = vor.u32 1.1754944e-38, %v3501
        %v3503 = vsel %vm3500, %v3502, %v3498
        %v3504 = vmul.f32 1.0, %v3503
        %v3505 = vrcp.pop %v3483
        %v3506 = vmul.f32 %v3483, %v3505
        %v3507 = vsub.f32 1.0, %v3506
        %v3508 = vmul.f32 %v3505, %v3507
        %v3509 = vadd.f32 %v3505, %v3508
        %vm3510 = vweird.f32 %v3483
        %vm3511 = vweird.f32 %v3505
        %vm3512 = vmor %vm3510, %vm3511
        %v3513 = vsel %vm3512, %v3505, %v3509
        %v3514 = vand.u32 2147483647, %v3483
        %vm3515 = vcmp.eq.f32.partialorder %v3514, 8.507059e+37
        %v3516 = vand.u32 %v3483, 2147483648
        %v3517 = vor.u32 1.1754944e-38, %v3516
        %v3518 = vsel %vm3515, %v3517, %v3513
        %v3519 = vmul.f32 1.0, %v3518
        %v3520 = vrcp.pop %v3484
        %v3521 = vmul.f32 %v3484, %v3520
        %v3522 = vsub.f32 1.0, %v3521
        %v3523 = vmul.f32 %v3520, %v3522
        %v3524 = vadd.f32 %v3520, %v3523
        %vm3525 = vweird.f32 %v3484
        %vm3526 = vweird.f32 %v3520
        %vm3527 = vmor %vm3525, %vm3526
        %v3528 = vsel %vm3527, %v3520, %v3524
        %v3529 = vand.u32 2147483647, %v3484
        %vm3530 = vcmp.eq.f32.partialorder %v3529, 8.507059e+37
        %v3531 = vand.u32 %v3484, 2147483648
        %v3532 = vor.u32 1.1754944e-38, %v3531
        %v3533 = vsel %vm3530, %v3532, %v3528
        %v3534 = vmul.f32 1.0, %v3533
        %v3535 = vrcp.pop %v3485
        %v3536 = vmul.f32 %v3485, %v3535
        %v3537 = vsub.f32 1.0, %v3536
        %v3538 = vmul.f32 %v3535, %v3537
        %v3539 = vadd.f32 %v3535, %v3538
        %vm3540 = vweird.f32 %v3485
        %vm3541 = vweird.f32 %v3535
        %vm3542 = vmor %vm3540, %vm3541
        %v3543 = vsel %vm3542, %v3535, %v3539
        %v3544 = vand.u32 2147483647, %v3485
        %vm3545 = vcmp.eq.f32.partialorder %v3544, 8.507059e+37
        %v3546 = vand.u32 %v3485, 2147483648
        %v3547 = vor.u32 1.1754944e-38, %v3546
        %v3548 = vsel %vm3545, %v3547, %v3543
        %v3549 = vmul.f32 1.0, %v3548
        %v3550 = vrcp.pop %v3486
        %v3551 = vmul.f32 %v3486, %v3550
        %v3552 = vsub.f32 1.0, %v3551
        %v3553 = vmul.f32 %v3550, %v3552
        %v3554 = vadd.f32 %v3550, %v3553
        %vm3555 = vweird.f32 %v3486
        %vm3556 = vweird.f32 %v3550
        %vm3557 = vmor %vm3555, %vm3556
        %v3558 = vsel %vm3557, %v3550, %v3554
        %v3559 = vand.u32 2147483647, %v3486
        %vm3560 = vcmp.eq.f32.partialorder %v3559, 8.507059e+37
        %v3561 = vand.u32 %v3486, 2147483648
        %v3562 = vor.u32 1.1754944e-38, %v3561
        %v3563 = vsel %vm3560, %v3562, %v3558
        %v3564 = vmul.f32 1.0, %v3563
        %v3565 = vrcp.pop %v3487
        %v3566 = vmul.f32 %v3487, %v3565
        %v3567 = vsub.f32 1.0, %v3566
        %v3568 = vmul.f32 %v3565, %v3567
        %v3569 = vadd.f32 %v3565, %v3568
        %vm3570 = vweird.f32 %v3487
        %vm3571 = vweird.f32 %v3565
        %vm3572 = vmor %vm3570, %vm3571
        %v3573 = vsel %vm3572, %v3565, %v3569
        %v3574 = vand.u32 2147483647, %v3487
        %vm3575 = vcmp.eq.f32.partialorder %v3574, 8.507059e+37
        %v3576 = vand.u32 %v3487, 2147483648
        %v3577 = vor.u32 1.1754944e-38, %v3576
        %v3578 = vsel %vm3575, %v3577, %v3573
        %v3579 = vmul.f32 1.0, %v3578
        %v3580 = vrcp.pop %v3488
        %v3581 = vmul.f32 %v3488, %v3580
        %v3582 = vsub.f32 1.0, %v3581
        %v3583 = vmul.f32 %v3580, %v3582
        %v3584 = vadd.f32 %v3580, %v3583
        %vm3585 = vweird.f32 %v3488
        %vm3586 = vweird.f32 %v3580
        %vm3587 = vmor %vm3585, %vm3586
        %v3588 = vsel %vm3587, %v3580, %v3584
        %v3589 = vand.u32 2147483647, %v3488
        %vm3590 = vcmp.eq.f32.partialorder %v3589, 8.507059e+37
        %v3591 = vand.u32 %v3488, 2147483648
        %v3592 = vor.u32 1.1754944e-38, %v3591
        %v3593 = vsel %vm3590, %v3592, %v3588
        %v3594 = vmul.f32 1.0, %v3593
        %v3595 = vrcp.pop %v3489
        %v3596 = vmul.f32 %v3489, %v3595
        %v3597 = vsub.f32 1.0, %v3596
        %v3598 = vmul.f32 %v3595, %v3597
        %v3599 = vadd.f32 %v3595, %v3598
        %vm3600 = vweird.f32 %v3489
        %vm3601 = vweird.f32 %v3595
        %vm3602 = vmor %vm3600, %vm3601
        %v3603 = vsel %vm3602, %v3595, %v3599
        %v3604 = vand.u32 2147483647, %v3489
        %vm3605 = vcmp.eq.f32.partialorder %v3604, 8.507059e+37
        %v3606 = vand.u32 %v3489, 2147483648
        %v3607 = vor.u32 1.1754944e-38, %v3606
        %v3608 = vsel %vm3605, %v3607, %v3603
        %v3609 = vmul.f32 1.0, %v3608
        %v3610 = vmul.f32 %v3450, %v3504
        %v3611 = vmul.f32 %v3451, %v3519
        %v3612 = vmul.f32 %v3452, %v3534
        %v3613 = vmul.f32 %v3453, %v3549
        %v3614 = vmul.f32 %v3454, %v3564
        %v3615 = vmul.f32 %v3455, %v3579
        %v3616 = vmul.f32 %v3456, %v3594
        %v3617 = vmul.f32 %v3457, %v3609
        %3618 = vst [vmem:[%s221 + $0x20] sm:$0xff] %v3610
        %3619 = vst [vmem:[%s221 + $0x28] sm:$0xff] %v3611
        %3620 = vst [vmem:[%s221 + $0x30] sm:$0xff] %v3612
        %3621 = vst [vmem:[%s221 + $0x38] sm:$0xff] %v3613
        %3622 = vst [vmem:[%s221 + $0x40] sm:$0xff] %v3614
        %3623 = vst [vmem:[%s221 + $0x48] sm:$0xff] %v3615
        %3624 = vst [vmem:[%s221 + $0x50] sm:$0xff] %v3616
        %3625 = vst [vmem:[%s221 + $0x58] sm:$0xff] %v3617
        %s3626 = sand.u32 %s97, 1
        %s3627 = scalar_lea.sflag [#allocation4], %s3626
        %s3628 = sand.u32 %s97, 1
        %s3629 = smul.addr %s3628, 96
        %s3630 = scalar_lea.vmem [#allocation8], %s3629
        // Predicated region
        $region45: #{tpu_custom_call.1} parent=31 // pred_check
          %p3631 = pneg %p107
        $region46: #{tpu_custom_call.1} parent=31 // pred_check_branch
          %3633 = sbr.rel (%p3631) target = $region48
        $region47: #{tpu_custom_call.1} parent=31 // pred_region
          %s3634 = smul.u32 4, %s21
          %3636 = vsyncadd %s3627, 0
          %s3637 = smul.addr %s3634, 8
          %s3638 = scalar_lea.hbm %s3, %s3637
          %s3639 = sshll.u32 %s3630, 4
          %s3640 = int_to_ptr.vmem [resolvable:$true] %s3639
          %s3641 = sshll.u32 %s3638, 4
          %s3642 = int_to_ptr.hbm [resolvable:$true] %s3641
          %3647 = dma.vmem_to_hbm [thread:$0]  %s3640, 1536, %s3642, %s3627, 512, 1024, 32
        $region48: #{tpu_custom_call.1} parent=31 // pred_fallthru
          _
      $region32: #{tpu_custom_call.1} parent=5 // pred_fallthru
        _
      %p3648 = scmp.le.s32.totalorder 2, %s16
      // Predicated region
      $region49: #{tpu_custom_call.1} parent=5 // pred_check
        %p3649 = pneg %p3648
      $region50: #{tpu_custom_call.1} parent=5 // pred_check_branch
        %3651 = sbr.rel (%p3649) target = $region52
      $region51: #{tpu_custom_call.1} parent=5 // pred_region
        %s3652 = ssub.s32 %s16, 2
        // Predicated region
        $region53: #{tpu_custom_call.1} parent=51 // pred_check
          %p3653 = pneg %p113
        $region54: #{tpu_custom_call.1} parent=51 // pred_check_branch
          %3655 = sbr.rel (%p3653) target = $region56
        $region55: #{tpu_custom_call.1} parent=51 // pred_region
          %s3656 = sand.u32 %s98, 1
          %s3657 = scalar_lea.sflag [#allocation4], %s3656
          %s3658 = sand.u32 %s98, 1
          %s3659 = smul.addr %s3658, 96
          %s3660 = scalar_lea.vmem [#allocation8], %s3659
          %3662 = dma.done %s3657, 1536
        $region56: #{tpu_custom_call.1} parent=51 // pred_fallthru
          _
      $region52: #{tpu_custom_call.1} parent=5 // pred_fallthru
        _
    $region6: #{tpu_custom_call.1} parent=1 // loop_footer
      %s20 = sadd.s32 1, %s16
    $region7: #{tpu_custom_call.1} parent=1 // loop_footer_branch
      %15 = sbr.rel target = $region3
    $region8: #{tpu_custom_call.1} parent=1 // loop_exit
      _
    %3663 = vsyncpa [#allocation3], 1
    %s3664 = scalar_lea.sflag [#allocation3], 1
    %3665 = vsyncpa %s3664, 1
    %3666 = vsyncpa [#allocation6], 1
    %3667 = vsyncpa [#allocation4], 1
    %s3668 = scalar_lea.sflag [#allocation4], 1
    %3669 = vsyncpa %s3668, 1

</llo_original>
